<compile_context>
chip_gen: v6e
topology: v6e:2x2x1
jax: 0.10.0
libtpu: 0.0.40
codegen_flags: <defaults>
</compile_context>

<pallas_src>
import numpy as np
import jax
import jax.numpy as jnp
from jax.experimental import pallas as pl
from jax.experimental.pallas import tpu as pltpu

SELU_ALPHA = 1.6732632423543772848170429916717
SELU_SCALE = 1.0507009873554804934193349852946
GN_EPS = 1e-5
NUM_GROUPS = 32


def _selu(x):
    return SELU_SCALE * jnp.where(x > 0, x, SELU_ALPHA * (jnp.exp(x) - 1.0))


def group_avg_matrix(C, num_groups, HW):
    # mavg[j, c] = 1/(HW*cg) if channels j, c share a group, else 0, so a
    # (rows, C) x (C, C) matmul turns per-channel sums into per-group means
    # broadcast back onto channels.
    cg = C // num_groups
    gid = np.arange(C) // cg
    m = (gid[:, None] == gid[None, :]).astype(np.float32) / float(HW * cg)
    return jnp.asarray(m)


def make_residual_block(N, B, H, W, Cin, Cout, vmem_limit_bytes):
    has_proj = Cin != Cout
    cg1 = Cin // NUM_GROUPS
    cg2 = Cout // NUM_GROUPS
    HW = H * W
    M = B * HW

    def _group_norm(x3, m_ref, gamma, beta, cg):
        # x3: (B, HW, C) f32. One fused pass for sum / sum(x^2); the affine is
        # folded into per-(image,channel) scale/shift so the slab only needs
        # one mul + one add.
        s1 = jnp.sum(x3, axis=1)            # (B, C)
        s2 = jnp.sum(x3 * x3, axis=1)       # (B, C)
        if cg == 1:
            inv = 1.0 / float(HW)
            mean, ex2 = s1 * inv, s2 * inv   # diagonal group matrix: skip dot
        else:
            r = jnp.dot(jnp.concatenate([s1, s2], axis=0), m_ref[...],
                        preferred_element_type=jnp.float32)  # (2B, C)
            mean, ex2 = r[:B], r[B:]
        # TODO(synk): E[x^2]-mean^2 can cancel when |mean| >> std; fine at
        # these magnitudes (reference-checked below).
        var = ex2 - mean * mean
        inv_std = jax.lax.rsqrt(var + GN_EPS)
        scale = inv_std * gamma              # (B, C)
        shift = beta - mean * scale          # (B, C)
        return x3 * scale[:, None, :] + shift[:, None, :]

    def _conv3x3(h3, pad_ref, w_ref, b_ref, Ci, Co):
        # h3: (B, HW, Ci) f32.  Zero the bf16 padded slab (every step: keeps
        # the "parallel" grid contract), write the interior once (single bf16
        # cast), then accumulate nine shifted-window K=Ci MXU dots in f32.
        pad_ref[...] = jnp.zeros_like(pad_ref)
        pad_ref[:, pl.ds(1, H), pl.ds(1, W), :] = (
            h3.reshape(B, H, W, Ci).astype(jnp.bfloat16))
        acc = jnp.zeros((M, Co), jnp.float32)
        for dy in range(3):
            for dx in range(3):
                win = pad_ref[:, pl.ds(dy, H), pl.ds(dx, W), :].reshape(M, Ci)
                acc = acc + jnp.dot(win, w_ref[dy * 3 + dx],
                                    preferred_element_type=jnp.float32)
        return (acc + b_ref[...]).reshape(B, HW, Co)

    def kernel(*refs):
        it = iter(refs)
        x_ref = next(it)
        g1_ref, bt1_ref = next(it), next(it)
        m1_ref = next(it) if cg1 > 1 else None
        w1_ref, b1_ref = next(it), next(it)
        g2_ref, bt2_ref = next(it), next(it)
        m2_ref = next(it) if cg2 > 1 else None
        w2_ref, b2_ref = next(it), next(it)
        wr_ref, br_ref = (next(it), next(it)) if has_proj else (None, None)
        o_ref = next(it)
        pad1_ref, pad2_ref = next(it), next(it)

        x = x_ref[...].reshape(B, HW, Cin).astype(jnp.float32)

        h = _group_norm(x, m1_ref, g1_ref[...], bt1_ref[...], cg1)
        h = _selu(h)
        h = _conv3x3(h, pad1_ref, w1_ref, b1_ref, Cin, Cout)
        h = _group_norm(h, m2_ref, g2_ref[...], bt2_ref[...], cg2)
        h = _conv3x3(h, pad2_ref, w2_ref, b2_ref, Cout, Cout)

        if has_proj:
            res = jnp.dot(x.reshape(M, Cin).astype(jnp.bfloat16), wr_ref[...],
                          preferred_element_type=jnp.float32) + br_ref[...]
            res = res.reshape(B, HW, Cout)
        else:
            res = x
        o_ref[...] = (h + res).reshape(B, H, W, Cout).astype(o_ref.dtype)

    def full(shape):
        return pl.BlockSpec(shape, lambda n, _s=len(shape): (0,) * _s)

    in_specs = [pl.BlockSpec((B, H, W, Cin), lambda n: (n, 0, 0, 0)),  # x
                full((1, Cin)), full((1, Cin))]                        # gn1
    if cg1 > 1:
        in_specs.append(full((Cin, Cin)))                              # mavg1
    in_specs += [full((9, Cin, Cout)), full((1, Cout)),                # conv1
                 full((1, Cout)), full((1, Cout))]                     # gn2
    if cg2 > 1:
        in_specs.append(full((Cout, Cout)))                            # mavg2
    in_specs += [full((9, Cout, Cout)), full((1, Cout))]               # conv2
    if has_proj:
        in_specs += [full((Cin, Cout)), full((1, Cout))]               # 1x1 res
    # TODO(synk): lane-pack activations (present (N,H,W*C) slabs / pad C to
    # 128) to avoid masked vst when C < 128, single-buffer the constant
    # weight specs (pipeline_mode=pl.Buffered(1)), and replace the
    # sublane-offset pad writes/reads with pltpu.roll + border mask.

    return pl.pallas_call(
        kernel,
        out_shape=jax.ShapeDtypeStruct((N, H, W, Cout), jnp.float32),
        grid_spec=pltpu.PrefetchScalarGridSpec(
            num_scalar_prefetch=0,
            grid=(N // B,),
            in_specs=in_specs,
            out_specs=pl.BlockSpec((B, H, W, Cout), lambda n: (n, 0, 0, 0)),
            scratch_shapes=[
                pltpu.VMEM((B, H + 2, W + 2, Cin), jnp.bfloat16),   # conv1 pad
                pltpu.VMEM((B, H + 2, W + 2, Cout), jnp.bfloat16),  # conv2 pad
            ]),
        compiler_params=pltpu.CompilerParams(
            dimension_semantics=("parallel",),
            vmem_limit_bytes=int(vmem_limit_bytes)),
    )


def _tpu_vmem_capacity_bytes():
    try:
        return int(pltpu.get_tpu_info().vmem_capacity_bytes)
    except Exception:
        return 128 * 1024 * 1024            # safe default (v5e/v6e parts)


def _vmem_step_estimate(B, H, W, Cin, Cout):
    Hp, Wp = H + 2, W + 2
    M = B * H * W
    Cmax = max(Cin, Cout)
    io_blocks = 2 * (B * H * W * Cin * 4 + B * H * W * Cout * 4)  # dbl-buffered
    pads = B * Hp * Wp * (Cin + Cout) * 2                         # bf16 slabs
    weights = 2 * (9 * Cin * Cout + 9 * Cout * Cout + Cin * Cout) * 2
    live = 6 * M * Cmax * 4                                       # f32 temps
    return io_blocks + pads + weights + live


def pick_batch_block(N, H, W, Cin, Cout, vmem_limit):
    # Fill the MXU (aim M = B*H*W >= 256 rows), keep B | N, keep the parallel
    # grid >= 2 (v7x megacore sharding), and stay inside the VMEM budget.
    B = 1
    while B < N and B * H * W < 256:
        B *= 2
    while N % B:
        B //= 2
    while B > 1 and N // B < 2:
        B //= 2
    while B > 1 and _vmem_step_estimate(B, H, W, Cin, Cout) > vmem_limit:
        B //= 2
    return max(B, 1)


def residual_block_apply(x_nchw, params, batch_block=None):
    N, Cin, H, W = x_nchw.shape
    Cout = params["w1"].shape[-1]

    vmem_cap = _tpu_vmem_capacity_bytes()
    vmem_limit = max(min(vmem_cap - (8 << 20), 64 << 20), 32 << 20)
    if batch_block is None:
        batch_block = pick_batch_block(N, H, W, Cin, Cout, vmem_limit)
    B = batch_block

    x = jnp.transpose(x_nchw, (0, 2, 3, 1))            # NCHW -> NHWC
    cg1, cg2 = Cin // NUM_GROUPS, Cout // NUM_GROUPS
    w1 = params["w1"].reshape(9, Cin, Cout).astype(jnp.bfloat16)
    w2 = params["w2"].reshape(9, Cout, Cout).astype(jnp.bfloat16)

    args = [x, params["g1"].reshape(1, Cin), params["bt1"].reshape(1, Cin)]
    if cg1 > 1:
        args.append(group_avg_matrix(Cin, NUM_GROUPS, H * W))
    args += [w1, params["b1"].reshape(1, Cout),
             params["g2"].reshape(1, Cout), params["bt2"].reshape(1, Cout)]
    if cg2 > 1:
        args.append(group_avg_matrix(Cout, NUM_GROUPS, H * W))
    args += [w2, params["b2"].reshape(1, Cout)]
    if Cin != Cout:
        args += [params["wres"].astype(jnp.bfloat16),
                 params["bres"].reshape(1, Cout)]

    y = make_residual_block(N, B, H, W, Cin, Cout, vmem_limit)(*args)
    return jnp.transpose(y, (0, 3, 1, 2))              # NHWC -> NCHW


def init_params(key, Cin, Cout):
    ks = jax.random.split(key, 10)
    p = {
        "g1": 1.0 + 0.1 * jax.random.normal(ks[0], (Cin,), jnp.float32),
        "bt1": 0.1 * jax.random.normal(ks[1], (Cin,), jnp.float32),
        "w1": 0.1 * jax.random.normal(ks[2], (3, 3, Cin, Cout), jnp.float32),
        "b1": 0.1 * jax.random.normal(ks[3], (Cout,), jnp.float32),
        "g2": 1.0 + 0.1 * jax.random.normal(ks[4], (Cout,), jnp.float32),
        "bt2": 0.1 * jax.random.normal(ks[5], (Cout,), jnp.float32),
        "w2": 0.1 * jax.random.normal(ks[6], (3, 3, Cout, Cout), jnp.float32),
        "b2": 0.1 * jax.random.normal(ks[7], (Cout,), jnp.float32),
    }
    if Cin != Cout:
        p["wres"] = 0.1 * jax.random.normal(ks[8], (Cin, Cout), jnp.float32)
        p["bres"] = 0.1 * jax.random.normal(ks[9], (Cout,), jnp.float32)
    return p


def reference_forward(x_nchw, params):
    # Pure-JAX (f32) reference with identical semantics to the PyTorch module.
    x = jnp.transpose(x_nchw, (0, 2, 3, 1))

    def gn(h, gamma, beta):
        Nn, Hh, Ww, C = h.shape
        cg = C // NUM_GROUPS
        hg = h.reshape(Nn, Hh, Ww, NUM_GROUPS, cg)
        mean = hg.mean(axis=(1, 2, 4), keepdims=True)
        var = ((hg - mean) ** 2).mean(axis=(1, 2, 4), keepdims=True)
        hn = ((hg - mean) / jnp.sqrt(var + GN_EPS)).reshape(Nn, Hh, Ww, C)
        return hn * gamma + beta

    def conv(h, w, b):
        y = jax.lax.conv_general_dilated(
            h, w, window_strides=(1, 1), padding="SAME",
            dimension_numbers=("NHWC", "HWIO", "NHWC"))
        return y + b

    h = gn(x, params["g1"], params["bt1"])
    h = jax.nn.selu(h)
    h = conv(h, params["w1"], params["b1"])
    h = gn(h, params["g2"], params["bt2"])
    h = conv(h, params["w2"], params["b2"])
    res = x
    if "wres" in params:
        res = jnp.einsum("nhwc,cd->nhwd", x, params["wres"]) + params["bres"]
    return jnp.transpose(h + res, (0, 3, 1, 2))


if __name__ == "__main__":
    N, Cin, Cout, H, W = 2, 32, 64, 8, 8   # GroupNorm(32) requires C % 32 == 0
    key = jax.random.PRNGKey(0)
    kx, kp = jax.random.split(key)
    x = jax.random.normal(kx, (N, Cin, H, W), jnp.float32)   # PyTorch NCHW input
    params = init_params(kp, Cin, Cout)

    y = jax.block_until_ready(residual_block_apply(x, params))
    y_ref = jax.block_until_ready(reference_forward(x, params))
    y_np, yr_np = np.asarray(y), np.asarray(y_ref)
    # bf16 MXU operands (f32 accumulation) -> slightly looser pointwise tol,
    # plus a tight aggregate relative-error check.
    np.testing.assert_allclose(y_np, yr_np, atol=5e-2, rtol=5e-2)
    rel = np.linalg.norm(y_np - yr_np) / np.linalg.norm(yr_np)
    assert rel < 1e-2, f"relative error too large: {rel}"
    print("KERNEL_OK")
</pallas_src>

<mosaic_0001>
module attributes {stable_mosaic.version = 11 : i64} {
  func.func @kernel(%arg0: i32, %arg1: memref<1x8x8x32xf32, #tpu.memory_space<vmem>>, %arg2: memref<1x32xf32, #tpu.memory_space<vmem>>, %arg3: memref<1x32xf32, #tpu.memory_space<vmem>>, %arg4: memref<9x32x64xbf16, #tpu.memory_space<vmem>>, %arg5: memref<1x64xf32, #tpu.memory_space<vmem>>, %arg6: memref<1x64xf32, #tpu.memory_space<vmem>>, %arg7: memref<1x64xf32, #tpu.memory_space<vmem>>, %arg8: memref<64x64xf32, #tpu.memory_space<vmem>>, %arg9: memref<9x64x64xbf16, #tpu.memory_space<vmem>>, %arg10: memref<1x64xf32, #tpu.memory_space<vmem>>, %arg11: memref<32x64xbf16, #tpu.memory_space<vmem>>, %arg12: memref<1x64xf32, #tpu.memory_space<vmem>>, %arg13: memref<1x8x8x64xf32, #tpu.memory_space<vmem>>, %arg14: memref<1x10x10x32xbf16, #tpu.memory_space<vmem>>, %arg15: memref<1x10x10x64xbf16, #tpu.memory_space<vmem>>) attributes {dimension_semantics = [#tpu.dimension_semantics<parallel>], iteration_bounds = array<i64: 2>, scalar_prefetch = 0 : i64, scratch_operands = 2 : i64, tpu.core_type = #tpu.core_type<tc>, window_params = [{transform_indices = @transform_0, window_bounds = array<i64: 1, 8, 8, 32>}, {pipeline_mode = #tpu.pipeline_mode<synchronous>, transform_indices = @transform_1, window_bounds = array<i64: 1, 32>}, {pipeline_mode = #tpu.pipeline_mode<synchronous>, transform_indices = @transform_2, window_bounds = array<i64: 1, 32>}, {pipeline_mode = #tpu.pipeline_mode<synchronous>, transform_indices = @transform_3, window_bounds = array<i64: 9, 32, 64>}, {pipeline_mode = #tpu.pipeline_mode<synchronous>, transform_indices = @transform_4, window_bounds = array<i64: 1, 64>}, {pipeline_mode = #tpu.pipeline_mode<synchronous>, transform_indices = @transform_5, window_bounds = array<i64: 1, 64>}, {pipeline_mode = #tpu.pipeline_mode<synchronous>, transform_indices = @transform_6, window_bounds = array<i64: 1, 64>}, {pipeline_mode = #tpu.pipeline_mode<synchronous>, transform_indices = @transform_7, window_bounds = array<i64: 64, 64>}, {pipeline_mode = #tpu.pipeline_mode<synchronous>, transform_indices = @transform_8, window_bounds = array<i64: 9, 64, 64>}, {pipeline_mode = #tpu.pipeline_mode<synchronous>, transform_indices = @transform_9, window_bounds = array<i64: 1, 64>}, {pipeline_mode = #tpu.pipeline_mode<synchronous>, transform_indices = @transform_10, window_bounds = array<i64: 32, 64>}, {pipeline_mode = #tpu.pipeline_mode<synchronous>, transform_indices = @transform_11, window_bounds = array<i64: 1, 64>}, {transform_indices = @transform_12, window_bounds = array<i64: 1, 8, 8, 64>}]} {
    %c0 = arith.constant 0 : index
    %c0_0 = arith.constant 0 : index
    %c0_1 = arith.constant 0 : index
    %c0_2 = arith.constant 0 : index
    %0 = vector.load %arg1[%c0, %c0_0, %c0_1, %c0_2] : memref<1x8x8x32xf32, #tpu.memory_space<vmem>>, vector<1x8x8x32xf32>
    %1 = vector.shape_cast %0 : vector<1x8x8x32xf32> to vector<1x64x32xf32>
    %c0_3 = arith.constant 0 : index
    %c0_4 = arith.constant 0 : index
    %2 = vector.load %arg2[%c0_3, %c0_4] : memref<1x32xf32, #tpu.memory_space<vmem>>, vector<1x32xf32>
    %c0_5 = arith.constant 0 : index
    %c0_6 = arith.constant 0 : index
    %3 = vector.load %arg3[%c0_5, %c0_6] : memref<1x32xf32, #tpu.memory_space<vmem>>, vector<1x32xf32>
    %cst = arith.constant dense<0.000000e+00> : vector<1x32xf32>
    %4 = vector.multi_reduction <add>, %1, %cst [1] : vector<1x64x32xf32> to vector<1x32xf32>
    %5 = arith.mulf %1, %1 : vector<1x64x32xf32>
    %cst_7 = arith.constant dense<0.000000e+00> : vector<1x32xf32>
    %6 = vector.multi_reduction <add>, %5, %cst_7 [1] : vector<1x64x32xf32> to vector<1x32xf32>
    %cst_8 = arith.constant 1.562500e-02 : f32
    %7 = vector.broadcast %cst_8 : f32 to vector<1x32xf32>
    %8 = arith.mulf %4, %7 : vector<1x32xf32>
    %cst_9 = arith.constant 1.562500e-02 : f32
    %9 = vector.broadcast %cst_9 : f32 to vector<1x32xf32>
    %10 = arith.mulf %6, %9 : vector<1x32xf32>
    %11 = arith.mulf %8, %8 : vector<1x32xf32>
    %12 = arith.subf %10, %11 : vector<1x32xf32>
    %cst_10 = arith.constant 9.99999974E-6 : f32
    %13 = vector.broadcast %cst_10 : f32 to vector<1x32xf32>
    %14 = arith.addf %12, %13 : vector<1x32xf32>
    %15 = math.rsqrt %14 : vector<1x32xf32>
    %16 = arith.mulf %15, %2 : vector<1x32xf32>
    %17 = arith.mulf %8, %16 : vector<1x32xf32>
    %18 = arith.subf %3, %17 : vector<1x32xf32>
    %19 = vector.shape_cast %16 : vector<1x32xf32> to vector<1x1x32xf32>
    %20 = vector.broadcast %19 : vector<1x1x32xf32> to vector<1x64x32xf32>
    %21 = arith.mulf %1, %20 : vector<1x64x32xf32>
    %22 = vector.shape_cast %18 : vector<1x32xf32> to vector<1x1x32xf32>
    %23 = vector.broadcast %22 : vector<1x1x32xf32> to vector<1x64x32xf32>
    %24 = arith.addf %21, %23 : vector<1x64x32xf32>
    %cst_11 = arith.constant 0.000000e+00 : f32
    %25 = vector.broadcast %cst_11 : f32 to vector<1x64x32xf32>
    %26 = arith.cmpf ogt, %24, %25 : vector<1x64x32xf32>
    %27 = math.exp %24 : vector<1x64x32xf32>
    %cst_12 = arith.constant 1.000000e+00 : f32
    %28 = vector.broadcast %cst_12 : f32 to vector<1x64x32xf32>
    %29 = arith.subf %27, %28 : vector<1x64x32xf32>
    %cst_13 = arith.constant 1.67326319 : f32
    %30 = vector.broadcast %cst_13 : f32 to vector<1x64x32xf32>
    %31 = arith.mulf %30, %29 : vector<1x64x32xf32>
    %32 = arith.select %26, %24, %31 : vector<1x64x32xi1>, vector<1x64x32xf32>
    %cst_14 = arith.constant 1.05070102 : f32
    %33 = vector.broadcast %cst_14 : f32 to vector<1x64x32xf32>
    %34 = arith.mulf %33, %32 : vector<1x64x32xf32>
    %cst_15 = arith.constant 0.000000e+00 : bf16
    %35 = vector.broadcast %cst_15 : bf16 to vector<1x10x10x32xbf16>
    %c0_16 = arith.constant 0 : index
    %c0_17 = arith.constant 0 : index
    %c0_18 = arith.constant 0 : index
    %c0_19 = arith.constant 0 : index
    %36 = vector.load %arg14[%c0_16, %c0_17, %c0_18, %c0_19] : memref<1x10x10x32xbf16, #tpu.memory_space<vmem>>, vector<1x10x10x32xbf16>
    tpu.vector_store %arg14[%c0_16, %c0_17, %c0_18, %c0_19], %35 {strides = array<i32>} : memref<1x10x10x32xbf16, #tpu.memory_space<vmem>>, vector<1x10x10x32xbf16>,
    %37 = vector.shape_cast %34 : vector<1x64x32xf32> to vector<1x8x8x32xf32>
    %38 = arith.truncf %37 : vector<1x8x8x32xf32> to vector<1x8x8x32xbf16>
    %c0_20 = arith.constant 0 : index
    %c1 = arith.constant 1 : index
    %c1_21 = arith.constant 1 : index
    %c0_22 = arith.constant 0 : index
    %39 = vector.load %arg14[%c0_20, %c1, %c1_21, %c0_22] : memref<1x10x10x32xbf16, #tpu.memory_space<vmem>>, vector<1x8x8x32xbf16>
    tpu.vector_store %arg14[%c0_20, %c1, %c1_21, %c0_22], %38 {strides = array<i32>} : memref<1x10x10x32xbf16, #tpu.memory_space<vmem>>, vector<1x8x8x32xbf16>,
    %cst_23 = arith.constant 0.000000e+00 : f32
    %40 = vector.broadcast %cst_23 : f32 to vector<64x64xf32>
    %c0_24 = arith.constant 0 : index
    %c0_25 = arith.constant 0 : index
    %c0_26 = arith.constant 0 : index
    %c0_27 = arith.constant 0 : index
    %41 = vector.load %arg14[%c0_24, %c0_25, %c0_26, %c0_27] : memref<1x10x10x32xbf16, #tpu.memory_space<vmem>>, vector<1x8x8x32xbf16>
    %42 = vector.shape_cast %41 : vector<1x8x8x32xbf16> to vector<64x32xbf16>
    %c0_28 = arith.constant 0 : index
    %c0_29 = arith.constant 0 : index
    %c0_30 = arith.constant 0 : index
    %43 = vector.load %arg4[%c0_28, %c0_29, %c0_30] : memref<9x32x64xbf16, #tpu.memory_space<vmem>>, vector<1x32x64xbf16>
    %44 = vector.shape_cast %43 : vector<1x32x64xbf16> to vector<32x64xbf16>
    %cst_31 = arith.constant dense<0.000000e+00> : vector<64x64xf32>
    %45 = tpu.matmul %42, %44, %cst_31 {dimension_numbers = #tpu.dot_dimension_numbers<[1], [0], [0], [1], [0, 0, 1, 1], [], []>} : vector<64x32xbf16>, vector<32x64xbf16>, vector<64x64xf32> -> vector<64x64xf32>
    %46 = arith.addf %40, %45 : vector<64x64xf32>
    %c0_32 = arith.constant 0 : index
    %c0_33 = arith.constant 0 : index
    %c1_34 = arith.constant 1 : index
    %c0_35 = arith.constant 0 : index
    %47 = vector.load %arg14[%c0_32, %c0_33, %c1_34, %c0_35] : memref<1x10x10x32xbf16, #tpu.memory_space<vmem>>, vector<1x8x8x32xbf16>
    %48 = vector.shape_cast %47 : vector<1x8x8x32xbf16> to vector<64x32xbf16>
    %c1_36 = arith.constant 1 : index
    %c0_37 = arith.constant 0 : index
    %c0_38 = arith.constant 0 : index
    %49 = vector.load %arg4[%c1_36, %c0_37, %c0_38] : memref<9x32x64xbf16, #tpu.memory_space<vmem>>, vector<1x32x64xbf16>
    %50 = vector.shape_cast %49 : vector<1x32x64xbf16> to vector<32x64xbf16>
    %cst_39 = arith.constant dense<0.000000e+00> : vector<64x64xf32>
    %51 = tpu.matmul %48, %50, %cst_39 {dimension_numbers = #tpu.dot_dimension_numbers<[1], [0], [0], [1], [0, 0, 1, 1], [], []>} : vector<64x32xbf16>, vector<32x64xbf16>, vector<64x64xf32> -> vector<64x64xf32>
    %52 = arith.addf %46, %51 : vector<64x64xf32>
    %c0_40 = arith.constant 0 : index
    %c0_41 = arith.constant 0 : index
    %c2 = arith.constant 2 : index
    %c0_42 = arith.constant 0 : index
    %53 = vector.load %arg14[%c0_40, %c0_41, %c2, %c0_42] : memref<1x10x10x32xbf16, #tpu.memory_space<vmem>>, vector<1x8x8x32xbf16>
    %54 = vector.shape_cast %53 : vector<1x8x8x32xbf16> to vector<64x32xbf16>
    %c2_43 = arith.constant 2 : index
    %c0_44 = arith.constant 0 : index
    %c0_45 = arith.constant 0 : index
    %55 = vector.load %arg4[%c2_43, %c0_44, %c0_45] : memref<9x32x64xbf16, #tpu.memory_space<vmem>>, vector<1x32x64xbf16>
    %56 = vector.shape_cast %55 : vector<1x32x64xbf16> to vector<32x64xbf16>
    %cst_46 = arith.constant dense<0.000000e+00> : vector<64x64xf32>
    %57 = tpu.matmul %54, %56, %cst_46 {dimension_numbers = #tpu.dot_dimension_numbers<[1], [0], [0], [1], [0, 0, 1, 1], [], []>} : vector<64x32xbf16>, vector<32x64xbf16>, vector<64x64xf32> -> vector<64x64xf32>
    %58 = arith.addf %52, %57 : vector<64x64xf32>
    %c0_47 = arith.constant 0 : index
    %c1_48 = arith.constant 1 : index
    %c0_49 = arith.constant 0 : index
    %c0_50 = arith.constant 0 : index
    %59 = vector.load %arg14[%c0_47, %c1_48, %c0_49, %c0_50] : memref<1x10x10x32xbf16, #tpu.memory_space<vmem>>, vector<1x8x8x32xbf16>
    %60 = vector.shape_cast %59 : vector<1x8x8x32xbf16> to vector<64x32xbf16>
    %c3 = arith.constant 3 : index
    %c0_51 = arith.constant 0 : index
    %c0_52 = arith.constant 0 : index
    %61 = vector.load %arg4[%c3, %c0_51, %c0_52] : memref<9x32x64xbf16, #tpu.memory_space<vmem>>, vector<1x32x64xbf16>
    %62 = vector.shape_cast %61 : vector<1x32x64xbf16> to vector<32x64xbf16>
    %cst_53 = arith.constant dense<0.000000e+00> : vector<64x64xf32>
    %63 = tpu.matmul %60, %62, %cst_53 {dimension_numbers = #tpu.dot_dimension_numbers<[1], [0], [0], [1], [0, 0, 1, 1], [], []>} : vector<64x32xbf16>, vector<32x64xbf16>, vector<64x64xf32> -> vector<64x64xf32>
    %64 = arith.addf %58, %63 : vector<64x64xf32>
    %c0_54 = arith.constant 0 : index
    %c1_55 = arith.constant 1 : index
    %c1_56 = arith.constant 1 : index
    %c0_57 = arith.constant 0 : index
    %65 = vector.load %arg14[%c0_54, %c1_55, %c1_56, %c0_57] : memref<1x10x10x32xbf16, #tpu.memory_space<vmem>>, vector<1x8x8x32xbf16>
    %66 = vector.shape_cast %65 : vector<1x8x8x32xbf16> to vector<64x32xbf16>
    %c4 = arith.constant 4 : index
    %c0_58 = arith.constant 0 : index
    %c0_59 = arith.constant 0 : index
    %67 = vector.load %arg4[%c4, %c0_58, %c0_59] : memref<9x32x64xbf16, #tpu.memory_space<vmem>>, vector<1x32x64xbf16>
    %68 = vector.shape_cast %67 : vector<1x32x64xbf16> to vector<32x64xbf16>
    %cst_60 = arith.constant dense<0.000000e+00> : vector<64x64xf32>
    %69 = tpu.matmul %66, %68, %cst_60 {dimension_numbers = #tpu.dot_dimension_numbers<[1], [0], [0], [1], [0, 0, 1, 1], [], []>} : vector<64x32xbf16>, vector<32x64xbf16>, vector<64x64xf32> -> vector<64x64xf32>
    %70 = arith.addf %64, %69 : vector<64x64xf32>
    %c0_61 = arith.constant 0 : index
    %c1_62 = arith.constant 1 : index
    %c2_63 = arith.constant 2 : index
    %c0_64 = arith.constant 0 : index
    %71 = vector.load %arg14[%c0_61, %c1_62, %c2_63, %c0_64] : memref<1x10x10x32xbf16, #tpu.memory_space<vmem>>, vector<1x8x8x32xbf16>
    %72 = vector.shape_cast %71 : vector<1x8x8x32xbf16> to vector<64x32xbf16>
    %c5 = arith.constant 5 : index
    %c0_65 = arith.constant 0 : index
    %c0_66 = arith.constant 0 : index
    %73 = vector.load %arg4[%c5, %c0_65, %c0_66] : memref<9x32x64xbf16, #tpu.memory_space<vmem>>, vector<1x32x64xbf16>
    %74 = vector.shape_cast %73 : vector<1x32x64xbf16> to vector<32x64xbf16>
    %cst_67 = arith.constant dense<0.000000e+00> : vector<64x64xf32>
    %75 = tpu.matmul %72, %74, %cst_67 {dimension_numbers = #tpu.dot_dimension_numbers<[1], [0], [0], [1], [0, 0, 1, 1], [], []>} : vector<64x32xbf16>, vector<32x64xbf16>, vector<64x64xf32> -> vector<64x64xf32>
    %76 = arith.addf %70, %75 : vector<64x64xf32>
    %c0_68 = arith.constant 0 : index
    %c2_69 = arith.constant 2 : index
    %c0_70 = arith.constant 0 : index
    %c0_71 = arith.constant 0 : index
    %77 = vector.load %arg14[%c0_68, %c2_69, %c0_70, %c0_71] : memref<1x10x10x32xbf16, #tpu.memory_space<vmem>>, vector<1x8x8x32xbf16>
    %78 = vector.shape_cast %77 : vector<1x8x8x32xbf16> to vector<64x32xbf16>
    %c6 = arith.constant 6 : index
    %c0_72 = arith.constant 0 : index
    %c0_73 = arith.constant 0 : index
    %79 = vector.load %arg4[%c6, %c0_72, %c0_73] : memref<9x32x64xbf16, #tpu.memory_space<vmem>>, vector<1x32x64xbf16>
    %80 = vector.shape_cast %79 : vector<1x32x64xbf16> to vector<32x64xbf16>
    %cst_74 = arith.constant dense<0.000000e+00> : vector<64x64xf32>
    %81 = tpu.matmul %78, %80, %cst_74 {dimension_numbers = #tpu.dot_dimension_numbers<[1], [0], [0], [1], [0, 0, 1, 1], [], []>} : vector<64x32xbf16>, vector<32x64xbf16>, vector<64x64xf32> -> vector<64x64xf32>
    %82 = arith.addf %76, %81 : vector<64x64xf32>
    %c0_75 = arith.constant 0 : index
    %c2_76 = arith.constant 2 : index
    %c1_77 = arith.constant 1 : index
    %c0_78 = arith.constant 0 : index
    %83 = vector.load %arg14[%c0_75, %c2_76, %c1_77, %c0_78] : memref<1x10x10x32xbf16, #tpu.memory_space<vmem>>, vector<1x8x8x32xbf16>
    %84 = vector.shape_cast %83 : vector<1x8x8x32xbf16> to vector<64x32xbf16>
    %c7 = arith.constant 7 : index
    %c0_79 = arith.constant 0 : index
    %c0_80 = arith.constant 0 : index
    %85 = vector.load %arg4[%c7, %c0_79, %c0_80] : memref<9x32x64xbf16, #tpu.memory_space<vmem>>, vector<1x32x64xbf16>
    %86 = vector.shape_cast %85 : vector<1x32x64xbf16> to vector<32x64xbf16>
    %cst_81 = arith.constant dense<0.000000e+00> : vector<64x64xf32>
    %87 = tpu.matmul %84, %86, %cst_81 {dimension_numbers = #tpu.dot_dimension_numbers<[1], [0], [0], [1], [0, 0, 1, 1], [], []>} : vector<64x32xbf16>, vector<32x64xbf16>, vector<64x64xf32> -> vector<64x64xf32>
    %88 = arith.addf %82, %87 : vector<64x64xf32>
    %c0_82 = arith.constant 0 : index
    %c2_83 = arith.constant 2 : index
    %c2_84 = arith.constant 2 : index
    %c0_85 = arith.constant 0 : index
    %89 = vector.load %arg14[%c0_82, %c2_83, %c2_84, %c0_85] : memref<1x10x10x32xbf16, #tpu.memory_space<vmem>>, vector<1x8x8x32xbf16>
    %90 = vector.shape_cast %89 : vector<1x8x8x32xbf16> to vector<64x32xbf16>
    %c8 = arith.constant 8 : index
    %c0_86 = arith.constant 0 : index
    %c0_87 = arith.constant 0 : index
    %91 = vector.load %arg4[%c8, %c0_86, %c0_87] : memref<9x32x64xbf16, #tpu.memory_space<vmem>>, vector<1x32x64xbf16>
    %92 = vector.shape_cast %91 : vector<1x32x64xbf16> to vector<32x64xbf16>
    %cst_88 = arith.constant dense<0.000000e+00> : vector<64x64xf32>
    %93 = tpu.matmul %90, %92, %cst_88 {dimension_numbers = #tpu.dot_dimension_numbers<[1], [0], [0], [1], [0, 0, 1, 1], [], []>} : vector<64x32xbf16>, vector<32x64xbf16>, vector<64x64xf32> -> vector<64x64xf32>
    %94 = arith.addf %88, %93 : vector<64x64xf32>
    %c0_89 = arith.constant 0 : index
    %c0_90 = arith.constant 0 : index
    %95 = vector.load %arg5[%c0_89, %c0_90] : memref<1x64xf32, #tpu.memory_space<vmem>>, vector<1x64xf32>
    %96 = vector.broadcast %95 : vector<1x64xf32> to vector<64x64xf32>
    %97 = arith.addf %94, %96 : vector<64x64xf32>
    %98 = vector.shape_cast %97 : vector<64x64xf32> to vector<1x64x64xf32>
    %c0_91 = arith.constant 0 : index
    %c0_92 = arith.constant 0 : index
    %99 = vector.load %arg6[%c0_91, %c0_92] : memref<1x64xf32, #tpu.memory_space<vmem>>, vector<1x64xf32>
    %c0_93 = arith.constant 0 : index
    %c0_94 = arith.constant 0 : index
    %100 = vector.load %arg7[%c0_93, %c0_94] : memref<1x64xf32, #tpu.memory_space<vmem>>, vector<1x64xf32>
    %cst_95 = arith.constant dense<0.000000e+00> : vector<1x64xf32>
    %101 = vector.multi_reduction <add>, %98, %cst_95 [1] : vector<1x64x64xf32> to vector<1x64xf32>
    %102 = arith.mulf %98, %98 : vector<1x64x64xf32>
    %cst_96 = arith.constant dense<0.000000e+00> : vector<1x64xf32>
    %103 = vector.multi_reduction <add>, %102, %cst_96 [1] : vector<1x64x64xf32> to vector<1x64xf32>
    %104 = tpu.concatenate %101, %103 in 0 : vector<1x64xf32>, vector<1x64xf32> -> vector<2x64xf32>
    %c0_97 = arith.constant 0 : index
    %c0_98 = arith.constant 0 : index
    %105 = vector.load %arg8[%c0_97, %c0_98] : memref<64x64xf32, #tpu.memory_space<vmem>>, vector<64x64xf32>
    %cst_99 = arith.constant dense<0.000000e+00> : vector<2x64xf32>
    %106 = tpu.matmul %104, %105, %cst_99 {dimension_numbers = #tpu.dot_dimension_numbers<[1], [0], [0], [1], [0, 0, 1, 1], [], []>} : vector<2x64xf32>, vector<64x64xf32>, vector<2x64xf32> -> vector<2x64xf32>
    %107 = vector.extract_strided_slice %106 {offsets = [0, 0], sizes = [1, 64], strides = [1, 1]} : vector<2x64xf32> to vector<1x64xf32>
    %108 = vector.extract_strided_slice %106 {offsets = [1, 0], sizes = [1, 64], strides = [1, 1]} : vector<2x64xf32> to vector<1x64xf32>
    %109 = arith.mulf %107, %107 : vector<1x64xf32>
    %110 = arith.subf %108, %109 : vector<1x64xf32>
    %cst_100 = arith.constant 9.99999974E-6 : f32
    %111 = vector.broadcast %cst_100 : f32 to vector<1x64xf32>
    %112 = arith.addf %110, %111 : vector<1x64xf32>
    %113 = math.rsqrt %112 : vector<1x64xf32>
    %114 = arith.mulf %113, %99 : vector<1x64xf32>
    %115 = arith.mulf %107, %114 : vector<1x64xf32>
    %116 = arith.subf %100, %115 : vector<1x64xf32>
    %117 = vector.shape_cast %114 : vector<1x64xf32> to vector<1x1x64xf32>
    %118 = vector.broadcast %117 : vector<1x1x64xf32> to vector<1x64x64xf32>
    %119 = arith.mulf %98, %118 : vector<1x64x64xf32>
    %120 = vector.shape_cast %116 : vector<1x64xf32> to vector<1x1x64xf32>
    %121 = vector.broadcast %120 : vector<1x1x64xf32> to vector<1x64x64xf32>
    %122 = arith.addf %119, %121 : vector<1x64x64xf32>
    %cst_101 = arith.constant 0.000000e+00 : bf16
    %123 = vector.broadcast %cst_101 : bf16 to vector<1x10x10x64xbf16>
    %c0_102 = arith.constant 0 : index
    %c0_103 = arith.constant 0 : index
    %c0_104 = arith.constant 0 : index
    %c0_105 = arith.constant 0 : index
    %124 = vector.load %arg15[%c0_102, %c0_103, %c0_104, %c0_105] : memref<1x10x10x64xbf16, #tpu.memory_space<vmem>>, vector<1x10x10x64xbf16>
    tpu.vector_store %arg15[%c0_102, %c0_103, %c0_104, %c0_105], %123 {strides = array<i32>} : memref<1x10x10x64xbf16, #tpu.memory_space<vmem>>, vector<1x10x10x64xbf16>,
    %125 = vector.shape_cast %122 : vector<1x64x64xf32> to vector<1x8x8x64xf32>
    %126 = arith.truncf %125 : vector<1x8x8x64xf32> to vector<1x8x8x64xbf16>
    %c0_106 = arith.constant 0 : index
    %c1_107 = arith.constant 1 : index
    %c1_108 = arith.constant 1 : index
    %c0_109 = arith.constant 0 : index
    %127 = vector.load %arg15[%c0_106, %c1_107, %c1_108, %c0_109] : memref<1x10x10x64xbf16, #tpu.memory_space<vmem>>, vector<1x8x8x64xbf16>
    tpu.vector_store %arg15[%c0_106, %c1_107, %c1_108, %c0_109], %126 {strides = array<i32>} : memref<1x10x10x64xbf16, #tpu.memory_space<vmem>>, vector<1x8x8x64xbf16>,
    %cst_110 = arith.constant 0.000000e+00 : f32
    %128 = vector.broadcast %cst_110 : f32 to vector<64x64xf32>
    %c0_111 = arith.constant 0 : index
    %c0_112 = arith.constant 0 : index
    %c0_113 = arith.constant 0 : index
    %c0_114 = arith.constant 0 : index
    %129 = vector.load %arg15[%c0_111, %c0_112, %c0_113, %c0_114] : memref<1x10x10x64xbf16, #tpu.memory_space<vmem>>, vector<1x8x8x64xbf16>
    %130 = vector.shape_cast %129 : vector<1x8x8x64xbf16> to vector<64x64xbf16>
    %c0_115 = arith.constant 0 : index
    %c0_116 = arith.constant 0 : index
    %c0_117 = arith.constant 0 : index
    %131 = vector.load %arg9[%c0_115, %c0_116, %c0_117] : memref<9x64x64xbf16, #tpu.memory_space<vmem>>, vector<1x64x64xbf16>
    %132 = vector.shape_cast %131 : vector<1x64x64xbf16> to vector<64x64xbf16>
    %cst_118 = arith.constant dense<0.000000e+00> : vector<64x64xf32>
    %133 = tpu.matmul %130, %132, %cst_118 {dimension_numbers = #tpu.dot_dimension_numbers<[1], [0], [0], [1], [0, 0, 1, 1], [], []>} : vector<64x64xbf16>, vector<64x64xbf16>, vector<64x64xf32> -> vector<64x64xf32>
    %134 = arith.addf %128, %133 : vector<64x64xf32>
    %c0_119 = arith.constant 0 : index
    %c0_120 = arith.constant 0 : index
    %c1_121 = arith.constant 1 : index
    %c0_122 = arith.constant 0 : index
    %135 = vector.load %arg15[%c0_119, %c0_120, %c1_121, %c0_122] : memref<1x10x10x64xbf16, #tpu.memory_space<vmem>>, vector<1x8x8x64xbf16>
    %136 = vector.shape_cast %135 : vector<1x8x8x64xbf16> to vector<64x64xbf16>
    %c1_123 = arith.constant 1 : index
    %c0_124 = arith.constant 0 : index
    %c0_125 = arith.constant 0 : index
    %137 = vector.load %arg9[%c1_123, %c0_124, %c0_125] : memref<9x64x64xbf16, #tpu.memory_space<vmem>>, vector<1x64x64xbf16>
    %138 = vector.shape_cast %137 : vector<1x64x64xbf16> to vector<64x64xbf16>
    %cst_126 = arith.constant dense<0.000000e+00> : vector<64x64xf32>
    %139 = tpu.matmul %136, %138, %cst_126 {dimension_numbers = #tpu.dot_dimension_numbers<[1], [0], [0], [1], [0, 0, 1, 1], [], []>} : vector<64x64xbf16>, vector<64x64xbf16>, vector<64x64xf32> -> vector<64x64xf32>
    %140 = arith.addf %134, %139 : vector<64x64xf32>
    %c0_127 = arith.constant 0 : index
    %c0_128 = arith.constant 0 : index
    %c2_129 = arith.constant 2 : index
    %c0_130 = arith.constant 0 : index
    %141 = vector.load %arg15[%c0_127, %c0_128, %c2_129, %c0_130] : memref<1x10x10x64xbf16, #tpu.memory_space<vmem>>, vector<1x8x8x64xbf16>
    %142 = vector.shape_cast %141 : vector<1x8x8x64xbf16> to vector<64x64xbf16>
    %c2_131 = arith.constant 2 : index
    %c0_132 = arith.constant 0 : index
    %c0_133 = arith.constant 0 : index
    %143 = vector.load %arg9[%c2_131, %c0_132, %c0_133] : memref<9x64x64xbf16, #tpu.memory_space<vmem>>, vector<1x64x64xbf16>
    %144 = vector.shape_cast %143 : vector<1x64x64xbf16> to vector<64x64xbf16>
    %cst_134 = arith.constant dense<0.000000e+00> : vector<64x64xf32>
    %145 = tpu.matmul %142, %144, %cst_134 {dimension_numbers = #tpu.dot_dimension_numbers<[1], [0], [0], [1], [0, 0, 1, 1], [], []>} : vector<64x64xbf16>, vector<64x64xbf16>, vector<64x64xf32> -> vector<64x64xf32>
    %146 = arith.addf %140, %145 : vector<64x64xf32>
    %c0_135 = arith.constant 0 : index
    %c1_136 = arith.constant 1 : index
    %c0_137 = arith.constant 0 : index
    %c0_138 = arith.constant 0 : index
    %147 = vector.load %arg15[%c0_135, %c1_136, %c0_137, %c0_138] : memref<1x10x10x64xbf16, #tpu.memory_space<vmem>>, vector<1x8x8x64xbf16>
    %148 = vector.shape_cast %147 : vector<1x8x8x64xbf16> to vector<64x64xbf16>
    %c3_139 = arith.constant 3 : index
    %c0_140 = arith.constant 0 : index
    %c0_141 = arith.constant 0 : index
    %149 = vector.load %arg9[%c3_139, %c0_140, %c0_141] : memref<9x64x64xbf16, #tpu.memory_space<vmem>>, vector<1x64x64xbf16>
    %150 = vector.shape_cast %149 : vector<1x64x64xbf16> to vector<64x64xbf16>
    %cst_142 = arith.constant dense<0.000000e+00> : vector<64x64xf32>
    %151 = tpu.matmul %148, %150, %cst_142 {dimension_numbers = #tpu.dot_dimension_numbers<[1], [0], [0], [1], [0, 0, 1, 1], [], []>} : vector<64x64xbf16>, vector<64x64xbf16>, vector<64x64xf32> -> vector<64x64xf32>
    %152 = arith.addf %146, %151 : vector<64x64xf32>
    %c0_143 = arith.constant 0 : index
    %c1_144 = arith.constant 1 : index
    %c1_145 = arith.constant 1 : index
    %c0_146 = arith.constant 0 : index
    %153 = vector.load %arg15[%c0_143, %c1_144, %c1_145, %c0_146] : memref<1x10x10x64xbf16, #tpu.memory_space<vmem>>, vector<1x8x8x64xbf16>
    %154 = vector.shape_cast %153 : vector<1x8x8x64xbf16> to vector<64x64xbf16>
    %c4_147 = arith.constant 4 : index
    %c0_148 = arith.constant 0 : index
    %c0_149 = arith.constant 0 : index
    %155 = vector.load %arg9[%c4_147, %c0_148, %c0_149] : memref<9x64x64xbf16, #tpu.memory_space<vmem>>, vector<1x64x64xbf16>
    %156 = vector.shape_cast %155 : vector<1x64x64xbf16> to vector<64x64xbf16>
    %cst_150 = arith.constant dense<0.000000e+00> : vector<64x64xf32>
    %157 = tpu.matmul %154, %156, %cst_150 {dimension_numbers = #tpu.dot_dimension_numbers<[1], [0], [0], [1], [0, 0, 1, 1], [], []>} : vector<64x64xbf16>, vector<64x64xbf16>, vector<64x64xf32> -> vector<64x64xf32>
    %158 = arith.addf %152, %157 : vector<64x64xf32>
    %c0_151 = arith.constant 0 : index
    %c1_152 = arith.constant 1 : index
    %c2_153 = arith.constant 2 : index
    %c0_154 = arith.constant 0 : index
    %159 = vector.load %arg15[%c0_151, %c1_152, %c2_153, %c0_154] : memref<1x10x10x64xbf16, #tpu.memory_space<vmem>>, vector<1x8x8x64xbf16>
    %160 = vector.shape_cast %159 : vector<1x8x8x64xbf16> to vector<64x64xbf16>
    %c5_155 = arith.constant 5 : index
    %c0_156 = arith.constant 0 : index
    %c0_157 = arith.constant 0 : index
    %161 = vector.load %arg9[%c5_155, %c0_156, %c0_157] : memref<9x64x64xbf16, #tpu.memory_space<vmem>>, vector<1x64x64xbf16>
    %162 = vector.shape_cast %161 : vector<1x64x64xbf16> to vector<64x64xbf16>
    %cst_158 = arith.constant dense<0.000000e+00> : vector<64x64xf32>
    %163 = tpu.matmul %160, %162, %cst_158 {dimension_numbers = #tpu.dot_dimension_numbers<[1], [0], [0], [1], [0, 0, 1, 1], [], []>} : vector<64x64xbf16>, vector<64x64xbf16>, vector<64x64xf32> -> vector<64x64xf32>
    %164 = arith.addf %158, %163 : vector<64x64xf32>
    %c0_159 = arith.constant 0 : index
    %c2_160 = arith.constant 2 : index
    %c0_161 = arith.constant 0 : index
    %c0_162 = arith.constant 0 : index
    %165 = vector.load %arg15[%c0_159, %c2_160, %c0_161, %c0_162] : memref<1x10x10x64xbf16, #tpu.memory_space<vmem>>, vector<1x8x8x64xbf16>
    %166 = vector.shape_cast %165 : vector<1x8x8x64xbf16> to vector<64x64xbf16>
    %c6_163 = arith.constant 6 : index
    %c0_164 = arith.constant 0 : index
    %c0_165 = arith.constant 0 : index
    %167 = vector.load %arg9[%c6_163, %c0_164, %c0_165] : memref<9x64x64xbf16, #tpu.memory_space<vmem>>, vector<1x64x64xbf16>
    %168 = vector.shape_cast %167 : vector<1x64x64xbf16> to vector<64x64xbf16>
    %cst_166 = arith.constant dense<0.000000e+00> : vector<64x64xf32>
    %169 = tpu.matmul %166, %168, %cst_166 {dimension_numbers = #tpu.dot_dimension_numbers<[1], [0], [0], [1], [0, 0, 1, 1], [], []>} : vector<64x64xbf16>, vector<64x64xbf16>, vector<64x64xf32> -> vector<64x64xf32>
    %170 = arith.addf %164, %169 : vector<64x64xf32>
    %c0_167 = arith.constant 0 : index
    %c2_168 = arith.constant 2 : index
    %c1_169 = arith.constant 1 : index
    %c0_170 = arith.constant 0 : index
    %171 = vector.load %arg15[%c0_167, %c2_168, %c1_169, %c0_170] : memref<1x10x10x64xbf16, #tpu.memory_space<vmem>>, vector<1x8x8x64xbf16>
    %172 = vector.shape_cast %171 : vector<1x8x8x64xbf16> to vector<64x64xbf16>
    %c7_171 = arith.constant 7 : index
    %c0_172 = arith.constant 0 : index
    %c0_173 = arith.constant 0 : index
    %173 = vector.load %arg9[%c7_171, %c0_172, %c0_173] : memref<9x64x64xbf16, #tpu.memory_space<vmem>>, vector<1x64x64xbf16>
    %174 = vector.shape_cast %173 : vector<1x64x64xbf16> to vector<64x64xbf16>
    %cst_174 = arith.constant dense<0.000000e+00> : vector<64x64xf32>
    %175 = tpu.matmul %172, %174, %cst_174 {dimension_numbers = #tpu.dot_dimension_numbers<[1], [0], [0], [1], [0, 0, 1, 1], [], []>} : vector<64x64xbf16>, vector<64x64xbf16>, vector<64x64xf32> -> vector<64x64xf32>
    %176 = arith.addf %170, %175 : vector<64x64xf32>
    %c0_175 = arith.constant 0 : index
    %c2_176 = arith.constant 2 : index
    %c2_177 = arith.constant 2 : index
    %c0_178 = arith.constant 0 : index
    %177 = vector.load %arg15[%c0_175, %c2_176, %c2_177, %c0_178] : memref<1x10x10x64xbf16, #tpu.memory_space<vmem>>, vector<1x8x8x64xbf16>
    %178 = vector.shape_cast %177 : vector<1x8x8x64xbf16> to vector<64x64xbf16>
    %c8_179 = arith.constant 8 : index
    %c0_180 = arith.constant 0 : index
    %c0_181 = arith.constant 0 : index
    %179 = vector.load %arg9[%c8_179, %c0_180, %c0_181] : memref<9x64x64xbf16, #tpu.memory_space<vmem>>, vector<1x64x64xbf16>
    %180 = vector.shape_cast %179 : vector<1x64x64xbf16> to vector<64x64xbf16>
    %cst_182 = arith.constant dense<0.000000e+00> : vector<64x64xf32>
    %181 = tpu.matmul %178, %180, %cst_182 {dimension_numbers = #tpu.dot_dimension_numbers<[1], [0], [0], [1], [0, 0, 1, 1], [], []>} : vector<64x64xbf16>, vector<64x64xbf16>, vector<64x64xf32> -> vector<64x64xf32>
    %182 = arith.addf %176, %181 : vector<64x64xf32>
    %c0_183 = arith.constant 0 : index
    %c0_184 = arith.constant 0 : index
    %183 = vector.load %arg10[%c0_183, %c0_184] : memref<1x64xf32, #tpu.memory_space<vmem>>, vector<1x64xf32>
    %184 = vector.broadcast %183 : vector<1x64xf32> to vector<64x64xf32>
    %185 = arith.addf %182, %184 : vector<64x64xf32>
    %186 = vector.shape_cast %185 : vector<64x64xf32> to vector<1x64x64xf32>
    %187 = vector.shape_cast %1 : vector<1x64x32xf32> to vector<64x32xf32>
    %188 = arith.truncf %187 : vector<64x32xf32> to vector<64x32xbf16>
    %c0_185 = arith.constant 0 : index
    %c0_186 = arith.constant 0 : index
    %189 = vector.load %arg11[%c0_185, %c0_186] : memref<32x64xbf16, #tpu.memory_space<vmem>>, vector<32x64xbf16>
    %cst_187 = arith.constant dense<0.000000e+00> : vector<64x64xf32>
    %190 = tpu.matmul %188, %189, %cst_187 {dimension_numbers = #tpu.dot_dimension_numbers<[1], [0], [0], [1], [0, 0, 1, 1], [], []>} : vector<64x32xbf16>, vector<32x64xbf16>, vector<64x64xf32> -> vector<64x64xf32>
    %c0_188 = arith.constant 0 : index
    %c0_189 = arith.constant 0 : index
    %191 = vector.load %arg12[%c0_188, %c0_189] : memref<1x64xf32, #tpu.memory_space<vmem>>, vector<1x64xf32>
    %192 = vector.broadcast %191 : vector<1x64xf32> to vector<64x64xf32>
    %193 = arith.addf %190, %192 : vector<64x64xf32>
    %194 = vector.shape_cast %193 : vector<64x64xf32> to vector<1x64x64xf32>
    %195 = arith.addf %186, %194 : vector<1x64x64xf32>
    %196 = vector.shape_cast %195 : vector<1x64x64xf32> to vector<1x8x8x64xf32>
    %c0_190 = arith.constant 0 : index
    %c0_191 = arith.constant 0 : index
    %c0_192 = arith.constant 0 : index
    %c0_193 = arith.constant 0 : index
    %197 = vector.load %arg13[%c0_190, %c0_191, %c0_192, %c0_193] : memref<1x8x8x64xf32, #tpu.memory_space<vmem>>, vector<1x8x8x64xf32>
    tpu.vector_store %arg13[%c0_190, %c0_191, %c0_192, %c0_193], %196 {strides = array<i32>} : memref<1x8x8x64xf32, #tpu.memory_space<vmem>>, vector<1x8x8x64xf32>,
    return
  }
  func.func @transform_0(%arg0: i32) -> (i32, i32, i32, i32) {
    %c0_i32 = arith.constant 0 : i32
    %c0_i32_0 = arith.constant 0 : i32
    %c0_i32_1 = arith.constant 0 : i32
    %c0_i32_2 = arith.constant 0 : i32
    return %arg0, %c0_i32, %c0_i32_0, %c0_i32_1 : i32, i32, i32, i32
  }
  func.func @transform_1(%arg0: i32) -> (i32, i32) {
    %c0_i32 = arith.constant 0 : i32
    %c0_i32_0 = arith.constant 0 : i32
    %c0_i32_1 = arith.constant 0 : i32
    return %c0_i32, %c0_i32_0 : i32, i32
  }
  func.func @transform_2(%arg0: i32) -> (i32, i32) {
    %c0_i32 = arith.constant 0 : i32
    %c0_i32_0 = arith.constant 0 : i32
    %c0_i32_1 = arith.constant 0 : i32
    return %c0_i32, %c0_i32_0 : i32, i32
  }
  func.func @transform_3(%arg0: i32) -> (i32, i32, i32) {
    %c0_i32 = arith.constant 0 : i32
    %c0_i32_0 = arith.constant 0 : i32
    %c0_i32_1 = arith.constant 0 : i32
    %c0_i32_2 = arith.constant 0 : i32
    return %c0_i32, %c0_i32_0, %c0_i32_1 : i32, i32, i32
  }
  func.func @transform_4(%arg0: i32) -> (i32, i32) {
    %c0_i32 = arith.constant 0 : i32
    %c0_i32_0 = arith.constant 0 : i32
    %c0_i32_1 = arith.constant 0 : i32
    return %c0_i32, %c0_i32_0 : i32, i32
  }
  func.func @transform_5(%arg0: i32) -> (i32, i32) {
    %c0_i32 = arith.constant 0 : i32
    %c0_i32_0 = arith.constant 0 : i32
    %c0_i32_1 = arith.constant 0 : i32
    return %c0_i32, %c0_i32_0 : i32, i32
  }
  func.func @transform_6(%arg0: i32) -> (i32, i32) {
    %c0_i32 = arith.constant 0 : i32
    %c0_i32_0 = arith.constant 0 : i32
    %c0_i32_1 = arith.constant 0 : i32
    return %c0_i32, %c0_i32_0 : i32, i32
  }
  func.func @transform_7(%arg0: i32) -> (i32, i32) {
    %c0_i32 = arith.constant 0 : i32
    %c0_i32_0 = arith.constant 0 : i32
    %c0_i32_1 = arith.constant 0 : i32
    return %c0_i32, %c0_i32_0 : i32, i32
  }
  func.func @transform_8(%arg0: i32) -> (i32, i32, i32) {
    %c0_i32 = arith.constant 0 : i32
    %c0_i32_0 = arith.constant 0 : i32
    %c0_i32_1 = arith.constant 0 : i32
    %c0_i32_2 = arith.constant 0 : i32
    return %c0_i32, %c0_i32_0, %c0_i32_1 : i32, i32, i32
  }
  func.func @transform_9(%arg0: i32) -> (i32, i32) {
    %c0_i32 = arith.constant 0 : i32
    %c0_i32_0 = arith.constant 0 : i32
    %c0_i32_1 = arith.constant 0 : i32
    return %c0_i32, %c0_i32_0 : i32, i32
  }
  func.func @transform_10(%arg0: i32) -> (i32, i32) {
    %c0_i32 = arith.constant 0 : i32
    %c0_i32_0 = arith.constant 0 : i32
    %c0_i32_1 = arith.constant 0 : i32
    return %c0_i32, %c0_i32_0 : i32, i32
  }
  func.func @transform_11(%arg0: i32) -> (i32, i32) {
    %c0_i32 = arith.constant 0 : i32
    %c0_i32_0 = arith.constant 0 : i32
    %c0_i32_1 = arith.constant 0 : i32
    return %c0_i32, %c0_i32_0 : i32, i32
  }
  func.func @transform_12(%arg0: i32) -> (i32, i32, i32, i32) {
    %c0_i32 = arith.constant 0 : i32
    %c0_i32_0 = arith.constant 0 : i32
    %c0_i32_1 = arith.constant 0 : i32
    %c0_i32_2 = arith.constant 0 : i32
    return %arg0, %c0_i32, %c0_i32_0, %c0_i32_1 : i32, i32, i32, i32
  }
}

</mosaic_0001>

<llo_original>
// kernel: tpu_custom_call.1
$region0: #{tpu_custom_call.1}
  #allocation0 [shape = 'u32[]', space=smem, size = 0x4, offset = 0x4, fixed_abs, tag = 'smem constant byte address 0x4 - core index']
  #allocation1 [shape = 'u32[144,128]{1,0:T(1,128)}', space=vmem, size = 0x12000, scoped, tag = 'internal scratch']
  #allocation2 [shape = 'bf16[1,10,10,32]{3,2,1,0:T(8,128)(2,1)}', space=vmem, size = 0xa000, scoped, tag = 'scratch operand']
  #allocation3 [shape = 'bf16[1,10,10,64]{3,2,1,0:T(8,128)(2,1)}', space=vmem, size = 0xa000, scoped, tag = 'scratch operand']
  %s0 = inlined_call_operand.hbm [shape: f32[2,8,8,32], index: 0, kind: input, shape index: {}]
  %s1 = inlined_call_operand.vmem [shape: f32[1,32], index: 1, kind: input, shape index: {}]
  %s2 = inlined_call_operand.vmem [shape: f32[1,32], index: 2, kind: input, shape index: {}]
  %s3 = inlined_call_operand.hbm [shape: bf16[9,32,64], index: 3, kind: input, shape index: {}]
  %s4 = inlined_call_operand.hbm [shape: f32[1,64], index: 4, kind: input, shape index: {}]
  %s5 = inlined_call_operand.hbm [shape: f32[1,64], index: 5, kind: input, shape index: {}]
  %s6 = inlined_call_operand.hbm [shape: f32[1,64], index: 6, kind: input, shape index: {}]
  %s7 = inlined_call_operand.hbm [shape: f32[64,64], index: 7, kind: input, shape index: {}]
  %s8 = inlined_call_operand.hbm [shape: bf16[9,64,64], index: 8, kind: input, shape index: {}]
  %s9 = inlined_call_operand.hbm [shape: f32[1,64], index: 9, kind: input, shape index: {}]
  %s10 = inlined_call_operand.vmem [shape: bf16[32,64], index: 10, kind: input, shape index: {}]
  %s11 = inlined_call_operand.vmem [shape: f32[1,64], index: 11, kind: input, shape index: {}]
  %s12 = inlined_call_operand.hbm [shape: f32[2,8,8,64], index: 12, kind: output, shape index: {}]
  %s13 = sld [smem:[#allocation0]]
  $region113: #{tpu_custom_call.1} parent=0
    _
  %s15 = ssub.s32 1, %s13
  %s16 = scalar_select 0, %s15, %s13
  $region1: #{tpu_custom_call.1} parent=0
    #allocation4 [shape = 'u8[65536]{0}', space=vmem, size = 0x10000, scoped, tag = 'input window, operand 0']
    #allocation5 [shape = 's32[2]{0}', space=sflag, size = 0x8, scoped, tag = 'scoped memory for tpu_custom_call.1']
    #allocation6 [shape = 's32[2]{0}', space=sflag, size = 0x8, scoped, tag = 'scoped memory for tpu_custom_call.1']
    #allocation7 [shape = 'u8[73728]{0}', space=vmem, size = 0x12000, scoped, tag = 'input window, operand 3, single buffered']
    #allocation8 [shape = 's32[1]{0}', space=sflag, size = 0x4, scoped, tag = 'scoped memory for tpu_custom_call.1']
    #allocation9 [shape = 'u8[512]{0}', space=vmem, size = 0x400, scoped, tag = 'input window, operand 4, single buffered']
    #allocation10 [shape = 'u8[512]{0}', space=vmem, size = 0x400, scoped, tag = 'input window, operand 5, single buffered']
    #allocation11 [shape = 's32[1]{0}', space=sflag, size = 0x4, scoped, tag = 'scoped memory for tpu_custom_call.1']
    #allocation12 [shape = 'u8[512]{0}', space=vmem, size = 0x400, scoped, tag = 'input window, operand 6, single buffered']
    #allocation13 [shape = 'u8[32768]{0}', space=vmem, size = 0x8000, scoped, tag = 'input window, operand 7, single buffered']
    #allocation14 [shape = 's32[1]{0}', space=sflag, size = 0x4, scoped, tag = 'scoped memory for tpu_custom_call.1']
    #allocation15 [shape = 'u8[147456]{0}', space=vmem, size = 0x24000, scoped, tag = 'input window, operand 8, single buffered']
    #allocation16 [shape = 'u8[512]{0}', space=vmem, size = 0x400, scoped, tag = 'input window, operand 9, single buffered']
    #allocation17 [shape = 's32[1]{0}', space=sflag, size = 0x4, scoped, tag = 'scoped memory for tpu_custom_call.1']
    #allocation18 [shape = 'u8[65536]{0}', space=vmem, size = 0x10000, scoped, tag = 'output window, operand 0']
    %17 = vsyncpa [#allocation5], 0
    %s18 = scalar_lea.sflag [#allocation5], 1
    %19 = vsyncpa %s18, 0
    %20 = vsyncpa [#allocation8], 0
    %21 = vsyncpa [#allocation11], 0
    %22 = vsyncpa [#allocation14], 0
    %23 = vsyncpa [#allocation17], 0
    %24 = vsyncpa [#allocation6], 0
    %s25 = scalar_lea.sflag [#allocation6], 1
    %26 = vsyncpa %s25, 0
    loop: start=0, step=1, limit=4
    $region2: #{tpu_custom_call.1} parent=1 // loop_pre_header
      _
    $region3: #{tpu_custom_call.1} parent=1 // loop_header
      %s28 = sphi 0, %s32
      %p29 = scmp.ge.s32.totalorder %s28, 4
      %s38 = sphi 0, %s40
      %s41 = sphi 0, %s38
      %s42 = sphi 0, %s41
      %s58 = sphi 0, %s42
      %s62 = sphi 0, %s62
      %s64 = sphi 0, %s62
      %s65 = sphi 0, %s64
      %s79 = sphi 0, %s65
      %s83 = sphi 0, %s83
      %s85 = sphi 0, %s83
      %s86 = sphi 0, %s85
      %s100 = sphi 0, %s86
      %s104 = sphi 0, %s104
      %s106 = sphi 0, %s104
      %s107 = sphi 0, %s106
      %s121 = sphi 0, %s107
      %s125 = sphi 0, %s125
      %s127 = sphi 0, %s125
      %s128 = sphi 0, %s127
      %s142 = sphi 0, %s128
      %s146 = sphi 0, %s146
      %s148 = sphi 0, %s146
      %s149 = sphi 0, %s148
      %s163 = sphi 0, %s149
      %s167 = sphi 0, %s167
      %s169 = sphi 0, %s167
      %s170 = sphi 0, %s169
      %s184 = sphi 0, %s170
      %s188 = sphi 0, %s188
      %s190 = sphi 0, %s188
      %s191 = sphi 0, %s190
      %s205 = sphi 0, %s191
      %s209 = sphi 0, %s209
      %s211 = sphi 0, %s209
      %s212 = sphi 0, %s211
      %s226 = sphi 0, %s212
      %s230 = sphi 0, %s230
      %s232 = sphi 0, %s230
      %s233 = sphi 0, %s232
      %s247 = sphi 0, %s233
      %s251 = sphi 0, %s251
      %s253 = sphi 0, %s251
      %s254 = sphi 0, %s253
      %s268 = sphi 0, %s254
      %s272 = sphi 0, %s272
      %s274 = sphi 0, %s272
      %s275 = sphi 0, %s274
      %s289 = sphi 0, %s275
      %s295 = sphi 0, %s297
      %s298 = sphi 0, %s295
      %s299 = sphi 0, %s298
      %s315 = sphi 0, %s299
    $region4: #{tpu_custom_call.1} parent=1 // loop_header_branch
      %31 = sbr.rel (%p29) target = $region8
    $region5: #{tpu_custom_call.1} parent=1 // loop_body
      %s33 = ssub.s32 %s28, 1
      %s34 = ssub.s32 %s28, 2
      %s35 = sadd.s32 %s28, 1
      %s36 = ssub.s32 %s28, %s35
      %p37 = scmp.eq.s32.totalorder %s36, 0
      %s39 = sadd.s32 %s38, 1
      %s40 = scalar_select %p37, %s38, %s39
      %p43 = pneg %p37
      %p44 = scmp.eq.s32.totalorder %s28, 1
      %p45 = por %p43, %p44
      %p46 = scmp.ne.s32.totalorder %s38, %s41
      %p47 = scmp.eq.s32.totalorder %s28, 0
      %p48 = por %p46, %p47
      %p49 = scmp.ne.s32.totalorder %s38, %s41
      %p50 = scmp.eq.s32.totalorder %s33, 1
      %p51 = por %p49, %p50
      %p52 = scmp.ne.s32.totalorder %s41, %s42
      %p53 = scmp.eq.s32.totalorder %s33, 0
      %p54 = por %p52, %p53
      %p55 = scmp.ne.s32.totalorder %s41, %s42
      %p56 = scmp.eq.s32.totalorder %s34, 1
      %p57 = por %p55, %p56
      %p59 = scmp.ne.s32.totalorder %s42, %s58
      %p60 = scmp.eq.s32.totalorder %s34, 0
      %p61 = por %p59, %p60
      %s63 = sadd.s32 %s62, 1
      %p66 = scmp.eq.s32.totalorder %s28, 1
      %p67 = scmp.ne.s32.totalorder %s62, %s64
      %p68 = scmp.eq.s32.totalorder %s28, 0
      %p69 = por %p67, %p68
      %p70 = scmp.ne.s32.totalorder %s62, %s64
      %p71 = scmp.eq.s32.totalorder %s33, 1
      %p72 = por %p70, %p71
      %p73 = scmp.ne.s32.totalorder %s64, %s65
      %p74 = scmp.eq.s32.totalorder %s33, 0
      %p75 = por %p73, %p74
      %p76 = scmp.ne.s32.totalorder %s64, %s65
      %p77 = scmp.eq.s32.totalorder %s34, 1
      %p78 = por %p76, %p77
      %p80 = scmp.ne.s32.totalorder %s65, %s79
      %p81 = scmp.eq.s32.totalorder %s34, 0
      %p82 = por %p80, %p81
      %s84 = sadd.s32 %s83, 1
      %p87 = scmp.eq.s32.totalorder %s28, 1
      %p88 = scmp.ne.s32.totalorder %s83, %s85
      %p89 = scmp.eq.s32.totalorder %s28, 0
      %p90 = por %p88, %p89
      %p91 = scmp.ne.s32.totalorder %s83, %s85
      %p92 = scmp.eq.s32.totalorder %s33, 1
      %p93 = por %p91, %p92
      %p94 = scmp.ne.s32.totalorder %s85, %s86
      %p95 = scmp.eq.s32.totalorder %s33, 0
      %p96 = por %p94, %p95
      %p97 = scmp.ne.s32.totalorder %s85, %s86
      %p98 = scmp.eq.s32.totalorder %s34, 1
      %p99 = por %p97, %p98
      %p101 = scmp.ne.s32.totalorder %s86, %s100
      %p102 = scmp.eq.s32.totalorder %s34, 0
      %p103 = por %p101, %p102
      %s105 = sadd.s32 %s104, 1
      %p108 = scmp.eq.s32.totalorder %s28, 1
      %p109 = scmp.ne.s32.totalorder %s104, %s106
      %p110 = scmp.eq.s32.totalorder %s28, 0
      %p111 = por %p109, %p110
      %p112 = scmp.ne.s32.totalorder %s104, %s106
      %p113 = scmp.eq.s32.totalorder %s33, 1
      %p114 = por %p112, %p113
      %p115 = scmp.ne.s32.totalorder %s106, %s107
      %p116 = scmp.eq.s32.totalorder %s33, 0
      %p117 = por %p115, %p116
      %p118 = scmp.ne.s32.totalorder %s106, %s107
      %p119 = scmp.eq.s32.totalorder %s34, 1
      %p120 = por %p118, %p119
      %p122 = scmp.ne.s32.totalorder %s107, %s121
      %p123 = scmp.eq.s32.totalorder %s34, 0
      %p124 = por %p122, %p123
      %s126 = sadd.s32 %s125, 1
      %p129 = scmp.eq.s32.totalorder %s28, 1
      %p130 = scmp.ne.s32.totalorder %s125, %s127
      %p131 = scmp.eq.s32.totalorder %s28, 0
      %p132 = por %p130, %p131
      %p133 = scmp.ne.s32.totalorder %s125, %s127
      %p134 = scmp.eq.s32.totalorder %s33, 1
      %p135 = por %p133, %p134
      %p136 = scmp.ne.s32.totalorder %s127, %s128
      %p137 = scmp.eq.s32.totalorder %s33, 0
      %p138 = por %p136, %p137
      %p139 = scmp.ne.s32.totalorder %s127, %s128
      %p140 = scmp.eq.s32.totalorder %s34, 1
      %p141 = por %p139, %p140
      %p143 = scmp.ne.s32.totalorder %s128, %s142
      %p144 = scmp.eq.s32.totalorder %s34, 0
      %p145 = por %p143, %p144
      %s147 = sadd.s32 %s146, 1
      %p150 = scmp.eq.s32.totalorder %s28, 1
      %p151 = scmp.ne.s32.totalorder %s146, %s148
      %p152 = scmp.eq.s32.totalorder %s28, 0
      %p153 = por %p151, %p152
      %p154 = scmp.ne.s32.totalorder %s146, %s148
      %p155 = scmp.eq.s32.totalorder %s33, 1
      %p156 = por %p154, %p155
      %p157 = scmp.ne.s32.totalorder %s148, %s149
      %p158 = scmp.eq.s32.totalorder %s33, 0
      %p159 = por %p157, %p158
      %p160 = scmp.ne.s32.totalorder %s148, %s149
      %p161 = scmp.eq.s32.totalorder %s34, 1
      %p162 = por %p160, %p161
      %p164 = scmp.ne.s32.totalorder %s149, %s163
      %p165 = scmp.eq.s32.totalorder %s34, 0
      %p166 = por %p164, %p165
      %s168 = sadd.s32 %s167, 1
      %p171 = scmp.eq.s32.totalorder %s28, 1
      %p172 = scmp.ne.s32.totalorder %s167, %s169
      %p173 = scmp.eq.s32.totalorder %s28, 0
      %p174 = por %p172, %p173
      %p175 = scmp.ne.s32.totalorder %s167, %s169
      %p176 = scmp.eq.s32.totalorder %s33, 1
      %p177 = por %p175, %p176
      %p178 = scmp.ne.s32.totalorder %s169, %s170
      %p179 = scmp.eq.s32.totalorder %s33, 0
      %p180 = por %p178, %p179
      %p181 = scmp.ne.s32.totalorder %s169, %s170
      %p182 = scmp.eq.s32.totalorder %s34, 1
      %p183 = por %p181, %p182
      %p185 = scmp.ne.s32.totalorder %s170, %s184
      %p186 = scmp.eq.s32.totalorder %s34, 0
      %p187 = por %p185, %p186
      %s189 = sadd.s32 %s188, 1
      %p192 = scmp.eq.s32.totalorder %s28, 1
      %p193 = scmp.ne.s32.totalorder %s188, %s190
      %p194 = scmp.eq.s32.totalorder %s28, 0
      %p195 = por %p193, %p194
      %p196 = scmp.ne.s32.totalorder %s188, %s190
      %p197 = scmp.eq.s32.totalorder %s33, 1
      %p198 = por %p196, %p197
      %p199 = scmp.ne.s32.totalorder %s190, %s191
      %p200 = scmp.eq.s32.totalorder %s33, 0
      %p201 = por %p199, %p200
      %p202 = scmp.ne.s32.totalorder %s190, %s191
      %p203 = scmp.eq.s32.totalorder %s34, 1
      %p204 = por %p202, %p203
      %p206 = scmp.ne.s32.totalorder %s191, %s205
      %p207 = scmp.eq.s32.totalorder %s34, 0
      %p208 = por %p206, %p207
      %s210 = sadd.s32 %s209, 1
      %p213 = scmp.eq.s32.totalorder %s28, 1
      %p214 = scmp.ne.s32.totalorder %s209, %s211
      %p215 = scmp.eq.s32.totalorder %s28, 0
      %p216 = por %p214, %p215
      %p217 = scmp.ne.s32.totalorder %s209, %s211
      %p218 = scmp.eq.s32.totalorder %s33, 1
      %p219 = por %p217, %p218
      %p220 = scmp.ne.s32.totalorder %s211, %s212
      %p221 = scmp.eq.s32.totalorder %s33, 0
      %p222 = por %p220, %p221
      %p223 = scmp.ne.s32.totalorder %s211, %s212
      %p224 = scmp.eq.s32.totalorder %s34, 1
      %p225 = por %p223, %p224
      %p227 = scmp.ne.s32.totalorder %s212, %s226
      %p228 = scmp.eq.s32.totalorder %s34, 0
      %p229 = por %p227, %p228
      %s231 = sadd.s32 %s230, 1
      %p234 = scmp.eq.s32.totalorder %s28, 1
      %p235 = scmp.ne.s32.totalorder %s230, %s232
      %p236 = scmp.eq.s32.totalorder %s28, 0
      %p237 = por %p235, %p236
      %p238 = scmp.ne.s32.totalorder %s230, %s232
      %p239 = scmp.eq.s32.totalorder %s33, 1
      %p240 = por %p238, %p239
      %p241 = scmp.ne.s32.totalorder %s232, %s233
      %p242 = scmp.eq.s32.totalorder %s33, 0
      %p243 = por %p241, %p242
      %p244 = scmp.ne.s32.totalorder %s232, %s233
      %p245 = scmp.eq.s32.totalorder %s34, 1
      %p246 = por %p244, %p245
      %p248 = scmp.ne.s32.totalorder %s233, %s247
      %p249 = scmp.eq.s32.totalorder %s34, 0
      %p250 = por %p248, %p249
      %s252 = sadd.s32 %s251, 1
      %p255 = scmp.eq.s32.totalorder %s28, 1
      %p256 = scmp.ne.s32.totalorder %s251, %s253
      %p257 = scmp.eq.s32.totalorder %s28, 0
      %p258 = por %p256, %p257
      %p259 = scmp.ne.s32.totalorder %s251, %s253
      %p260 = scmp.eq.s32.totalorder %s33, 1
      %p261 = por %p259, %p260
      %p262 = scmp.ne.s32.totalorder %s253, %s254
      %p263 = scmp.eq.s32.totalorder %s33, 0
      %p264 = por %p262, %p263
      %p265 = scmp.ne.s32.totalorder %s253, %s254
      %p266 = scmp.eq.s32.totalorder %s34, 1
      %p267 = por %p265, %p266
      %p269 = scmp.ne.s32.totalorder %s254, %s268
      %p270 = scmp.eq.s32.totalorder %s34, 0
      %p271 = por %p269, %p270
      %s273 = sadd.s32 %s272, 1
      %p276 = scmp.eq.s32.totalorder %s28, 1
      %p277 = scmp.ne.s32.totalorder %s272, %s274
      %p278 = scmp.eq.s32.totalorder %s28, 0
      %p279 = por %p277, %p278
      %p280 = scmp.ne.s32.totalorder %s272, %s274
      %p281 = scmp.eq.s32.totalorder %s33, 1
      %p282 = por %p280, %p281
      %p283 = scmp.ne.s32.totalorder %s274, %s275
      %p284 = scmp.eq.s32.totalorder %s33, 0
      %p285 = por %p283, %p284
      %p286 = scmp.ne.s32.totalorder %s274, %s275
      %p287 = scmp.eq.s32.totalorder %s34, 1
      %p288 = por %p286, %p287
      %p290 = scmp.ne.s32.totalorder %s275, %s289
      %p291 = scmp.eq.s32.totalorder %s34, 0
      %p292 = por %p290, %p291
      %s293 = ssub.s32 %s28, %s35
      %p294 = scmp.eq.s32.totalorder %s293, 0
      %s296 = sadd.s32 %s295, 1
      %s297 = scalar_select %p294, %s295, %s296
      %p300 = pneg %p294
      %p301 = scmp.eq.s32.totalorder %s28, 1
      %p302 = por %p300, %p301
      %p303 = scmp.ne.s32.totalorder %s295, %s298
      %p304 = scmp.eq.s32.totalorder %s28, 0
      %p305 = por %p303, %p304
      %p306 = scmp.ne.s32.totalorder %s295, %s298
      %p307 = scmp.eq.s32.totalorder %s33, 1
      %p308 = por %p306, %p307
      %p309 = scmp.ne.s32.totalorder %s298, %s299
      %p310 = scmp.eq.s32.totalorder %s33, 0
      %p311 = por %p309, %p310
      %p312 = scmp.ne.s32.totalorder %s298, %s299
      %p313 = scmp.eq.s32.totalorder %s34, 1
      %p314 = por %p312, %p313
      %p316 = scmp.ne.s32.totalorder %s299, %s315
      %p317 = scmp.eq.s32.totalorder %s34, 0
      %p318 = por %p316, %p317
      %p319 = scmp.le.s32.totalorder 1, %s28
      %p320 = scmp.lt.s32.totalorder %s28, 3
      %p321 = pnand %p319, %p320
      %p322 = pneg %p321
      // Predicated region
      $region9: #{tpu_custom_call.1} parent=5 // pred_check
        _
      $region10: #{tpu_custom_call.1} parent=5 // pred_check_branch
        %324 = sbr.rel (%p321) target = $region12
      $region11: #{tpu_custom_call.1} parent=5 // pred_region
        %s325 = ssub.s32 %s28, 1
        // Predicated region
        $region13: #{tpu_custom_call.1} parent=11 // pred_check
          %p326 = pneg %p75
        $region14: #{tpu_custom_call.1} parent=11 // pred_check_branch
          %328 = sbr.rel (%p326) target = $region16
        $region15: #{tpu_custom_call.1} parent=11 // pred_region
          _
        $region16: #{tpu_custom_call.1} parent=11 // pred_fallthru
          _
        // Predicated region
        $region17: #{tpu_custom_call.1} parent=11 // pred_check
          %p329 = pneg %p96
        $region18: #{tpu_custom_call.1} parent=11 // pred_check_branch
          %331 = sbr.rel (%p329) target = $region20
        $region19: #{tpu_custom_call.1} parent=11 // pred_region
          _
        $region20: #{tpu_custom_call.1} parent=11 // pred_fallthru
          _
        // Predicated region
        $region21: #{tpu_custom_call.1} parent=11 // pred_check
          %p332 = pneg %p117
        $region22: #{tpu_custom_call.1} parent=11 // pred_check_branch
          %334 = sbr.rel (%p332) target = $region24
        $region23: #{tpu_custom_call.1} parent=11 // pred_region
          %s336 = ssub.s32 2304, 2304
          %337 = vsyncadd [#allocation8], %s336
          %s338 = sshll.u32 [#allocation7], 4
          %s339 = int_to_ptr.vmem [resolvable:$true] %s338
          %344 = dma.hbm_to_vmem [thread:$0]  %s3, 2304, %s339, [#allocation8], 64, 64, 4
        $region24: #{tpu_custom_call.1} parent=11 // pred_fallthru
          _
        // Predicated region
        $region25: #{tpu_custom_call.1} parent=11 // pred_check
          %p345 = pneg %p138
        $region26: #{tpu_custom_call.1} parent=11 // pred_check_branch
          %347 = sbr.rel (%p345) target = $region28
        $region27: #{tpu_custom_call.1} parent=11 // pred_region
          %s349 = ssub.s32 16, 16
          %350 = vsyncadd [#allocation8], %s349
          %s352 = sshll.u32 [#allocation9], 4
          %s353 = int_to_ptr.vmem [resolvable:$true] %s352
          %355 = dma.hbm_to_vmem [thread:$0]  %s4, 16, %s353, [#allocation8]
        $region28: #{tpu_custom_call.1} parent=11 // pred_fallthru
          _
        // Predicated region
        $region29: #{tpu_custom_call.1} parent=11 // pred_check
          %p356 = pneg %p159
        $region30: #{tpu_custom_call.1} parent=11 // pred_check_branch
          %358 = sbr.rel (%p356) target = $region32
        $region31: #{tpu_custom_call.1} parent=11 // pred_region
          %s360 = ssub.s32 16, 16
          %361 = vsyncadd [#allocation11], %s360
          %s363 = sshll.u32 [#allocation10], 4
          %s364 = int_to_ptr.vmem [resolvable:$true] %s363
          %366 = dma.hbm_to_vmem [thread:$0]  %s5, 16, %s364, [#allocation11]
        $region32: #{tpu_custom_call.1} parent=11 // pred_fallthru
          _
        // Predicated region
        $region33: #{tpu_custom_call.1} parent=11 // pred_check
          %p367 = pneg %p180
        $region34: #{tpu_custom_call.1} parent=11 // pred_check_branch
          %369 = sbr.rel (%p367) target = $region36
        $region35: #{tpu_custom_call.1} parent=11 // pred_region
          %s371 = ssub.s32 16, 16
          %372 = vsyncadd [#allocation11], %s371
          %s374 = sshll.u32 [#allocation12], 4
          %s375 = int_to_ptr.vmem [resolvable:$true] %s374
          %377 = dma.hbm_to_vmem [thread:$0]  %s6, 16, %s375, [#allocation11]
        $region36: #{tpu_custom_call.1} parent=11 // pred_fallthru
          _
        // Predicated region
        $region37: #{tpu_custom_call.1} parent=11 // pred_check
          %p378 = pneg %p201
        $region38: #{tpu_custom_call.1} parent=11 // pred_check_branch
          %380 = sbr.rel (%p378) target = $region40
        $region39: #{tpu_custom_call.1} parent=11 // pred_region
          %s382 = ssub.s32 1024, 1024
          %383 = vsyncadd [#allocation14], %s382
          %s384 = sshll.u32 [#allocation13], 4
          %s385 = int_to_ptr.vmem [resolvable:$true] %s384
          %390 = dma.hbm_to_vmem [thread:$0]  %s7, 1024, %s385, [#allocation14], 128, 128, 8
        $region40: #{tpu_custom_call.1} parent=11 // pred_fallthru
          _
        // Predicated region
        $region41: #{tpu_custom_call.1} parent=11 // pred_check
          %p391 = pneg %p222
        $region42: #{tpu_custom_call.1} parent=11 // pred_check_branch
          %393 = sbr.rel (%p391) target = $region44
        $region43: #{tpu_custom_call.1} parent=11 // pred_region
          %s395 = ssub.s32 4608, 4608
          %396 = vsyncadd [#allocation14], %s395
          %s397 = sshll.u32 [#allocation15], 4
          %s398 = int_to_ptr.vmem [resolvable:$true] %s397
          %403 = dma.hbm_to_vmem [thread:$0]  %s8, 4608, %s398, [#allocation14], 64, 64, 4
        $region44: #{tpu_custom_call.1} parent=11 // pred_fallthru
          _
        // Predicated region
        $region45: #{tpu_custom_call.1} parent=11 // pred_check
          %p404 = pneg %p243
        $region46: #{tpu_custom_call.1} parent=11 // pred_check_branch
          %406 = sbr.rel (%p404) target = $region48
        $region47: #{tpu_custom_call.1} parent=11 // pred_region
          %s408 = ssub.s32 16, 16
          %409 = vsyncadd [#allocation17], %s408
          %s411 = sshll.u32 [#allocation16], 4
          %s412 = int_to_ptr.vmem [resolvable:$true] %s411
          %414 = dma.hbm_to_vmem [thread:$0]  %s9, 16, %s412, [#allocation17]
        $region48: #{tpu_custom_call.1} parent=11 // pred_fallthru
          _
        // Predicated region
        $region49: #{tpu_custom_call.1} parent=11 // pred_check
          %p415 = pneg %p264
        $region50: #{tpu_custom_call.1} parent=11 // pred_check_branch
          %417 = sbr.rel (%p415) target = $region52
        $region51: #{tpu_custom_call.1} parent=11 // pred_region
          _
        $region52: #{tpu_custom_call.1} parent=11 // pred_fallthru
          _
        // Predicated region
        $region53: #{tpu_custom_call.1} parent=11 // pred_check
          %p418 = pneg %p285
        $region54: #{tpu_custom_call.1} parent=11 // pred_check_branch
          %420 = sbr.rel (%p418) target = $region56
        $region55: #{tpu_custom_call.1} parent=11 // pred_region
          _
        $region56: #{tpu_custom_call.1} parent=11 // pred_fallthru
          _
      $region12: #{tpu_custom_call.1} parent=5 // pred_fallthru
        _
      %p421 = scmp.lt.s32.totalorder %s28, 2
      // Predicated region
      $region57: #{tpu_custom_call.1} parent=5 // pred_check
        %p422 = pneg %p421
      $region58: #{tpu_custom_call.1} parent=5 // pred_check_branch
        %424 = sbr.rel (%p422) target = $region60
      $region59: #{tpu_custom_call.1} parent=5 // pred_region
        // Predicated region
        $region61: #{tpu_custom_call.1} parent=59 // pred_check
          %p425 = pneg %p48
        $region62: #{tpu_custom_call.1} parent=59 // pred_check_branch
          %427 = sbr.rel (%p425) target = $region64
        $region63: #{tpu_custom_call.1} parent=59 // pred_region
          %s428 = sand.u32 %s38, 1
          %s429 = scalar_lea.sflag [#allocation5], %s428
          %s430 = sand.u32 %s38, 1
          %s431 = smul.addr %s430, 64
          %s432 = scalar_lea.vmem [#allocation4], %s431
          %s434 = ssub.s32 1024, 1024
          %435 = vsyncadd %s429, %s434
          %s436 = smul.addr %s28, 8
          %s437 = smul.addr %s436, 128
          %s438 = scalar_lea.hbm %s0, %s437
          %s439 = sshll.u32 %s432, 4
          %s440 = int_to_ptr.vmem [resolvable:$true] %s439
          %445 = dma.hbm_to_vmem [thread:$0]  %s438, 1024, %s440, %s429, 128, 128, 8
        $region64: #{tpu_custom_call.1} parent=59 // pred_fallthru
          _
      $region60: #{tpu_custom_call.1} parent=5 // pred_fallthru
        _
      %p446 = scmp.le.s32.totalorder 1, %s28
      %p447 = scmp.lt.s32.totalorder %s28, 3
      %p448 = pnand %p446, %p447
      %p449 = pneg %p448
      // Predicated region
      $region65: #{tpu_custom_call.1} parent=5 // pred_check
        _
      $region66: #{tpu_custom_call.1} parent=5 // pred_check_branch
        %451 = sbr.rel (%p448) target = $region68
      $region67: #{tpu_custom_call.1} parent=5 // pred_region
        %s452 = ssub.s32 %s28, 1
        %s453 = sand.u32 %s41, 1
        %s454 = scalar_lea.sflag [#allocation5], %s453
        %s455 = sand.u32 %s41, 1
        %s456 = smul.addr %s455, 64
        %s457 = scalar_lea.vmem [#allocation4], %s456
        // Predicated region
        $region69: #{tpu_custom_call.1} parent=67 // pred_check
          %p458 = pneg %p54
        $region70: #{tpu_custom_call.1} parent=67 // pred_check_branch
          %460 = sbr.rel (%p458) target = $region72
        $region71: #{tpu_custom_call.1} parent=67 // pred_region
          %461 = dma.done %s454, 1024
        $region72: #{tpu_custom_call.1} parent=67 // pred_fallthru
          _
        // Predicated region
        $region73: #{tpu_custom_call.1} parent=67 // pred_check
          %p462 = pneg %p117
        $region74: #{tpu_custom_call.1} parent=67 // pred_check_branch
          %464 = sbr.rel (%p462) target = $region76
        $region75: #{tpu_custom_call.1} parent=67 // pred_region
          %465 = dma.done [#allocation8], 2304
        $region76: #{tpu_custom_call.1} parent=67 // pred_fallthru
          _
        // Predicated region
        $region77: #{tpu_custom_call.1} parent=67 // pred_check
          %p466 = pneg %p138
        $region78: #{tpu_custom_call.1} parent=67 // pred_check_branch
          %468 = sbr.rel (%p466) target = $region80
        $region79: #{tpu_custom_call.1} parent=67 // pred_region
          %469 = dma.done [#allocation8], 16
        $region80: #{tpu_custom_call.1} parent=67 // pred_fallthru
          _
        // Predicated region
        $region81: #{tpu_custom_call.1} parent=67 // pred_check
          %p470 = pneg %p159
        $region82: #{tpu_custom_call.1} parent=67 // pred_check_branch
          %472 = sbr.rel (%p470) target = $region84
        $region83: #{tpu_custom_call.1} parent=67 // pred_region
          %473 = dma.done [#allocation11], 16
        $region84: #{tpu_custom_call.1} parent=67 // pred_fallthru
          _
        // Predicated region
        $region85: #{tpu_custom_call.1} parent=67 // pred_check
          %p474 = pneg %p180
        $region86: #{tpu_custom_call.1} parent=67 // pred_check_branch
          %476 = sbr.rel (%p474) target = $region88
        $region87: #{tpu_custom_call.1} parent=67 // pred_region
          %477 = dma.done [#allocation11], 16
        $region88: #{tpu_custom_call.1} parent=67 // pred_fallthru
          _
        // Predicated region
        $region89: #{tpu_custom_call.1} parent=67 // pred_check
          %p478 = pneg %p201
        $region90: #{tpu_custom_call.1} parent=67 // pred_check_branch
          %480 = sbr.rel (%p478) target = $region92
        $region91: #{tpu_custom_call.1} parent=67 // pred_region
          %481 = dma.done [#allocation14], 1024
        $region92: #{tpu_custom_call.1} parent=67 // pred_fallthru
          _
        // Predicated region
        $region93: #{tpu_custom_call.1} parent=67 // pred_check
          %p482 = pneg %p222
        $region94: #{tpu_custom_call.1} parent=67 // pred_check_branch
          %484 = sbr.rel (%p482) target = $region96
        $region95: #{tpu_custom_call.1} parent=67 // pred_region
          %485 = dma.done [#allocation14], 4608
        $region96: #{tpu_custom_call.1} parent=67 // pred_fallthru
          _
        // Predicated region
        $region97: #{tpu_custom_call.1} parent=67 // pred_check
          %p486 = pneg %p243
        $region98: #{tpu_custom_call.1} parent=67 // pred_check_branch
          %488 = sbr.rel (%p486) target = $region100
        $region99: #{tpu_custom_call.1} parent=67 // pred_region
          %489 = dma.done [#allocation17], 16
        $region100: #{tpu_custom_call.1} parent=67 // pred_fallthru
          _
        %s490 = sand.u32 %s41, 1
        %s491 = scalar_lea.sflag [#allocation5], %s490
        %s492 = sand.u32 %s41, 1
        %s493 = smul.addr %s492, 64
        %s494 = scalar_lea.vmem [#allocation4], %s493
        %p495 = pneg %p54
        %p496 = pneg %p51
        %p497 = pneg %p75
        %p498 = pneg %p72
        %p499 = pneg %p96
        %p500 = pneg %p93
        %p501 = pneg %p117
        %p502 = pneg %p114
        %p503 = pneg %p138
        %p504 = pneg %p135
        %p505 = pneg %p159
        %p506 = pneg %p156
        %p507 = pneg %p180
        %p508 = pneg %p177
        %p509 = pneg %p201
        %p510 = pneg %p198
        %p511 = pneg %p222
        %p512 = pneg %p219
        %p513 = pneg %p243
        %p514 = pneg %p240
        %p515 = pneg %p264
        %p516 = pneg %p261
        %p517 = pneg %p285
        %p518 = pneg %p282
        %p519 = pneg %p311
        %p520 = pneg %p308
        %s521 = sand.u32 %s298, 1
        %s522 = scalar_lea.sflag [#allocation6], %s521
        %s523 = sand.u32 %s298, 1
        %s524 = smul.addr %s523, 64
        %s525 = scalar_lea.vmem [#allocation18], %s524
        %v527 = vld [vmem:[%s457] sm:$0xff]
        %v528 = vld [vmem:[%s457 + $0x8] sm:$0xff]
        %v529 = vld [vmem:[%s457 + $0x10] sm:$0xff]
        %v530 = vld [vmem:[%s457 + $0x18] sm:$0xff]
        %v531 = vld [vmem:[%s457 + $0x20] sm:$0xff]
        %v532 = vld [vmem:[%s457 + $0x28] sm:$0xff]
        %v533 = vld [vmem:[%s457 + $0x30] sm:$0xff]
        %v534 = vld [vmem:[%s457 + $0x38] sm:$0xff]
        %v535 = vld [vmem:[%s1] sm:$0x1]
        %v536 = vld [vmem:[%s2] sm:$0x1]
        %vm537 = vcmask 261120
        %v538 = vsel %vm537, %v527, 0.0
        %v539 = vsel %vm537, %v528, 0.0
        %v540 = vadd.f32 %v538, %v539
        %v541 = vsel %vm537, %v529, 0.0
        %v542 = vadd.f32 %v540, %v541
        %v543 = vsel %vm537, %v530, 0.0
        %v544 = vadd.f32 %v542, %v543
        %v545 = vsel %vm537, %v531, 0.0
        %v546 = vadd.f32 %v544, %v545
        %v547 = vsel %vm537, %v532, 0.0
        %v548 = vadd.f32 %v546, %v547
        %v549 = vsel %vm537, %v533, 0.0
        %v550 = vadd.f32 %v548, %v549
        %v551 = vsel %vm537, %v534, 0.0
        %v552 = vadd.f32 %v550, %v551
        %v553 = vrot.slane %v552, 4
        %v554 = vadd.f32 %v552, %v553
        %v555 = vrot.slane %v554, 2
        %v556 = vadd.f32 %v554, %v555
        %v557 = vrot.slane %v556, 1
        %v558 = vadd.f32 %v556, %v557
        %v559 = vmul.f32 %v527, %v527
        %v560 = vmul.f32 %v528, %v528
        %v561 = vmul.f32 %v529, %v529
        %v562 = vmul.f32 %v530, %v530
        %v563 = vmul.f32 %v531, %v531
        %v564 = vmul.f32 %v532, %v532
        %v565 = vmul.f32 %v533, %v533
        %v566 = vmul.f32 %v534, %v534
        %v567 = vsel %vm537, %v559, 0.0
        %v568 = vsel %vm537, %v560, 0.0
        %v569 = vadd.f32 %v567, %v568
        %v570 = vsel %vm537, %v561, 0.0
        %v571 = vadd.f32 %v569, %v570
        %v572 = vsel %vm537, %v562, 0.0
        %v573 = vadd.f32 %v571, %v572
        %v574 = vsel %vm537, %v563, 0.0
        %v575 = vadd.f32 %v573, %v574
        %v576 = vsel %vm537, %v564, 0.0
        %v577 = vadd.f32 %v575, %v576
        %v578 = vsel %vm537, %v565, 0.0
        %v579 = vadd.f32 %v577, %v578
        %v580 = vsel %vm537, %v566, 0.0
        %v581 = vadd.f32 %v579, %v580
        %v582 = vrot.slane %v581, 4
        %v583 = vadd.f32 %v581, %v582
        %v584 = vrot.slane %v583, 2
        %v585 = vadd.f32 %v583, %v584
        %v586 = vrot.slane %v585, 1
        %v587 = vadd.f32 %v585, %v586
        %v588 = vmul.f32 %v558, 0.015625
        %v589 = vmul.f32 %v587, 0.015625
        %v590 = vmul.f32 %v588, %v588
        %v591 = vsub.f32 %v589, %v590
        %v592 = vadd.f32 %v591, 1e-05
        %v593 = vrsqrt.pop %v592
        %v594 = vmul.f32 %v593, %v535
        %v595 = vmul.f32 %v588, %v594
        %v596 = vsub.f32 %v536, %v595
        %v597 = vlaneseq
        %v598 = vshrl.u32 %v597, 7
        %v599 = vsub.s32 0, %v598
        %v600 = vrot.slane %v594, %v599
        %v601 = vmul.f32 %v527, %v600
        %v602 = vmul.f32 %v528, %v600
        %v603 = vmul.f32 %v529, %v600
        %v604 = vmul.f32 %v530, %v600
        %v605 = vmul.f32 %v531, %v600
        %v606 = vmul.f32 %v532, %v600
        %v607 = vmul.f32 %v533, %v600
        %v608 = vmul.f32 %v534, %v600
        %v610 = vlaneseq
        %v611 = vshrl.u32 %v610, 7
        %v612 = vsub.s32 0, %v611
        %v613 = vrot.slane %v596, %v612
        %v615 = vadd.f32 %v601, %v613
        %v616 = vadd.f32 %v602, %v613
        %v617 = vadd.f32 %v603, %v613
        %v618 = vadd.f32 %v604, %v613
        %v619 = vadd.f32 %v605, %v613
        %v620 = vadd.f32 %v606, %v613
        %v621 = vadd.f32 %v607, %v613
        %v622 = vadd.f32 %v608, %v613
        %vm623 = vcmp.gt.f32.partialorder %v615, 0.0
        %vm624 = vcmp.gt.f32.partialorder %v616, 0.0
        %vm625 = vcmp.gt.f32.partialorder %v617, 0.0
        %vm626 = vcmp.gt.f32.partialorder %v618, 0.0
        %vm627 = vcmp.gt.f32.partialorder %v619, 0.0
        %vm628 = vcmp.gt.f32.partialorder %v620, 0.0
        %vm629 = vcmp.gt.f32.partialorder %v621, 0.0
        %vm630 = vcmp.gt.f32.partialorder %v622, 0.0
        %v631 = vmul.f32 %v615, 1.442695
        %v632 = vpow.pop %v631
        %v633 = vmul.f32 %v616, 1.442695
        %v634 = vpow.pop %v633
        %v635 = vmul.f32 %v617, 1.442695
        %v636 = vpow.pop %v635
        %v637 = vmul.f32 %v618, 1.442695
        %v638 = vpow.pop %v637
        %v639 = vmul.f32 %v619, 1.442695
        %v640 = vpow.pop %v639
        %v641 = vmul.f32 %v620, 1.442695
        %v642 = vpow.pop %v641
        %v643 = vmul.f32 %v621, 1.442695
        %v644 = vpow.pop %v643
        %v645 = vmul.f32 %v622, 1.442695
        %v646 = vpow.pop %v645
        %v647 = vsub.f32 %v632, 1.0
        %v648 = vsub.f32 %v634, 1.0
        %v649 = vsub.f32 %v636, 1.0
        %v650 = vsub.f32 %v638, 1.0
        %v651 = vsub.f32 %v640, 1.0
        %v652 = vsub.f32 %v642, 1.0
        %v653 = vsub.f32 %v644, 1.0
        %v654 = vsub.f32 %v646, 1.0
        %v655 = vmul.f32 %v647, 1.6732632
        %v656 = vmul.f32 %v648, 1.6732632
        %v657 = vmul.f32 %v649, 1.6732632
        %v658 = vmul.f32 %v650, 1.6732632
        %v659 = vmul.f32 %v651, 1.6732632
        %v660 = vmul.f32 %v652, 1.6732632
        %v661 = vmul.f32 %v653, 1.6732632
        %v662 = vmul.f32 %v654, 1.6732632
        %v663 = vsel %vm623, %v615, %v655
        %v664 = vsel %vm624, %v616, %v656
        %v665 = vsel %vm625, %v617, %v657
        %v666 = vsel %vm626, %v618, %v658
        %v667 = vsel %vm627, %v619, %v659
        %v668 = vsel %vm628, %v620, %v660
        %v669 = vsel %vm629, %v621, %v661
        %v670 = vsel %vm630, %v622, %v662
        %v671 = vmul.f32 %v663, 1.050701
        %v672 = vmul.f32 %v664, 1.050701
        %v673 = vmul.f32 %v665, 1.050701
        %v674 = vmul.f32 %v666, 1.050701
        %v675 = vmul.f32 %v667, 1.050701
        %v676 = vmul.f32 %v668, 1.050701
        %v677 = vmul.f32 %v669, 1.050701
        %v678 = vmul.f32 %v670, 1.050701
        %vm679 = vcmask 257024
        %680 = vst.msk [vmem:[#allocation2] sm:$0xf] %vm679, 0
        %vm681 = vcmask 253952
        %682 = vst.msk [vmem:[#allocation2 + $0x4] sm:$0x1] %vm681, 0
        %683 = vst.msk [vmem:[#allocation2 + $0x8] sm:$0xf] %vm679, 0
        %684 = vst.msk [vmem:[#allocation2 + $0xc] sm:$0x1] %vm681, 0
        %685 = vst.msk [vmem:[#allocation2 + $0x10] sm:$0xf] %vm679, 0
        %686 = vst.msk [vmem:[#allocation2 + $0x14] sm:$0x1] %vm681, 0
        %687 = vst.msk [vmem:[#allocation2 + $0x18] sm:$0xf] %vm679, 0
        %688 = vst.msk [vmem:[#allocation2 + $0x1c] sm:$0x1] %vm681, 0
        %689 = vst.msk [vmem:[#allocation2 + $0x20] sm:$0xf] %vm679, 0
        %690 = vst.msk [vmem:[#allocation2 + $0x24] sm:$0x1] %vm681, 0
        %691 = vst.msk [vmem:[#allocation2 + $0x28] sm:$0xf] %vm679, 0
        %692 = vst.msk [vmem:[#allocation2 + $0x2c] sm:$0x1] %vm681, 0
        %693 = vst.msk [vmem:[#allocation2 + $0x30] sm:$0xf] %vm679, 0
        %694 = vst.msk [vmem:[#allocation2 + $0x34] sm:$0x1] %vm681, 0
        %695 = vst.msk [vmem:[#allocation2 + $0x38] sm:$0xf] %vm679, 0
        %696 = vst.msk [vmem:[#allocation2 + $0x3c] sm:$0x1] %vm681, 0
        %697 = vst.msk [vmem:[#allocation2 + $0x40] sm:$0xf] %vm679, 0
        %698 = vst.msk [vmem:[#allocation2 + $0x44] sm:$0x1] %vm681, 0
        %699 = vst.msk [vmem:[#allocation2 + $0x48] sm:$0xf] %vm679, 0
        %700 = vst.msk [vmem:[#allocation2 + $0x4c] sm:$0x1] %vm681, 0
        %v701 = vpack.c.bf16 %v671, %v671
        %v702 = vpack.c.bf16 %v672, %v672
        %v703 = vpack.c.bf16 %v673, %v673
        %v704 = vpack.c.bf16 %v674, %v674
        %v705 = vpack.c.bf16 %v675, %v675
        %v706 = vpack.c.bf16 %v676, %v676
        %v707 = vpack.c.bf16 %v677, %v677
        %v708 = vpack.c.bf16 %v678, %v678
        %v717 = vunpack.c.l.b16 %v701
        %v718 = vunpack.c.l.b16 %v702
        %v719 = vunpack.c.l.b16 %v703
        %v720 = vunpack.c.l.b16 %v704
        %v721 = vunpack.c.l.b16 %v705
        %v722 = vunpack.c.l.b16 %v706
        %v723 = vunpack.c.l.b16 %v707
        %v724 = vunpack.c.l.b16 %v708
        %v725 = vpack.c.b16 %v717, %v717
        %v726 = vpack.c.b16 %v718, %v718
        %v727 = vpack.c.b16 %v719, %v719
        %v728 = vpack.c.b16 %v720, %v720
        %v729 = vpack.c.b16 %v721, %v721
        %v730 = vpack.c.b16 %v722, %v722
        %v731 = vpack.c.b16 %v723, %v723
        %v732 = vpack.c.b16 %v724, %v724
        %v734 = vshrl.u32 %v725, 16
        %v736 = vrot.slane %v734, 7
        %v737 = vshll.u32 %v725, 16
        %v739 = vor.u32 %v736, %v737
        %v740 = vrot.slane %v736, 4
        %v742 = vshrl.u32 %v726, 16
        %v744 = vrot.slane %v742, 7
        %v745 = vshll.u32 %v726, 16
        %v747 = vor.u32 %v744, %v745
        %v748 = vrot.slane %v744, 4
        %v750 = vshrl.u32 %v727, 16
        %v752 = vrot.slane %v750, 7
        %v753 = vshll.u32 %v727, 16
        %v755 = vor.u32 %v752, %v753
        %v756 = vrot.slane %v752, 4
        %v758 = vshrl.u32 %v728, 16
        %v760 = vrot.slane %v758, 7
        %v761 = vshll.u32 %v728, 16
        %v763 = vor.u32 %v760, %v761
        %v764 = vrot.slane %v760, 4
        %v766 = vshrl.u32 %v729, 16
        %v768 = vrot.slane %v766, 7
        %v769 = vshll.u32 %v729, 16
        %v771 = vor.u32 %v768, %v769
        %v772 = vrot.slane %v768, 4
        %v774 = vshrl.u32 %v730, 16
        %v776 = vrot.slane %v774, 7
        %v777 = vshll.u32 %v730, 16
        %v779 = vor.u32 %v776, %v777
        %v780 = vrot.slane %v776, 4
        %v782 = vshrl.u32 %v731, 16
        %v784 = vrot.slane %v782, 7
        %v785 = vshll.u32 %v731, 16
        %v787 = vor.u32 %v784, %v785
        %v788 = vrot.slane %v784, 4
        %v790 = vshrl.u32 %v732, 16
        %v792 = vrot.slane %v790, 7
        %v793 = vshll.u32 %v732, 16
        %v795 = vor.u32 %v792, %v793
        %v796 = vrot.slane %v792, 4
        %s813 = scalar_lea.vmem [#allocation2], 8
        %vm814 = vcmask 257024
        %vm815 = vsmask.f32 7938
        %vm816 = vmand %vm814, %vm815
        %v817 = vld [vmem:[%s813] sm:$0xf]
        %v818 = vsel %vm816, %v739, %v817
        %819 = vst [vmem:[%s813] sm:$0xf] %v818
        %vm820 = vcmask 253952
        %vm821 = vsmask.f32 256
        %vm822 = vmand %vm820, %vm821
        %v823 = vld [vmem:[%s813 + $0x4] sm:$0x1]
        %v824 = vsel %vm822, %v740, %v823
        %825 = vst [vmem:[%s813 + $0x4] sm:$0x1] %v824
        %v826 = vld [vmem:[%s813 + $0x8] sm:$0xf]
        %v827 = vsel %vm816, %v747, %v826
        %828 = vst [vmem:[%s813 + $0x8] sm:$0xf] %v827
        %v829 = vld [vmem:[%s813 + $0xc] sm:$0x1]
        %v830 = vsel %vm822, %v748, %v829
        %831 = vst [vmem:[%s813 + $0xc] sm:$0x1] %v830
        %v832 = vld [vmem:[%s813 + $0x10] sm:$0xf]
        %v833 = vsel %vm816, %v755, %v832
        %834 = vst [vmem:[%s813 + $0x10] sm:$0xf] %v833
        %v835 = vld [vmem:[%s813 + $0x14] sm:$0x1]
        %v836 = vsel %vm822, %v756, %v835
        %837 = vst [vmem:[%s813 + $0x14] sm:$0x1] %v836
        %v838 = vld [vmem:[%s813 + $0x18] sm:$0xf]
        %v839 = vsel %vm816, %v763, %v838
        %840 = vst [vmem:[%s813 + $0x18] sm:$0xf] %v839
        %v841 = vld [vmem:[%s813 + $0x1c] sm:$0x1]
        %v842 = vsel %vm822, %v764, %v841
        %843 = vst [vmem:[%s813 + $0x1c] sm:$0x1] %v842
        %v844 = vld [vmem:[%s813 + $0x20] sm:$0xf]
        %v845 = vsel %vm816, %v771, %v844
        %846 = vst [vmem:[%s813 + $0x20] sm:$0xf] %v845
        %v847 = vld [vmem:[%s813 + $0x24] sm:$0x1]
        %v848 = vsel %vm822, %v772, %v847
        %849 = vst [vmem:[%s813 + $0x24] sm:$0x1] %v848
        %v850 = vld [vmem:[%s813 + $0x28] sm:$0xf]
        %v851 = vsel %vm816, %v779, %v850
        %852 = vst [vmem:[%s813 + $0x28] sm:$0xf] %v851
        %v853 = vld [vmem:[%s813 + $0x2c] sm:$0x1]
        %v854 = vsel %vm822, %v780, %v853
        %855 = vst [vmem:[%s813 + $0x2c] sm:$0x1] %v854
        %v856 = vld [vmem:[%s813 + $0x30] sm:$0xf]
        %v857 = vsel %vm816, %v787, %v856
        %858 = vst [vmem:[%s813 + $0x30] sm:$0xf] %v857
        %v859 = vld [vmem:[%s813 + $0x34] sm:$0x1]
        %v860 = vsel %vm822, %v788, %v859
        %861 = vst [vmem:[%s813 + $0x34] sm:$0x1] %v860
        %v862 = vld [vmem:[%s813 + $0x38] sm:$0xf]
        %v863 = vsel %vm816, %v795, %v862
        %864 = vst [vmem:[%s813 + $0x38] sm:$0xf] %v863
        %v865 = vld [vmem:[%s813 + $0x3c] sm:$0x1]
        %v866 = vsel %vm822, %v796, %v865
        %867 = vst [vmem:[%s813 + $0x3c] sm:$0x1] %v866
        %v868 = vld [vmem:[#allocation2] sm:$0xf]
        %v869 = vld [vmem:[#allocation2 + $0x8] sm:$0xf]
        %v870 = vld [vmem:[#allocation2 + $0x10] sm:$0xf]
        %v871 = vld [vmem:[#allocation2 + $0x18] sm:$0xf]
        %v872 = vld [vmem:[#allocation2 + $0x20] sm:$0xf]
        %v873 = vld [vmem:[#allocation2 + $0x28] sm:$0xf]
        %v874 = vld [vmem:[#allocation2 + $0x30] sm:$0xf]
        %v875 = vld [vmem:[#allocation2 + $0x38] sm:$0xf]
        %v876 = vld [vmem:[#allocation7] sm:$0xf]
        %v877 = vld [vmem:[#allocation7 + $0x4] sm:$0xf]
        %v878 = vld [vmem:[#allocation7 + $0x8] sm:$0xf]
        %v879 = vld [vmem:[#allocation7 + $0xc] sm:$0xf]
        %v880 = vld [vmem:[#allocation2 + $0x4] sm:$0x1]
        %v881 = vld [vmem:[#allocation2 + $0xc] sm:$0x1]
        %v882 = vld [vmem:[#allocation2 + $0x14] sm:$0x1]
        %v883 = vld [vmem:[#allocation2 + $0x1c] sm:$0x1]
        %v884 = vld [vmem:[#allocation2 + $0x24] sm:$0x1]
        %v885 = vld [vmem:[#allocation2 + $0x2c] sm:$0x1]
        %v886 = vld [vmem:[#allocation2 + $0x34] sm:$0x1]
        %v887 = vld [vmem:[#allocation2 + $0x3c] sm:$0x1]
        %vm888 = vsmask.f32 3328
        %vm889 = vsmask.f32 7440
        %vm890 = vmor %vm888, %vm889
        %v892 = vshrl.u32 %v868, 16
        %v894 = vrot.slane %v892, 4
        %v895 = vshll.u32 %v868, 16
        %v897 = vrot.slane %v895, 5
        %v898 = vor.u32 %v894, %v897
        %v899 = vrot.slane %v898, 4
        %v901 = vshll.u32 %v880, 16
        %v903 = vrot.slane %v901, 5
        %v904 = vsel %vm890, %v899, %v903
        %v906 = vshrl.u32 %v869, 16
        %v908 = vrot.slane %v906, 4
        %v909 = vshll.u32 %v869, 16
        %v911 = vrot.slane %v909, 5
        %v912 = vor.u32 %v908, %v911
        %v913 = vrot.slane %v912, 4
        %v915 = vshll.u32 %v881, 16
        %v917 = vrot.slane %v915, 5
        %v918 = vsel %vm890, %v913, %v917
        %v920 = vshrl.u32 %v870, 16
        %v922 = vrot.slane %v920, 4
        %v923 = vshll.u32 %v870, 16
        %v925 = vrot.slane %v923, 5
        %v926 = vor.u32 %v922, %v925
        %v927 = vrot.slane %v926, 4
        %v929 = vshll.u32 %v882, 16
        %v931 = vrot.slane %v929, 5
        %v932 = vsel %vm890, %v927, %v931
        %v934 = vshrl.u32 %v871, 16
        %v936 = vrot.slane %v934, 4
        %v937 = vshll.u32 %v871, 16
        %v939 = vrot.slane %v937, 5
        %v940 = vor.u32 %v936, %v939
        %v941 = vrot.slane %v940, 4
        %v943 = vshll.u32 %v883, 16
        %v945 = vrot.slane %v943, 5
        %v946 = vsel %vm890, %v941, %v945
        %v948 = vshrl.u32 %v872, 16
        %v950 = vrot.slane %v948, 4
        %v951 = vshll.u32 %v872, 16
        %v953 = vrot.slane %v951, 5
        %v954 = vor.u32 %v950, %v953
        %v955 = vrot.slane %v954, 4
        %v957 = vshll.u32 %v884, 16
        %v959 = vrot.slane %v957, 5
        %v960 = vsel %vm890, %v955, %v959
        %v962 = vshrl.u32 %v873, 16
        %v964 = vrot.slane %v962, 4
        %v965 = vshll.u32 %v873, 16
        %v967 = vrot.slane %v965, 5
        %v968 = vor.u32 %v964, %v967
        %v969 = vrot.slane %v968, 4
        %v971 = vshll.u32 %v885, 16
        %v973 = vrot.slane %v971, 5
        %v974 = vsel %vm890, %v969, %v973
        %v976 = vshrl.u32 %v874, 16
        %v978 = vrot.slane %v976, 4
        %v979 = vshll.u32 %v874, 16
        %v981 = vrot.slane %v979, 5
        %v982 = vor.u32 %v978, %v981
        %v983 = vrot.slane %v982, 4
        %v985 = vshll.u32 %v886, 16
        %v987 = vrot.slane %v985, 5
        %v988 = vsel %vm890, %v983, %v987
        %v990 = vshrl.u32 %v875, 16
        %v992 = vrot.slane %v990, 4
        %v993 = vshll.u32 %v875, 16
        %v995 = vrot.slane %v993, 5
        %v996 = vor.u32 %v992, %v995
        %v997 = vrot.slane %v996, 4
        %v999 = vshll.u32 %v887, 16
        %v1001 = vrot.slane %v999, 5
        %v1002 = vsel %vm890, %v997, %v1001
        %s1003 = scalar_lea.vmem [#allocation7], 16
        %v1004 = vld [vmem:[%s1003] sm:$0xf]
        %v1005 = vld [vmem:[%s1003 + $0x4] sm:$0xf]
        %v1006 = vld [vmem:[%s1003 + $0x8] sm:$0xf]
        %v1007 = vld [vmem:[%s1003 + $0xc] sm:$0xf]
        %v1008 = vunpack.c.l.b16 %v904
        %v1009 = vunpack.c.l.b16 %v918
        %v1010 = vunpack.c.l.b16 %v932
        %v1011 = vunpack.c.l.b16 %v946
        %v1012 = vunpack.c.l.b16 %v960
        %v1013 = vunpack.c.l.b16 %v974
        %v1014 = vunpack.c.l.b16 %v988
        %v1015 = vunpack.c.l.b16 %v1002
        %v1016 = vpack.c.b16 %v1009, %v1008
        %v1017 = vpack.c.b16 %v1011, %v1010
        %v1018 = vpack.c.b16 %v1013, %v1012
        %v1019 = vpack.c.b16 %v1015, %v1014
        %v1024 = vunpack.c.l.b16 %v1004
        %v1025 = vunpack.c.l.b16 %v1005
        %v1026 = vunpack.c.l.b16 %v1006
        %v1027 = vunpack.c.l.b16 %v1007
        %v1028 = vpack.c.b16 %v1025, %v1024
        %v1029 = vpack.c.b16 %v1027, %v1026
        %v1033 = vsel %vm537, %v1016, 0
        %v1036 = vsel %vm537, %v1017, 0
        %v1039 = vsel %vm537, %v1018, 0
        %v1042 = vsel %vm537, %v1019, 0
        %1044 = vmatprep.subr.bf16.mxu0 0
        %1045 = vmatpush1.bf16.msra.mxu0 0
        %1046 = vmatprep.subr.bf16.mxu0 0
        %1047 = vmatpush1.bf16.msra.mxu0 0
        %1048 = vmatprep.subr.bf16.mxu0 0
        %1049 = vmatpush1.bf16.msra.mxu0 0
        %1050 = vmatprep.subr.bf16.mxu0 0
        %1051 = vmatpush1.bf16.msra.mxu0 0
        %1052 = vmatprep.subr.bf16.mxu0 0
        %1053 = vmatpush1.bf16.msra.mxu0 0
        %1054 = vmatprep.subr.bf16.mxu0 0
        %1055 = vmatpush1.bf16.msra.mxu0 0
        %1056 = vmatprep.subr.bf16.mxu0 0
        %1057 = vmatpush1.bf16.msra.mxu0 %v1029
        %1058 = vmatprep.subr.bf16.mxu0 0
        %1059 = vmatpush1.bf16.msra.mxu0 %v1028
        %1060 = vmatprep.subr.bf16.mxu0 0
        %1061 = vmatpush2.bf16.msra.mxu0 0
        %1062 = vmatprep.subr.bf16.mxu0 0
        %1063 = vmatpush2.bf16.msra.mxu0 0
        %1064 = vmatprep.subr.bf16.mxu0 0
        %1065 = vmatpush2.bf16.msra.mxu0 0
        %1066 = vmatprep.subr.bf16.mxu0 0
        %1067 = vmatpush2.bf16.msra.mxu0 0
        %1068 = vmatprep.subr.bf16.mxu0 0
        %1069 = vmatpush2.bf16.msra.mxu0 0
        %1070 = vmatprep.subr.bf16.mxu0 0
        %1071 = vmatpush2.bf16.msra.mxu0 0
        %1072 = vmatprep.subr.bf16.mxu0 0
        %1073 = vmatpush2.bf16.msra.mxu0 0
        %1074 = vmatprep.subr.bf16.mxu0 0
        %1075 = vmatpush2.bf16.msra.mxu0 0
        %1076 = vmatprep.mubr.bf16.mxu0 0
        %1077 = vmatmul.mubr.bf16.gmra.mxu0 %v1033
        %v1078 = vpop.f32.mrf.mxu0
        %v1079 = vadd.f32 0.0, %v1078
        %v1080 = vpop.f32.mrf.mxu0
        %v1081 = vpop.f32.mrf.mxu0
        %v1082 = vadd.f32 0.0, %v1081
        %v1083 = vpop.f32.mrf.mxu0
        %1084 = vmatprep.mubr.bf16.mxu0 0
        %1085 = vmatmul.mubr.bf16.gmra.mxu0 %v1036
        %v1086 = vpop.f32.mrf.mxu0
        %v1087 = vadd.f32 0.0, %v1086
        %v1088 = vpop.f32.mrf.mxu0
        %v1089 = vpop.f32.mrf.mxu0
        %v1090 = vadd.f32 0.0, %v1089
        %v1091 = vpop.f32.mrf.mxu0
        %1092 = vmatprep.mubr.bf16.mxu0 0
        %1093 = vmatmul.mubr.bf16.gmra.mxu0 %v1039
        %v1094 = vpop.f32.mrf.mxu0
        %v1095 = vadd.f32 0.0, %v1094
        %v1096 = vpop.f32.mrf.mxu0
        %v1097 = vpop.f32.mrf.mxu0
        %v1098 = vadd.f32 0.0, %v1097
        %v1099 = vpop.f32.mrf.mxu0
        %1100 = vmatprep.mubr.bf16.mxu0 0
        %1101 = vmatmul.mubr.bf16.gmra.mxu0 %v1042
        %v1102 = vpop.f32.mrf.mxu0
        %v1103 = vadd.f32 0.0, %v1102
        %v1104 = vpop.f32.mrf.mxu0
        %v1105 = vpop.f32.mrf.mxu0
        %v1106 = vadd.f32 0.0, %v1105
        %v1107 = vpop.f32.mrf.mxu0
        %1108 = vdwg.mxu0
        %v1117 = vunpack.c.l.b16 %v868
        %v1118 = vunpack.c.l.b16 %v869
        %v1119 = vunpack.c.l.b16 %v870
        %v1120 = vunpack.c.l.b16 %v871
        %v1121 = vunpack.c.l.b16 %v872
        %v1122 = vunpack.c.l.b16 %v873
        %v1123 = vunpack.c.l.b16 %v874
        %v1124 = vunpack.c.l.b16 %v875
        %v1125 = vpack.c.b16 %v1118, %v1117
        %v1126 = vpack.c.b16 %v1120, %v1119
        %v1127 = vpack.c.b16 %v1122, %v1121
        %v1128 = vpack.c.b16 %v1124, %v1123
        %v1133 = vunpack.c.l.b16 %v876
        %v1134 = vunpack.c.l.b16 %v877
        %v1135 = vunpack.c.l.b16 %v878
        %v1136 = vunpack.c.l.b16 %v879
        %v1137 = vpack.c.b16 %v1134, %v1133
        %v1138 = vpack.c.b16 %v1136, %v1135
        %v1142 = vsel %vm537, %v1125, 0
        %v1145 = vsel %vm537, %v1126, 0
        %v1148 = vsel %vm537, %v1127, 0
        %v1151 = vsel %vm537, %v1128, 0
        %1153 = vmatprep.subr.bf16.mxu0 0
        %1154 = vmatpush1.bf16.msra.mxu0 0
        %1155 = vmatprep.subr.bf16.mxu0 0
        %1156 = vmatpush1.bf16.msra.mxu0 0
        %1157 = vmatprep.subr.bf16.mxu0 0
        %1158 = vmatpush1.bf16.msra.mxu0 0
        %1159 = vmatprep.subr.bf16.mxu0 0
        %1160 = vmatpush1.bf16.msra.mxu0 0
        %1161 = vmatprep.subr.bf16.mxu0 0
        %1162 = vmatpush1.bf16.msra.mxu0 0
        %1163 = vmatprep.subr.bf16.mxu0 0
        %1164 = vmatpush1.bf16.msra.mxu0 0
        %1165 = vmatprep.subr.bf16.mxu0 0
        %1166 = vmatpush1.bf16.msra.mxu0 %v1138
        %1167 = vmatprep.subr.bf16.mxu0 0
        %1168 = vmatpush1.bf16.msra.mxu0 %v1137
        %1169 = vmatprep.subr.bf16.mxu0 0
        %1170 = vmatpush2.bf16.msra.mxu0 0
        %1171 = vmatprep.subr.bf16.mxu0 0
        %1172 = vmatpush2.bf16.msra.mxu0 0
        %1173 = vmatprep.subr.bf16.mxu0 0
        %1174 = vmatpush2.bf16.msra.mxu0 0
        %1175 = vmatprep.subr.bf16.mxu0 0
        %1176 = vmatpush2.bf16.msra.mxu0 0
        %1177 = vmatprep.subr.bf16.mxu0 0
        %1178 = vmatpush2.bf16.msra.mxu0 0
        %1179 = vmatprep.subr.bf16.mxu0 0
        %1180 = vmatpush2.bf16.msra.mxu0 0
        %1181 = vmatprep.subr.bf16.mxu0 0
        %1182 = vmatpush2.bf16.msra.mxu0 0
        %1183 = vmatprep.subr.bf16.mxu0 0
        %1184 = vmatpush2.bf16.msra.mxu0 0
        %1185 = vmatprep.mubr.bf16.mxu0 0
        %1186 = vmatmul.mubr.bf16.gmra.mxu0 %v1142
        %v1187 = vpop.f32.mrf.mxu0
        %v1188 = vadd.f32 %v1079, %v1187
        %v1189 = vpop.f32.mrf.mxu0
        %v1190 = vpop.f32.mrf.mxu0
        %v1191 = vadd.f32 %v1082, %v1190
        %v1192 = vpop.f32.mrf.mxu0
        %1193 = vmatprep.mubr.bf16.mxu0 0
        %1194 = vmatmul.mubr.bf16.gmra.mxu0 %v1145
        %v1195 = vpop.f32.mrf.mxu0
        %v1196 = vadd.f32 %v1087, %v1195
        %v1197 = vpop.f32.mrf.mxu0
        %v1198 = vpop.f32.mrf.mxu0
        %v1199 = vadd.f32 %v1090, %v1198
        %v1200 = vpop.f32.mrf.mxu0
        %1201 = vmatprep.mubr.bf16.mxu0 0
        %1202 = vmatmul.mubr.bf16.gmra.mxu0 %v1148
        %v1203 = vpop.f32.mrf.mxu0
        %v1204 = vadd.f32 %v1095, %v1203
        %v1205 = vpop.f32.mrf.mxu0
        %v1206 = vpop.f32.mrf.mxu0
        %v1207 = vadd.f32 %v1098, %v1206
        %v1208 = vpop.f32.mrf.mxu0
        %1209 = vmatprep.mubr.bf16.mxu0 0
        %1210 = vmatmul.mubr.bf16.gmra.mxu0 %v1151
        %v1211 = vpop.f32.mrf.mxu0
        %v1212 = vadd.f32 %v1103, %v1211
        %v1213 = vpop.f32.mrf.mxu0
        %v1214 = vpop.f32.mrf.mxu0
        %v1215 = vadd.f32 %v1106, %v1214
        %v1216 = vpop.f32.mrf.mxu0
        %1217 = vdwg.mxu0
        %v1218 = vld [vmem:[#allocation2] sm:$0xe]
        %v1219 = vld [vmem:[#allocation2 + $0x8] sm:$0xe]
        %v1220 = vld [vmem:[#allocation2 + $0x10] sm:$0xe]
        %v1221 = vld [vmem:[#allocation2 + $0x18] sm:$0xe]
        %v1222 = vld [vmem:[#allocation2 + $0x20] sm:$0xe]
        %v1223 = vld [vmem:[#allocation2 + $0x28] sm:$0xe]
        %v1224 = vld [vmem:[#allocation2 + $0x30] sm:$0xe]
        %v1225 = vld [vmem:[#allocation2 + $0x38] sm:$0xe]
        %vm1242 = vcmask 1042432
        %vm1243 = vcmask 1046532
        %vm1244 = vmor %vm1242, %vm1243
        %v1245 = vrot.slane %v1218, 5
        %v1246 = vrot.slane %v1245, 4
        %v1247 = vrot.slane %v880, 5
        %v1248 = vsel %vm1244, %v1246, %v1247
        %v1249 = vrot.slane %v1219, 5
        %v1250 = vrot.slane %v1249, 4
        %v1251 = vrot.slane %v881, 5
        %v1252 = vsel %vm1244, %v1250, %v1251
        %v1253 = vrot.slane %v1220, 5
        %v1254 = vrot.slane %v1253, 4
        %v1255 = vrot.slane %v882, 5
        %v1256 = vsel %vm1244, %v1254, %v1255
        %v1257 = vrot.slane %v1221, 5
        %v1258 = vrot.slane %v1257, 4
        %v1259 = vrot.slane %v883, 5
        %v1260 = vsel %vm1244, %v1258, %v1259
        %v1261 = vrot.slane %v1222, 5
        %v1262 = vrot.slane %v1261, 4
        %v1263 = vrot.slane %v884, 5
        %v1264 = vsel %vm1244, %v1262, %v1263
        %v1265 = vrot.slane %v1223, 5
        %v1266 = vrot.slane %v1265, 4
        %v1267 = vrot.slane %v885, 5
        %v1268 = vsel %vm1244, %v1266, %v1267
        %v1269 = vrot.slane %v1224, 5
        %v1270 = vrot.slane %v1269, 4
        %v1271 = vrot.slane %v886, 5
        %v1272 = vsel %vm1244, %v1270, %v1271
        %v1273 = vrot.slane %v1225, 5
        %v1274 = vrot.slane %v1273, 4
        %v1275 = vrot.slane %v887, 5
        %v1276 = vsel %vm1244, %v1274, %v1275
        %s1277 = scalar_lea.vmem [#allocation7], 32
        %v1278 = vld [vmem:[%s1277] sm:$0xf]
        %v1279 = vld [vmem:[%s1277 + $0x4] sm:$0xf]
        %v1280 = vld [vmem:[%s1277 + $0x8] sm:$0xf]
        %v1281 = vld [vmem:[%s1277 + $0xc] sm:$0xf]
        %v1282 = vunpack.c.l.b16 %v1248
        %v1283 = vunpack.c.l.b16 %v1252
        %v1284 = vunpack.c.l.b16 %v1256
        %v1285 = vunpack.c.l.b16 %v1260
        %v1286 = vunpack.c.l.b16 %v1264
        %v1287 = vunpack.c.l.b16 %v1268
        %v1288 = vunpack.c.l.b16 %v1272
        %v1289 = vunpack.c.l.b16 %v1276
        %v1290 = vpack.c.b16 %v1283, %v1282
        %v1291 = vpack.c.b16 %v1285, %v1284
        %v1292 = vpack.c.b16 %v1287, %v1286
        %v1293 = vpack.c.b16 %v1289, %v1288
        %v1298 = vunpack.c.l.b16 %v1278
        %v1299 = vunpack.c.l.b16 %v1279
        %v1300 = vunpack.c.l.b16 %v1280
        %v1301 = vunpack.c.l.b16 %v1281
        %v1302 = vpack.c.b16 %v1299, %v1298
        %v1303 = vpack.c.b16 %v1301, %v1300
        %v1307 = vsel %vm537, %v1290, 0
        %v1310 = vsel %vm537, %v1291, 0
        %v1313 = vsel %vm537, %v1292, 0
        %v1316 = vsel %vm537, %v1293, 0
        %1318 = vmatprep.subr.bf16.mxu0 0
        %1319 = vmatpush1.bf16.msra.mxu0 0
        %1320 = vmatprep.subr.bf16.mxu0 0
        %1321 = vmatpush1.bf16.msra.mxu0 0
        %1322 = vmatprep.subr.bf16.mxu0 0
        %1323 = vmatpush1.bf16.msra.mxu0 0
        %1324 = vmatprep.subr.bf16.mxu0 0
        %1325 = vmatpush1.bf16.msra.mxu0 0
        %1326 = vmatprep.subr.bf16.mxu0 0
        %1327 = vmatpush1.bf16.msra.mxu0 0
        %1328 = vmatprep.subr.bf16.mxu0 0
        %1329 = vmatpush1.bf16.msra.mxu0 0
        %1330 = vmatprep.subr.bf16.mxu0 0
        %1331 = vmatpush1.bf16.msra.mxu0 %v1303
        %1332 = vmatprep.subr.bf16.mxu0 0
        %1333 = vmatpush1.bf16.msra.mxu0 %v1302
        %1334 = vmatprep.subr.bf16.mxu0 0
        %1335 = vmatpush2.bf16.msra.mxu0 0
        %1336 = vmatprep.subr.bf16.mxu0 0
        %1337 = vmatpush2.bf16.msra.mxu0 0
        %1338 = vmatprep.subr.bf16.mxu0 0
        %1339 = vmatpush2.bf16.msra.mxu0 0
        %1340 = vmatprep.subr.bf16.mxu0 0
        %1341 = vmatpush2.bf16.msra.mxu0 0
        %1342 = vmatprep.subr.bf16.mxu0 0
        %1343 = vmatpush2.bf16.msra.mxu0 0
        %1344 = vmatprep.subr.bf16.mxu0 0
        %1345 = vmatpush2.bf16.msra.mxu0 0
        %1346 = vmatprep.subr.bf16.mxu0 0
        %1347 = vmatpush2.bf16.msra.mxu0 0
        %1348 = vmatprep.subr.bf16.mxu0 0
        %1349 = vmatpush2.bf16.msra.mxu0 0
        %1350 = vmatprep.mubr.bf16.mxu0 0
        %1351 = vmatmul.mubr.bf16.gmra.mxu0 %v1307
        %v1352 = vpop.f32.mrf.mxu0
        %v1353 = vadd.f32 0.0, %v1352
        %v1354 = vpop.f32.mrf.mxu0
        %v1355 = vpop.f32.mrf.mxu0
        %v1356 = vadd.f32 0.0, %v1355
        %v1357 = vpop.f32.mrf.mxu0
        %1358 = vmatprep.mubr.bf16.mxu0 0
        %1359 = vmatmul.mubr.bf16.gmra.mxu0 %v1310
        %v1360 = vpop.f32.mrf.mxu0
        %v1361 = vadd.f32 0.0, %v1360
        %v1362 = vpop.f32.mrf.mxu0
        %v1363 = vpop.f32.mrf.mxu0
        %v1364 = vadd.f32 0.0, %v1363
        %v1365 = vpop.f32.mrf.mxu0
        %1366 = vmatprep.mubr.bf16.mxu0 0
        %1367 = vmatmul.mubr.bf16.gmra.mxu0 %v1313
        %v1368 = vpop.f32.mrf.mxu0
        %v1369 = vadd.f32 0.0, %v1368
        %v1370 = vpop.f32.mrf.mxu0
        %v1371 = vpop.f32.mrf.mxu0
        %v1372 = vadd.f32 0.0, %v1371
        %v1373 = vpop.f32.mrf.mxu0
        %1374 = vmatprep.mubr.bf16.mxu0 0
        %1375 = vmatmul.mubr.bf16.gmra.mxu0 %v1316
        %v1376 = vpop.f32.mrf.mxu0
        %v1377 = vadd.f32 0.0, %v1376
        %v1378 = vpop.f32.mrf.mxu0
        %v1379 = vpop.f32.mrf.mxu0
        %v1380 = vadd.f32 0.0, %v1379
        %v1381 = vpop.f32.mrf.mxu0
        %1382 = vdwg.mxu0
        %v1383 = vadd.f32 %v1188, %v1353
        %v1384 = vadd.f32 %v1191, %v1356
        %v1385 = vadd.f32 %v1196, %v1361
        %v1386 = vadd.f32 %v1199, %v1364
        %v1387 = vadd.f32 %v1204, %v1369
        %v1388 = vadd.f32 %v1207, %v1372
        %v1389 = vadd.f32 %v1212, %v1377
        %v1390 = vadd.f32 %v1215, %v1380
        %v1391 = vld [vmem:[%s813] sm:$0xf]
        %v1392 = vld [vmem:[%s813 + $0x8] sm:$0xf]
        %v1393 = vld [vmem:[%s813 + $0x10] sm:$0xf]
        %v1394 = vld [vmem:[%s813 + $0x18] sm:$0xf]
        %v1395 = vld [vmem:[%s813 + $0x20] sm:$0xf]
        %v1396 = vld [vmem:[%s813 + $0x28] sm:$0xf]
        %v1397 = vld [vmem:[%s813 + $0x30] sm:$0xf]
        %v1398 = vld [vmem:[%s813 + $0x38] sm:$0xf]
        %s1399 = scalar_lea.vmem [#allocation7], 48
        %v1400 = vld [vmem:[%s1399] sm:$0xf]
        %v1401 = vld [vmem:[%s1399 + $0x4] sm:$0xf]
        %v1402 = vld [vmem:[%s1399 + $0x8] sm:$0xf]
        %v1403 = vld [vmem:[%s1399 + $0xc] sm:$0xf]
        %v1412 = vunpack.c.l.b16 %v1391
        %v1413 = vunpack.c.l.b16 %v1392
        %v1414 = vunpack.c.l.b16 %v1393
        %v1415 = vunpack.c.l.b16 %v1394
        %v1416 = vunpack.c.l.b16 %v1395
        %v1417 = vunpack.c.l.b16 %v1396
        %v1418 = vunpack.c.l.b16 %v1397
        %v1419 = vunpack.c.l.b16 %v1398
        %v1420 = vpack.c.b16 %v1413, %v1412
        %v1421 = vpack.c.b16 %v1415, %v1414
        %v1422 = vpack.c.b16 %v1417, %v1416
        %v1423 = vpack.c.b16 %v1419, %v1418
        %v1428 = vunpack.c.l.b16 %v1400
        %v1429 = vunpack.c.l.b16 %v1401
        %v1430 = vunpack.c.l.b16 %v1402
        %v1431 = vunpack.c.l.b16 %v1403
        %v1432 = vpack.c.b16 %v1429, %v1428
        %v1433 = vpack.c.b16 %v1431, %v1430
        %v1437 = vsel %vm537, %v1420, 0
        %v1440 = vsel %vm537, %v1421, 0
        %v1443 = vsel %vm537, %v1422, 0
        %v1446 = vsel %vm537, %v1423, 0
        %1448 = vmatprep.subr.bf16.mxu0 0
        %1449 = vmatpush1.bf16.msra.mxu0 0
        %1450 = vmatprep.subr.bf16.mxu0 0
        %1451 = vmatpush1.bf16.msra.mxu0 0
        %1452 = vmatprep.subr.bf16.mxu0 0
        %1453 = vmatpush1.bf16.msra.mxu0 0
        %1454 = vmatprep.subr.bf16.mxu0 0
        %1455 = vmatpush1.bf16.msra.mxu0 0
        %1456 = vmatprep.subr.bf16.mxu0 0
        %1457 = vmatpush1.bf16.msra.mxu0 0
        %1458 = vmatprep.subr.bf16.mxu0 0
        %1459 = vmatpush1.bf16.msra.mxu0 0
        %1460 = vmatprep.subr.bf16.mxu0 0
        %1461 = vmatpush1.bf16.msra.mxu0 %v1433
        %1462 = vmatprep.subr.bf16.mxu0 0
        %1463 = vmatpush1.bf16.msra.mxu0 %v1432
        %1464 = vmatprep.subr.bf16.mxu0 0
        %1465 = vmatpush2.bf16.msra.mxu0 0
        %1466 = vmatprep.subr.bf16.mxu0 0
        %1467 = vmatpush2.bf16.msra.mxu0 0
        %1468 = vmatprep.subr.bf16.mxu0 0
        %1469 = vmatpush2.bf16.msra.mxu0 0
        %1470 = vmatprep.subr.bf16.mxu0 0
        %1471 = vmatpush2.bf16.msra.mxu0 0
        %1472 = vmatprep.subr.bf16.mxu0 0
        %1473 = vmatpush2.bf16.msra.mxu0 0
        %1474 = vmatprep.subr.bf16.mxu0 0
        %1475 = vmatpush2.bf16.msra.mxu0 0
        %1476 = vmatprep.subr.bf16.mxu0 0
        %1477 = vmatpush2.bf16.msra.mxu0 0
        %1478 = vmatprep.subr.bf16.mxu0 0
        %1479 = vmatpush2.bf16.msra.mxu0 0
        %1480 = vmatprep.mubr.bf16.mxu0 0
        %1481 = vmatmul.mubr.bf16.gmra.mxu0 %v1437
        %v1482 = vpop.f32.mrf.mxu0
        %v1483 = vadd.f32 0.0, %v1482
        %v1484 = vpop.f32.mrf.mxu0
        %v1485 = vpop.f32.mrf.mxu0
        %v1486 = vadd.f32 0.0, %v1485
        %v1487 = vpop.f32.mrf.mxu0
        %1488 = vmatprep.mubr.bf16.mxu0 0
        %1489 = vmatmul.mubr.bf16.gmra.mxu0 %v1440
        %v1490 = vpop.f32.mrf.mxu0
        %v1491 = vadd.f32 0.0, %v1490
        %v1492 = vpop.f32.mrf.mxu0
        %v1493 = vpop.f32.mrf.mxu0
        %v1494 = vadd.f32 0.0, %v1493
        %v1495 = vpop.f32.mrf.mxu0
        %1496 = vmatprep.mubr.bf16.mxu0 0
        %1497 = vmatmul.mubr.bf16.gmra.mxu0 %v1443
        %v1498 = vpop.f32.mrf.mxu0
        %v1499 = vadd.f32 0.0, %v1498
        %v1500 = vpop.f32.mrf.mxu0
        %v1501 = vpop.f32.mrf.mxu0
        %v1502 = vadd.f32 0.0, %v1501
        %v1503 = vpop.f32.mrf.mxu0
        %1504 = vmatprep.mubr.bf16.mxu0 0
        %1505 = vmatmul.mubr.bf16.gmra.mxu0 %v1446
        %v1506 = vpop.f32.mrf.mxu0
        %v1507 = vadd.f32 0.0, %v1506
        %v1508 = vpop.f32.mrf.mxu0
        %v1509 = vpop.f32.mrf.mxu0
        %v1510 = vadd.f32 0.0, %v1509
        %v1511 = vpop.f32.mrf.mxu0
        %1512 = vdwg.mxu0
        %v1513 = vadd.f32 %v1383, %v1483
        %v1514 = vadd.f32 %v1384, %v1486
        %v1515 = vadd.f32 %v1385, %v1491
        %v1516 = vadd.f32 %v1386, %v1494
        %v1517 = vadd.f32 %v1387, %v1499
        %v1518 = vadd.f32 %v1388, %v1502
        %v1519 = vadd.f32 %v1389, %v1507
        %v1520 = vadd.f32 %v1390, %v1510
        %v1521 = vld [vmem:[%s813] sm:$0xf]
        %v1522 = vld [vmem:[%s813 + $0x4] sm:$0x1]
        %v1523 = vld [vmem:[%s813 + $0x8] sm:$0xf]
        %v1524 = vld [vmem:[%s813 + $0xc] sm:$0x1]
        %v1525 = vld [vmem:[%s813 + $0x10] sm:$0xf]
        %v1526 = vld [vmem:[%s813 + $0x14] sm:$0x1]
        %v1527 = vld [vmem:[%s813 + $0x18] sm:$0xf]
        %v1528 = vld [vmem:[%s813 + $0x1c] sm:$0x1]
        %v1529 = vld [vmem:[%s813 + $0x20] sm:$0xf]
        %v1530 = vld [vmem:[%s813 + $0x24] sm:$0x1]
        %v1531 = vld [vmem:[%s813 + $0x28] sm:$0xf]
        %v1532 = vld [vmem:[%s813 + $0x2c] sm:$0x1]
        %v1533 = vld [vmem:[%s813 + $0x30] sm:$0xf]
        %v1534 = vld [vmem:[%s813 + $0x34] sm:$0x1]
        %v1535 = vld [vmem:[%s813 + $0x38] sm:$0xf]
        %v1536 = vld [vmem:[%s813 + $0x3c] sm:$0x1]
        %v1538 = vshrl.u32 %v1521, 16
        %v1540 = vrot.slane %v1538, 4
        %v1541 = vshll.u32 %v1521, 16
        %v1543 = vrot.slane %v1541, 5
        %v1544 = vor.u32 %v1540, %v1543
        %v1545 = vrot.slane %v1544, 4
        %v1547 = vshll.u32 %v1522, 16
        %v1549 = vrot.slane %v1547, 5
        %v1550 = vsel %vm890, %v1545, %v1549
        %v1552 = vshrl.u32 %v1523, 16
        %v1554 = vrot.slane %v1552, 4
        %v1555 = vshll.u32 %v1523, 16
        %v1557 = vrot.slane %v1555, 5
        %v1558 = vor.u32 %v1554, %v1557
        %v1559 = vrot.slane %v1558, 4
        %v1561 = vshll.u32 %v1524, 16
        %v1563 = vrot.slane %v1561, 5
        %v1564 = vsel %vm890, %v1559, %v1563
        %v1566 = vshrl.u32 %v1525, 16
        %v1568 = vrot.slane %v1566, 4
        %v1569 = vshll.u32 %v1525, 16
        %v1571 = vrot.slane %v1569, 5
        %v1572 = vor.u32 %v1568, %v1571
        %v1573 = vrot.slane %v1572, 4
        %v1575 = vshll.u32 %v1526, 16
        %v1577 = vrot.slane %v1575, 5
        %v1578 = vsel %vm890, %v1573, %v1577
        %v1580 = vshrl.u32 %v1527, 16
        %v1582 = vrot.slane %v1580, 4
        %v1583 = vshll.u32 %v1527, 16
        %v1585 = vrot.slane %v1583, 5
        %v1586 = vor.u32 %v1582, %v1585
        %v1587 = vrot.slane %v1586, 4
        %v1589 = vshll.u32 %v1528, 16
        %v1591 = vrot.slane %v1589, 5
        %v1592 = vsel %vm890, %v1587, %v1591
        %v1594 = vshrl.u32 %v1529, 16
        %v1596 = vrot.slane %v1594, 4
        %v1597 = vshll.u32 %v1529, 16
        %v1599 = vrot.slane %v1597, 5
        %v1600 = vor.u32 %v1596, %v1599
        %v1601 = vrot.slane %v1600, 4
        %v1603 = vshll.u32 %v1530, 16
        %v1605 = vrot.slane %v1603, 5
        %v1606 = vsel %vm890, %v1601, %v1605
        %v1608 = vshrl.u32 %v1531, 16
        %v1610 = vrot.slane %v1608, 4
        %v1611 = vshll.u32 %v1531, 16
        %v1613 = vrot.slane %v1611, 5
        %v1614 = vor.u32 %v1610, %v1613
        %v1615 = vrot.slane %v1614, 4
        %v1617 = vshll.u32 %v1532, 16
        %v1619 = vrot.slane %v1617, 5
        %v1620 = vsel %vm890, %v1615, %v1619
        %v1622 = vshrl.u32 %v1533, 16
        %v1624 = vrot.slane %v1622, 4
        %v1625 = vshll.u32 %v1533, 16
        %v1627 = vrot.slane %v1625, 5
        %v1628 = vor.u32 %v1624, %v1627
        %v1629 = vrot.slane %v1628, 4
        %v1631 = vshll.u32 %v1534, 16
        %v1633 = vrot.slane %v1631, 5
        %v1634 = vsel %vm890, %v1629, %v1633
        %v1636 = vshrl.u32 %v1535, 16
        %v1638 = vrot.slane %v1636, 4
        %v1639 = vshll.u32 %v1535, 16
        %v1641 = vrot.slane %v1639, 5
        %v1642 = vor.u32 %v1638, %v1641
        %v1643 = vrot.slane %v1642, 4
        %v1645 = vshll.u32 %v1536, 16
        %v1647 = vrot.slane %v1645, 5
        %v1648 = vsel %vm890, %v1643, %v1647
        %s1649 = scalar_lea.vmem [#allocation7], 64
        %v1650 = vld [vmem:[%s1649] sm:$0xf]
        %v1651 = vld [vmem:[%s1649 + $0x4] sm:$0xf]
        %v1652 = vld [vmem:[%s1649 + $0x8] sm:$0xf]
        %v1653 = vld [vmem:[%s1649 + $0xc] sm:$0xf]
        %v1654 = vunpack.c.l.b16 %v1550
        %v1655 = vunpack.c.l.b16 %v1564
        %v1656 = vunpack.c.l.b16 %v1578
        %v1657 = vunpack.c.l.b16 %v1592
        %v1658 = vunpack.c.l.b16 %v1606
        %v1659 = vunpack.c.l.b16 %v1620
        %v1660 = vunpack.c.l.b16 %v1634
        %v1661 = vunpack.c.l.b16 %v1648
        %v1662 = vpack.c.b16 %v1655, %v1654
        %v1663 = vpack.c.b16 %v1657, %v1656
        %v1664 = vpack.c.b16 %v1659, %v1658
        %v1665 = vpack.c.b16 %v1661, %v1660
        %v1670 = vunpack.c.l.b16 %v1650
        %v1671 = vunpack.c.l.b16 %v1651
        %v1672 = vunpack.c.l.b16 %v1652
        %v1673 = vunpack.c.l.b16 %v1653
        %v1674 = vpack.c.b16 %v1671, %v1670
        %v1675 = vpack.c.b16 %v1673, %v1672
        %v1679 = vsel %vm537, %v1662, 0
        %v1682 = vsel %vm537, %v1663, 0
        %v1685 = vsel %vm537, %v1664, 0
        %v1688 = vsel %vm537, %v1665, 0
        %1690 = vmatprep.subr.bf16.mxu0 0
        %1691 = vmatpush1.bf16.msra.mxu0 0
        %1692 = vmatprep.subr.bf16.mxu0 0
        %1693 = vmatpush1.bf16.msra.mxu0 0
        %1694 = vmatprep.subr.bf16.mxu0 0
        %1695 = vmatpush1.bf16.msra.mxu0 0
        %1696 = vmatprep.subr.bf16.mxu0 0
        %1697 = vmatpush1.bf16.msra.mxu0 0
        %1698 = vmatprep.subr.bf16.mxu0 0
        %1699 = vmatpush1.bf16.msra.mxu0 0
        %1700 = vmatprep.subr.bf16.mxu0 0
        %1701 = vmatpush1.bf16.msra.mxu0 0
        %1702 = vmatprep.subr.bf16.mxu0 0
        %1703 = vmatpush1.bf16.msra.mxu0 %v1675
        %1704 = vmatprep.subr.bf16.mxu0 0
        %1705 = vmatpush1.bf16.msra.mxu0 %v1674
        %1706 = vmatprep.subr.bf16.mxu0 0
        %1707 = vmatpush2.bf16.msra.mxu0 0
        %1708 = vmatprep.subr.bf16.mxu0 0
        %1709 = vmatpush2.bf16.msra.mxu0 0
        %1710 = vmatprep.subr.bf16.mxu0 0
        %1711 = vmatpush2.bf16.msra.mxu0 0
        %1712 = vmatprep.subr.bf16.mxu0 0
        %1713 = vmatpush2.bf16.msra.mxu0 0
        %1714 = vmatprep.subr.bf16.mxu0 0
        %1715 = vmatpush2.bf16.msra.mxu0 0
        %1716 = vmatprep.subr.bf16.mxu0 0
        %1717 = vmatpush2.bf16.msra.mxu0 0
        %1718 = vmatprep.subr.bf16.mxu0 0
        %1719 = vmatpush2.bf16.msra.mxu0 0
        %1720 = vmatprep.subr.bf16.mxu0 0
        %1721 = vmatpush2.bf16.msra.mxu0 0
        %1722 = vmatprep.mubr.bf16.mxu0 0
        %1723 = vmatmul.mubr.bf16.gmra.mxu0 %v1679
        %v1724 = vpop.f32.mrf.mxu0
        %v1725 = vadd.f32 0.0, %v1724
        %v1726 = vpop.f32.mrf.mxu0
        %v1727 = vpop.f32.mrf.mxu0
        %v1728 = vadd.f32 0.0, %v1727
        %v1729 = vpop.f32.mrf.mxu0
        %1730 = vmatprep.mubr.bf16.mxu0 0
        %1731 = vmatmul.mubr.bf16.gmra.mxu0 %v1682
        %v1732 = vpop.f32.mrf.mxu0
        %v1733 = vadd.f32 0.0, %v1732
        %v1734 = vpop.f32.mrf.mxu0
        %v1735 = vpop.f32.mrf.mxu0
        %v1736 = vadd.f32 0.0, %v1735
        %v1737 = vpop.f32.mrf.mxu0
        %1738 = vmatprep.mubr.bf16.mxu0 0
        %1739 = vmatmul.mubr.bf16.gmra.mxu0 %v1685
        %v1740 = vpop.f32.mrf.mxu0
        %v1741 = vadd.f32 0.0, %v1740
        %v1742 = vpop.f32.mrf.mxu0
        %v1743 = vpop.f32.mrf.mxu0
        %v1744 = vadd.f32 0.0, %v1743
        %v1745 = vpop.f32.mrf.mxu0
        %1746 = vmatprep.mubr.bf16.mxu0 0
        %1747 = vmatmul.mubr.bf16.gmra.mxu0 %v1688
        %v1748 = vpop.f32.mrf.mxu0
        %v1749 = vadd.f32 0.0, %v1748
        %v1750 = vpop.f32.mrf.mxu0
        %v1751 = vpop.f32.mrf.mxu0
        %v1752 = vadd.f32 0.0, %v1751
        %v1753 = vpop.f32.mrf.mxu0
        %1754 = vdwg.mxu0
        %v1755 = vadd.f32 %v1513, %v1725
        %v1756 = vadd.f32 %v1514, %v1728
        %v1757 = vadd.f32 %v1515, %v1733
        %v1758 = vadd.f32 %v1516, %v1736
        %v1759 = vadd.f32 %v1517, %v1741
        %v1760 = vadd.f32 %v1518, %v1744
        %v1761 = vadd.f32 %v1519, %v1749
        %v1762 = vadd.f32 %v1520, %v1752
        %v1763 = vld [vmem:[%s813] sm:$0xe]
        %v1764 = vld [vmem:[%s813 + $0x8] sm:$0xe]
        %v1765 = vld [vmem:[%s813 + $0x10] sm:$0xe]
        %v1766 = vld [vmem:[%s813 + $0x18] sm:$0xe]
        %v1767 = vld [vmem:[%s813 + $0x20] sm:$0xe]
        %v1768 = vld [vmem:[%s813 + $0x28] sm:$0xe]
        %v1769 = vld [vmem:[%s813 + $0x30] sm:$0xe]
        %v1770 = vld [vmem:[%s813 + $0x38] sm:$0xe]
        %v1787 = vrot.slane %v1763, 5
        %v1788 = vrot.slane %v1787, 4
        %v1789 = vrot.slane %v1522, 5
        %v1790 = vsel %vm1244, %v1788, %v1789
        %v1791 = vrot.slane %v1764, 5
        %v1792 = vrot.slane %v1791, 4
        %v1793 = vrot.slane %v1524, 5
        %v1794 = vsel %vm1244, %v1792, %v1793
        %v1795 = vrot.slane %v1765, 5
        %v1796 = vrot.slane %v1795, 4
        %v1797 = vrot.slane %v1526, 5
        %v1798 = vsel %vm1244, %v1796, %v1797
        %v1799 = vrot.slane %v1766, 5
        %v1800 = vrot.slane %v1799, 4
        %v1801 = vrot.slane %v1528, 5
        %v1802 = vsel %vm1244, %v1800, %v1801
        %v1803 = vrot.slane %v1767, 5
        %v1804 = vrot.slane %v1803, 4
        %v1805 = vrot.slane %v1530, 5
        %v1806 = vsel %vm1244, %v1804, %v1805
        %v1807 = vrot.slane %v1768, 5
        %v1808 = vrot.slane %v1807, 4
        %v1809 = vrot.slane %v1532, 5
        %v1810 = vsel %vm1244, %v1808, %v1809
        %v1811 = vrot.slane %v1769, 5
        %v1812 = vrot.slane %v1811, 4
        %v1813 = vrot.slane %v1534, 5
        %v1814 = vsel %vm1244, %v1812, %v1813
        %v1815 = vrot.slane %v1770, 5
        %v1816 = vrot.slane %v1815, 4
        %v1817 = vrot.slane %v1536, 5
        %v1818 = vsel %vm1244, %v1816, %v1817
        %s1819 = scalar_lea.vmem [#allocation7], 80
        %v1820 = vld [vmem:[%s1819] sm:$0xf]
        %v1821 = vld [vmem:[%s1819 + $0x4] sm:$0xf]
        %v1822 = vld [vmem:[%s1819 + $0x8] sm:$0xf]
        %v1823 = vld [vmem:[%s1819 + $0xc] sm:$0xf]
        %v1824 = vunpack.c.l.b16 %v1790
        %v1825 = vunpack.c.l.b16 %v1794
        %v1826 = vunpack.c.l.b16 %v1798
        %v1827 = vunpack.c.l.b16 %v1802
        %v1828 = vunpack.c.l.b16 %v1806
        %v1829 = vunpack.c.l.b16 %v1810
        %v1830 = vunpack.c.l.b16 %v1814
        %v1831 = vunpack.c.l.b16 %v1818
        %v1832 = vpack.c.b16 %v1825, %v1824
        %v1833 = vpack.c.b16 %v1827, %v1826
        %v1834 = vpack.c.b16 %v1829, %v1828
        %v1835 = vpack.c.b16 %v1831, %v1830
        %v1840 = vunpack.c.l.b16 %v1820
        %v1841 = vunpack.c.l.b16 %v1821
        %v1842 = vunpack.c.l.b16 %v1822
        %v1843 = vunpack.c.l.b16 %v1823
        %v1844 = vpack.c.b16 %v1841, %v1840
        %v1845 = vpack.c.b16 %v1843, %v1842
        %v1849 = vsel %vm537, %v1832, 0
        %v1852 = vsel %vm537, %v1833, 0
        %v1855 = vsel %vm537, %v1834, 0
        %v1858 = vsel %vm537, %v1835, 0
        %1860 = vmatprep.subr.bf16.mxu0 0
        %1861 = vmatpush1.bf16.msra.mxu0 0
        %1862 = vmatprep.subr.bf16.mxu0 0
        %1863 = vmatpush1.bf16.msra.mxu0 0
        %1864 = vmatprep.subr.bf16.mxu0 0
        %1865 = vmatpush1.bf16.msra.mxu0 0
        %1866 = vmatprep.subr.bf16.mxu0 0
        %1867 = vmatpush1.bf16.msra.mxu0 0
        %1868 = vmatprep.subr.bf16.mxu0 0
        %1869 = vmatpush1.bf16.msra.mxu0 0
        %1870 = vmatprep.subr.bf16.mxu0 0
        %1871 = vmatpush1.bf16.msra.mxu0 0
        %1872 = vmatprep.subr.bf16.mxu0 0
        %1873 = vmatpush1.bf16.msra.mxu0 %v1845
        %1874 = vmatprep.subr.bf16.mxu0 0
        %1875 = vmatpush1.bf16.msra.mxu0 %v1844
        %1876 = vmatprep.subr.bf16.mxu0 0
        %1877 = vmatpush2.bf16.msra.mxu0 0
        %1878 = vmatprep.subr.bf16.mxu0 0
        %1879 = vmatpush2.bf16.msra.mxu0 0
        %1880 = vmatprep.subr.bf16.mxu0 0
        %1881 = vmatpush2.bf16.msra.mxu0 0
        %1882 = vmatprep.subr.bf16.mxu0 0
        %1883 = vmatpush2.bf16.msra.mxu0 0
        %1884 = vmatprep.subr.bf16.mxu0 0
        %1885 = vmatpush2.bf16.msra.mxu0 0
        %1886 = vmatprep.subr.bf16.mxu0 0
        %1887 = vmatpush2.bf16.msra.mxu0 0
        %1888 = vmatprep.subr.bf16.mxu0 0
        %1889 = vmatpush2.bf16.msra.mxu0 0
        %1890 = vmatprep.subr.bf16.mxu0 0
        %1891 = vmatpush2.bf16.msra.mxu0 0
        %1892 = vmatprep.mubr.bf16.mxu0 0
        %1893 = vmatmul.mubr.bf16.gmra.mxu0 %v1849
        %v1894 = vpop.f32.mrf.mxu0
        %v1895 = vadd.f32 0.0, %v1894
        %v1896 = vpop.f32.mrf.mxu0
        %v1897 = vpop.f32.mrf.mxu0
        %v1898 = vadd.f32 0.0, %v1897
        %v1899 = vpop.f32.mrf.mxu0
        %1900 = vmatprep.mubr.bf16.mxu0 0
        %1901 = vmatmul.mubr.bf16.gmra.mxu0 %v1852
        %v1902 = vpop.f32.mrf.mxu0
        %v1903 = vadd.f32 0.0, %v1902
        %v1904 = vpop.f32.mrf.mxu0
        %v1905 = vpop.f32.mrf.mxu0
        %v1906 = vadd.f32 0.0, %v1905
        %v1907 = vpop.f32.mrf.mxu0
        %1908 = vmatprep.mubr.bf16.mxu0 0
        %1909 = vmatmul.mubr.bf16.gmra.mxu0 %v1855
        %v1910 = vpop.f32.mrf.mxu0
        %v1911 = vadd.f32 0.0, %v1910
        %v1912 = vpop.f32.mrf.mxu0
        %v1913 = vpop.f32.mrf.mxu0
        %v1914 = vadd.f32 0.0, %v1913
        %v1915 = vpop.f32.mrf.mxu0
        %1916 = vmatprep.mubr.bf16.mxu0 0
        %1917 = vmatmul.mubr.bf16.gmra.mxu0 %v1858
        %v1918 = vpop.f32.mrf.mxu0
        %v1919 = vadd.f32 0.0, %v1918
        %v1920 = vpop.f32.mrf.mxu0
        %v1921 = vpop.f32.mrf.mxu0
        %v1922 = vadd.f32 0.0, %v1921
        %v1923 = vpop.f32.mrf.mxu0
        %1924 = vdwg.mxu0
        %v1925 = vadd.f32 %v1755, %v1895
        %v1926 = vadd.f32 %v1756, %v1898
        %v1927 = vadd.f32 %v1757, %v1903
        %v1928 = vadd.f32 %v1758, %v1906
        %v1929 = vadd.f32 %v1759, %v1911
        %v1930 = vadd.f32 %v1760, %v1914
        %v1931 = vadd.f32 %v1761, %v1919
        %v1932 = vadd.f32 %v1762, %v1922
        %s1933 = scalar_lea.vmem [#allocation2], 16
        %v1934 = vld [vmem:[%s1933] sm:$0xf]
        %v1935 = vld [vmem:[%s1933 + $0x8] sm:$0xf]
        %v1936 = vld [vmem:[%s1933 + $0x10] sm:$0xf]
        %v1937 = vld [vmem:[%s1933 + $0x18] sm:$0xf]
        %v1938 = vld [vmem:[%s1933 + $0x20] sm:$0xf]
        %v1939 = vld [vmem:[%s1933 + $0x28] sm:$0xf]
        %v1940 = vld [vmem:[%s1933 + $0x30] sm:$0xf]
        %v1941 = vld [vmem:[%s1933 + $0x38] sm:$0xf]
        %s1942 = scalar_lea.vmem [#allocation7], 96
        %v1943 = vld [vmem:[%s1942] sm:$0xf]
        %v1944 = vld [vmem:[%s1942 + $0x4] sm:$0xf]
        %v1945 = vld [vmem:[%s1942 + $0x8] sm:$0xf]
        %v1946 = vld [vmem:[%s1942 + $0xc] sm:$0xf]
        %v1955 = vunpack.c.l.b16 %v1934
        %v1956 = vunpack.c.l.b16 %v1935
        %v1957 = vunpack.c.l.b16 %v1936
        %v1958 = vunpack.c.l.b16 %v1937
        %v1959 = vunpack.c.l.b16 %v1938
        %v1960 = vunpack.c.l.b16 %v1939
        %v1961 = vunpack.c.l.b16 %v1940
        %v1962 = vunpack.c.l.b16 %v1941
        %v1963 = vpack.c.b16 %v1956, %v1955
        %v1964 = vpack.c.b16 %v1958, %v1957
        %v1965 = vpack.c.b16 %v1960, %v1959
        %v1966 = vpack.c.b16 %v1962, %v1961
        %v1971 = vunpack.c.l.b16 %v1943
        %v1972 = vunpack.c.l.b16 %v1944
        %v1973 = vunpack.c.l.b16 %v1945
        %v1974 = vunpack.c.l.b16 %v1946
        %v1975 = vpack.c.b16 %v1972, %v1971
        %v1976 = vpack.c.b16 %v1974, %v1973
        %v1980 = vsel %vm537, %v1963, 0
        %v1983 = vsel %vm537, %v1964, 0
        %v1986 = vsel %vm537, %v1965, 0
        %v1989 = vsel %vm537, %v1966, 0
        %1991 = vmatprep.subr.bf16.mxu0 0
        %1992 = vmatpush1.bf16.msra.mxu0 0
        %1993 = vmatprep.subr.bf16.mxu0 0
        %1994 = vmatpush1.bf16.msra.mxu0 0
        %1995 = vmatprep.subr.bf16.mxu0 0
        %1996 = vmatpush1.bf16.msra.mxu0 0
        %1997 = vmatprep.subr.bf16.mxu0 0
        %1998 = vmatpush1.bf16.msra.mxu0 0
        %1999 = vmatprep.subr.bf16.mxu0 0
        %2000 = vmatpush1.bf16.msra.mxu0 0
        %2001 = vmatprep.subr.bf16.mxu0 0
        %2002 = vmatpush1.bf16.msra.mxu0 0
        %2003 = vmatprep.subr.bf16.mxu0 0
        %2004 = vmatpush1.bf16.msra.mxu0 %v1976
        %2005 = vmatprep.subr.bf16.mxu0 0
        %2006 = vmatpush1.bf16.msra.mxu0 %v1975
        %2007 = vmatprep.subr.bf16.mxu0 0
        %2008 = vmatpush2.bf16.msra.mxu0 0
        %2009 = vmatprep.subr.bf16.mxu0 0
        %2010 = vmatpush2.bf16.msra.mxu0 0
        %2011 = vmatprep.subr.bf16.mxu0 0
        %2012 = vmatpush2.bf16.msra.mxu0 0
        %2013 = vmatprep.subr.bf16.mxu0 0
        %2014 = vmatpush2.bf16.msra.mxu0 0
        %2015 = vmatprep.subr.bf16.mxu0 0
        %2016 = vmatpush2.bf16.msra.mxu0 0
        %2017 = vmatprep.subr.bf16.mxu0 0
        %2018 = vmatpush2.bf16.msra.mxu0 0
        %2019 = vmatprep.subr.bf16.mxu0 0
        %2020 = vmatpush2.bf16.msra.mxu0 0
        %2021 = vmatprep.subr.bf16.mxu0 0
        %2022 = vmatpush2.bf16.msra.mxu0 0
        %2023 = vmatprep.mubr.bf16.mxu0 0
        %2024 = vmatmul.mubr.bf16.gmra.mxu0 %v1980
        %v2025 = vpop.f32.mrf.mxu0
        %v2026 = vadd.f32 0.0, %v2025
        %v2027 = vpop.f32.mrf.mxu0
        %v2028 = vpop.f32.mrf.mxu0
        %v2029 = vadd.f32 0.0, %v2028
        %v2030 = vpop.f32.mrf.mxu0
        %2031 = vmatprep.mubr.bf16.mxu0 0
        %2032 = vmatmul.mubr.bf16.gmra.mxu0 %v1983
        %v2033 = vpop.f32.mrf.mxu0
        %v2034 = vadd.f32 0.0, %v2033
        %v2035 = vpop.f32.mrf.mxu0
        %v2036 = vpop.f32.mrf.mxu0
        %v2037 = vadd.f32 0.0, %v2036
        %v2038 = vpop.f32.mrf.mxu0
        %2039 = vmatprep.mubr.bf16.mxu0 0
        %2040 = vmatmul.mubr.bf16.gmra.mxu0 %v1986
        %v2041 = vpop.f32.mrf.mxu0
        %v2042 = vadd.f32 0.0, %v2041
        %v2043 = vpop.f32.mrf.mxu0
        %v2044 = vpop.f32.mrf.mxu0
        %v2045 = vadd.f32 0.0, %v2044
        %v2046 = vpop.f32.mrf.mxu0
        %2047 = vmatprep.mubr.bf16.mxu0 0
        %2048 = vmatmul.mubr.bf16.gmra.mxu0 %v1989
        %v2049 = vpop.f32.mrf.mxu0
        %v2050 = vadd.f32 0.0, %v2049
        %v2051 = vpop.f32.mrf.mxu0
        %v2052 = vpop.f32.mrf.mxu0
        %v2053 = vadd.f32 0.0, %v2052
        %v2054 = vpop.f32.mrf.mxu0
        %2055 = vdwg.mxu0
        %v2056 = vadd.f32 %v1925, %v2026
        %v2057 = vadd.f32 %v1926, %v2029
        %v2058 = vadd.f32 %v1927, %v2034
        %v2059 = vadd.f32 %v1928, %v2037
        %v2060 = vadd.f32 %v1929, %v2042
        %v2061 = vadd.f32 %v1930, %v2045
        %v2062 = vadd.f32 %v1931, %v2050
        %v2063 = vadd.f32 %v1932, %v2053
        %v2064 = vld [vmem:[%s1933] sm:$0xf]
        %v2065 = vld [vmem:[%s1933 + $0x4] sm:$0x1]
        %v2066 = vld [vmem:[%s1933 + $0x8] sm:$0xf]
        %v2067 = vld [vmem:[%s1933 + $0xc] sm:$0x1]
        %v2068 = vld [vmem:[%s1933 + $0x10] sm:$0xf]
        %v2069 = vld [vmem:[%s1933 + $0x14] sm:$0x1]
        %v2070 = vld [vmem:[%s1933 + $0x18] sm:$0xf]
        %v2071 = vld [vmem:[%s1933 + $0x1c] sm:$0x1]
        %v2072 = vld [vmem:[%s1933 + $0x20] sm:$0xf]
        %v2073 = vld [vmem:[%s1933 + $0x24] sm:$0x1]
        %v2074 = vld [vmem:[%s1933 + $0x28] sm:$0xf]
        %v2075 = vld [vmem:[%s1933 + $0x2c] sm:$0x1]
        %v2076 = vld [vmem:[%s1933 + $0x30] sm:$0xf]
        %v2077 = vld [vmem:[%s1933 + $0x34] sm:$0x1]
        %v2078 = vld [vmem:[%s1933 + $0x38] sm:$0xf]
        %v2079 = vld [vmem:[%s1933 + $0x3c] sm:$0x1]
        %v2081 = vshrl.u32 %v2064, 16
        %v2083 = vrot.slane %v2081, 4
        %v2084 = vshll.u32 %v2064, 16
        %v2086 = vrot.slane %v2084, 5
        %v2087 = vor.u32 %v2083, %v2086
        %v2088 = vrot.slane %v2087, 4
        %v2090 = vshll.u32 %v2065, 16
        %v2092 = vrot.slane %v2090, 5
        %v2093 = vsel %vm890, %v2088, %v2092
        %v2095 = vshrl.u32 %v2066, 16
        %v2097 = vrot.slane %v2095, 4
        %v2098 = vshll.u32 %v2066, 16
        %v2100 = vrot.slane %v2098, 5
        %v2101 = vor.u32 %v2097, %v2100
        %v2102 = vrot.slane %v2101, 4
        %v2104 = vshll.u32 %v2067, 16
        %v2106 = vrot.slane %v2104, 5
        %v2107 = vsel %vm890, %v2102, %v2106
        %v2109 = vshrl.u32 %v2068, 16
        %v2111 = vrot.slane %v2109, 4
        %v2112 = vshll.u32 %v2068, 16
        %v2114 = vrot.slane %v2112, 5
        %v2115 = vor.u32 %v2111, %v2114
        %v2116 = vrot.slane %v2115, 4
        %v2118 = vshll.u32 %v2069, 16
        %v2120 = vrot.slane %v2118, 5
        %v2121 = vsel %vm890, %v2116, %v2120
        %v2123 = vshrl.u32 %v2070, 16
        %v2125 = vrot.slane %v2123, 4
        %v2126 = vshll.u32 %v2070, 16
        %v2128 = vrot.slane %v2126, 5
        %v2129 = vor.u32 %v2125, %v2128
        %v2130 = vrot.slane %v2129, 4
        %v2132 = vshll.u32 %v2071, 16
        %v2134 = vrot.slane %v2132, 5
        %v2135 = vsel %vm890, %v2130, %v2134
        %v2137 = vshrl.u32 %v2072, 16
        %v2139 = vrot.slane %v2137, 4
        %v2140 = vshll.u32 %v2072, 16
        %v2142 = vrot.slane %v2140, 5
        %v2143 = vor.u32 %v2139, %v2142
        %v2144 = vrot.slane %v2143, 4
        %v2146 = vshll.u32 %v2073, 16
        %v2148 = vrot.slane %v2146, 5
        %v2149 = vsel %vm890, %v2144, %v2148
        %v2151 = vshrl.u32 %v2074, 16
        %v2153 = vrot.slane %v2151, 4
        %v2154 = vshll.u32 %v2074, 16
        %v2156 = vrot.slane %v2154, 5
        %v2157 = vor.u32 %v2153, %v2156
        %v2158 = vrot.slane %v2157, 4
        %v2160 = vshll.u32 %v2075, 16
        %v2162 = vrot.slane %v2160, 5
        %v2163 = vsel %vm890, %v2158, %v2162
        %v2165 = vshrl.u32 %v2076, 16
        %v2167 = vrot.slane %v2165, 4
        %v2168 = vshll.u32 %v2076, 16
        %v2170 = vrot.slane %v2168, 5
        %v2171 = vor.u32 %v2167, %v2170
        %v2172 = vrot.slane %v2171, 4
        %v2174 = vshll.u32 %v2077, 16
        %v2176 = vrot.slane %v2174, 5
        %v2177 = vsel %vm890, %v2172, %v2176
        %v2179 = vshrl.u32 %v2078, 16
        %v2181 = vrot.slane %v2179, 4
        %v2182 = vshll.u32 %v2078, 16
        %v2184 = vrot.slane %v2182, 5
        %v2185 = vor.u32 %v2181, %v2184
        %v2186 = vrot.slane %v2185, 4
        %v2188 = vshll.u32 %v2079, 16
        %v2190 = vrot.slane %v2188, 5
        %v2191 = vsel %vm890, %v2186, %v2190
        %s2192 = scalar_lea.vmem [#allocation7], 112
        %v2193 = vld [vmem:[%s2192] sm:$0xf]
        %v2194 = vld [vmem:[%s2192 + $0x4] sm:$0xf]
        %v2195 = vld [vmem:[%s2192 + $0x8] sm:$0xf]
        %v2196 = vld [vmem:[%s2192 + $0xc] sm:$0xf]
        %v2197 = vunpack.c.l.b16 %v2093
        %v2198 = vunpack.c.l.b16 %v2107
        %v2199 = vunpack.c.l.b16 %v2121
        %v2200 = vunpack.c.l.b16 %v2135
        %v2201 = vunpack.c.l.b16 %v2149
        %v2202 = vunpack.c.l.b16 %v2163
        %v2203 = vunpack.c.l.b16 %v2177
        %v2204 = vunpack.c.l.b16 %v2191
        %v2205 = vpack.c.b16 %v2198, %v2197
        %v2206 = vpack.c.b16 %v2200, %v2199
        %v2207 = vpack.c.b16 %v2202, %v2201
        %v2208 = vpack.c.b16 %v2204, %v2203
        %v2213 = vunpack.c.l.b16 %v2193
        %v2214 = vunpack.c.l.b16 %v2194
        %v2215 = vunpack.c.l.b16 %v2195
        %v2216 = vunpack.c.l.b16 %v2196
        %v2217 = vpack.c.b16 %v2214, %v2213
        %v2218 = vpack.c.b16 %v2216, %v2215
        %v2222 = vsel %vm537, %v2205, 0
        %v2225 = vsel %vm537, %v2206, 0
        %v2228 = vsel %vm537, %v2207, 0
        %v2231 = vsel %vm537, %v2208, 0
        %2233 = vmatprep.subr.bf16.mxu0 0
        %2234 = vmatpush1.bf16.msra.mxu0 0
        %2235 = vmatprep.subr.bf16.mxu0 0
        %2236 = vmatpush1.bf16.msra.mxu0 0
        %2237 = vmatprep.subr.bf16.mxu0 0
        %2238 = vmatpush1.bf16.msra.mxu0 0
        %2239 = vmatprep.subr.bf16.mxu0 0
        %2240 = vmatpush1.bf16.msra.mxu0 0
        %2241 = vmatprep.subr.bf16.mxu0 0
        %2242 = vmatpush1.bf16.msra.mxu0 0
        %2243 = vmatprep.subr.bf16.mxu0 0
        %2244 = vmatpush1.bf16.msra.mxu0 0
        %2245 = vmatprep.subr.bf16.mxu0 0
        %2246 = vmatpush1.bf16.msra.mxu0 %v2218
        %2247 = vmatprep.subr.bf16.mxu0 0
        %2248 = vmatpush1.bf16.msra.mxu0 %v2217
        %2249 = vmatprep.subr.bf16.mxu0 0
        %2250 = vmatpush2.bf16.msra.mxu0 0
        %2251 = vmatprep.subr.bf16.mxu0 0
        %2252 = vmatpush2.bf16.msra.mxu0 0
        %2253 = vmatprep.subr.bf16.mxu0 0
        %2254 = vmatpush2.bf16.msra.mxu0 0
        %2255 = vmatprep.subr.bf16.mxu0 0
        %2256 = vmatpush2.bf16.msra.mxu0 0
        %2257 = vmatprep.subr.bf16.mxu0 0
        %2258 = vmatpush2.bf16.msra.mxu0 0
        %2259 = vmatprep.subr.bf16.mxu0 0
        %2260 = vmatpush2.bf16.msra.mxu0 0
        %2261 = vmatprep.subr.bf16.mxu0 0
        %2262 = vmatpush2.bf16.msra.mxu0 0
        %2263 = vmatprep.subr.bf16.mxu0 0
        %2264 = vmatpush2.bf16.msra.mxu0 0
        %2265 = vmatprep.mubr.bf16.mxu0 0
        %2266 = vmatmul.mubr.bf16.gmra.mxu0 %v2222
        %v2267 = vpop.f32.mrf.mxu0
        %v2268 = vadd.f32 0.0, %v2267
        %v2269 = vpop.f32.mrf.mxu0
        %v2270 = vpop.f32.mrf.mxu0
        %v2271 = vadd.f32 0.0, %v2270
        %v2272 = vpop.f32.mrf.mxu0
        %2273 = vmatprep.mubr.bf16.mxu0 0
        %2274 = vmatmul.mubr.bf16.gmra.mxu0 %v2225
        %v2275 = vpop.f32.mrf.mxu0
        %v2276 = vadd.f32 0.0, %v2275
        %v2277 = vpop.f32.mrf.mxu0
        %v2278 = vpop.f32.mrf.mxu0
        %v2279 = vadd.f32 0.0, %v2278
        %v2280 = vpop.f32.mrf.mxu0
        %2281 = vmatprep.mubr.bf16.mxu0 0
        %2282 = vmatmul.mubr.bf16.gmra.mxu0 %v2228
        %v2283 = vpop.f32.mrf.mxu0
        %v2284 = vadd.f32 0.0, %v2283
        %v2285 = vpop.f32.mrf.mxu0
        %v2286 = vpop.f32.mrf.mxu0
        %v2287 = vadd.f32 0.0, %v2286
        %v2288 = vpop.f32.mrf.mxu0
        %2289 = vmatprep.mubr.bf16.mxu0 0
        %2290 = vmatmul.mubr.bf16.gmra.mxu0 %v2231
        %v2291 = vpop.f32.mrf.mxu0
        %v2292 = vadd.f32 0.0, %v2291
        %v2293 = vpop.f32.mrf.mxu0
        %v2294 = vpop.f32.mrf.mxu0
        %v2295 = vadd.f32 0.0, %v2294
        %v2296 = vpop.f32.mrf.mxu0
        %2297 = vdwg.mxu0
        %v2298 = vadd.f32 %v2056, %v2268
        %v2299 = vadd.f32 %v2057, %v2271
        %v2300 = vadd.f32 %v2058, %v2276
        %v2301 = vadd.f32 %v2059, %v2279
        %v2302 = vadd.f32 %v2060, %v2284
        %v2303 = vadd.f32 %v2061, %v2287
        %v2304 = vadd.f32 %v2062, %v2292
        %v2305 = vadd.f32 %v2063, %v2295
        %v2306 = vld [vmem:[%s1933] sm:$0xe]
        %v2307 = vld [vmem:[%s1933 + $0x8] sm:$0xe]
        %v2308 = vld [vmem:[%s1933 + $0x10] sm:$0xe]
        %v2309 = vld [vmem:[%s1933 + $0x18] sm:$0xe]
        %v2310 = vld [vmem:[%s1933 + $0x20] sm:$0xe]
        %v2311 = vld [vmem:[%s1933 + $0x28] sm:$0xe]
        %v2312 = vld [vmem:[%s1933 + $0x30] sm:$0xe]
        %v2313 = vld [vmem:[%s1933 + $0x38] sm:$0xe]
        %v2330 = vrot.slane %v2306, 5
        %v2331 = vrot.slane %v2330, 4
        %v2332 = vrot.slane %v2065, 5
        %v2333 = vsel %vm1244, %v2331, %v2332
        %v2334 = vrot.slane %v2307, 5
        %v2335 = vrot.slane %v2334, 4
        %v2336 = vrot.slane %v2067, 5
        %v2337 = vsel %vm1244, %v2335, %v2336
        %v2338 = vrot.slane %v2308, 5
        %v2339 = vrot.slane %v2338, 4
        %v2340 = vrot.slane %v2069, 5
        %v2341 = vsel %vm1244, %v2339, %v2340
        %v2342 = vrot.slane %v2309, 5
        %v2343 = vrot.slane %v2342, 4
        %v2344 = vrot.slane %v2071, 5
        %v2345 = vsel %vm1244, %v2343, %v2344
        %v2346 = vrot.slane %v2310, 5
        %v2347 = vrot.slane %v2346, 4
        %v2348 = vrot.slane %v2073, 5
        %v2349 = vsel %vm1244, %v2347, %v2348
        %v2350 = vrot.slane %v2311, 5
        %v2351 = vrot.slane %v2350, 4
        %v2352 = vrot.slane %v2075, 5
        %v2353 = vsel %vm1244, %v2351, %v2352
        %v2354 = vrot.slane %v2312, 5
        %v2355 = vrot.slane %v2354, 4
        %v2356 = vrot.slane %v2077, 5
        %v2357 = vsel %vm1244, %v2355, %v2356
        %v2358 = vrot.slane %v2313, 5
        %v2359 = vrot.slane %v2358, 4
        %v2360 = vrot.slane %v2079, 5
        %v2361 = vsel %vm1244, %v2359, %v2360
        %s2362 = scalar_lea.vmem [#allocation7], 128
        %v2363 = vld [vmem:[%s2362] sm:$0xf]
        %v2364 = vld [vmem:[%s2362 + $0x4] sm:$0xf]
        %v2365 = vld [vmem:[%s2362 + $0x8] sm:$0xf]
        %v2366 = vld [vmem:[%s2362 + $0xc] sm:$0xf]
        %v2367 = vunpack.c.l.b16 %v2333
        %v2368 = vunpack.c.l.b16 %v2337
        %v2369 = vunpack.c.l.b16 %v2341
        %v2370 = vunpack.c.l.b16 %v2345
        %v2371 = vunpack.c.l.b16 %v2349
        %v2372 = vunpack.c.l.b16 %v2353
        %v2373 = vunpack.c.l.b16 %v2357
        %v2374 = vunpack.c.l.b16 %v2361
        %v2375 = vpack.c.b16 %v2368, %v2367
        %v2376 = vpack.c.b16 %v2370, %v2369
        %v2377 = vpack.c.b16 %v2372, %v2371
        %v2378 = vpack.c.b16 %v2374, %v2373
        %v2383 = vunpack.c.l.b16 %v2363
        %v2384 = vunpack.c.l.b16 %v2364
        %v2385 = vunpack.c.l.b16 %v2365
        %v2386 = vunpack.c.l.b16 %v2366
        %v2387 = vpack.c.b16 %v2384, %v2383
        %v2388 = vpack.c.b16 %v2386, %v2385
        %v2392 = vsel %vm537, %v2375, 0
        %v2395 = vsel %vm537, %v2376, 0
        %v2398 = vsel %vm537, %v2377, 0
        %v2401 = vsel %vm537, %v2378, 0
        %2403 = vmatprep.subr.bf16.mxu0 0
        %2404 = vmatpush1.bf16.msra.mxu0 0
        %2405 = vmatprep.subr.bf16.mxu0 0
        %2406 = vmatpush1.bf16.msra.mxu0 0
        %2407 = vmatprep.subr.bf16.mxu0 0
        %2408 = vmatpush1.bf16.msra.mxu0 0
        %2409 = vmatprep.subr.bf16.mxu0 0
        %2410 = vmatpush1.bf16.msra.mxu0 0
        %2411 = vmatprep.subr.bf16.mxu0 0
        %2412 = vmatpush1.bf16.msra.mxu0 0
        %2413 = vmatprep.subr.bf16.mxu0 0
        %2414 = vmatpush1.bf16.msra.mxu0 0
        %2415 = vmatprep.subr.bf16.mxu0 0
        %2416 = vmatpush1.bf16.msra.mxu0 %v2388
        %2417 = vmatprep.subr.bf16.mxu0 0
        %2418 = vmatpush1.bf16.msra.mxu0 %v2387
        %2419 = vmatprep.subr.bf16.mxu0 0
        %2420 = vmatpush2.bf16.msra.mxu0 0
        %2421 = vmatprep.subr.bf16.mxu0 0
        %2422 = vmatpush2.bf16.msra.mxu0 0
        %2423 = vmatprep.subr.bf16.mxu0 0
        %2424 = vmatpush2.bf16.msra.mxu0 0
        %2425 = vmatprep.subr.bf16.mxu0 0
        %2426 = vmatpush2.bf16.msra.mxu0 0
        %2427 = vmatprep.subr.bf16.mxu0 0
        %2428 = vmatpush2.bf16.msra.mxu0 0
        %2429 = vmatprep.subr.bf16.mxu0 0
        %2430 = vmatpush2.bf16.msra.mxu0 0
        %2431 = vmatprep.subr.bf16.mxu0 0
        %2432 = vmatpush2.bf16.msra.mxu0 0
        %2433 = vmatprep.subr.bf16.mxu0 0
        %2434 = vmatpush2.bf16.msra.mxu0 0
        %2435 = vmatprep.mubr.bf16.mxu0 0
        %2436 = vmatmul.mubr.bf16.gmra.mxu0 %v2392
        %v2437 = vpop.f32.mrf.mxu0
        %v2438 = vadd.f32 0.0, %v2437
        %v2439 = vpop.f32.mrf.mxu0
        %v2440 = vpop.f32.mrf.mxu0
        %v2441 = vadd.f32 0.0, %v2440
        %v2442 = vpop.f32.mrf.mxu0
        %2443 = vmatprep.mubr.bf16.mxu0 0
        %2444 = vmatmul.mubr.bf16.gmra.mxu0 %v2395
        %v2445 = vpop.f32.mrf.mxu0
        %v2446 = vadd.f32 0.0, %v2445
        %v2447 = vpop.f32.mrf.mxu0
        %v2448 = vpop.f32.mrf.mxu0
        %v2449 = vadd.f32 0.0, %v2448
        %v2450 = vpop.f32.mrf.mxu0
        %2451 = vmatprep.mubr.bf16.mxu0 0
        %2452 = vmatmul.mubr.bf16.gmra.mxu0 %v2398
        %v2453 = vpop.f32.mrf.mxu0
        %v2454 = vadd.f32 0.0, %v2453
        %v2455 = vpop.f32.mrf.mxu0
        %v2456 = vpop.f32.mrf.mxu0
        %v2457 = vadd.f32 0.0, %v2456
        %v2458 = vpop.f32.mrf.mxu0
        %2459 = vmatprep.mubr.bf16.mxu0 0
        %2460 = vmatmul.mubr.bf16.gmra.mxu0 %v2401
        %v2461 = vpop.f32.mrf.mxu0
        %v2462 = vadd.f32 0.0, %v2461
        %v2463 = vpop.f32.mrf.mxu0
        %v2464 = vpop.f32.mrf.mxu0
        %v2465 = vadd.f32 0.0, %v2464
        %v2466 = vpop.f32.mrf.mxu0
        %2467 = vdwg.mxu0
        %v2468 = vadd.f32 %v2298, %v2438
        %v2469 = vadd.f32 %v2299, %v2441
        %v2470 = vadd.f32 %v2300, %v2446
        %v2471 = vadd.f32 %v2301, %v2449
        %v2472 = vadd.f32 %v2302, %v2454
        %v2473 = vadd.f32 %v2303, %v2457
        %v2474 = vadd.f32 %v2304, %v2462
        %v2475 = vadd.f32 %v2305, %v2465
        %v2476 = vld [vmem:[#allocation9] sm:$0x1]
        %v2478 = vlaneseq
        %v2479 = vshrl.u32 %v2478, 7
        %v2480 = vsub.s32 0, %v2479
        %v2481 = vrot.slane %v2476, %v2480
        %v2483 = vadd.f32 %v2468, %v2481
        %v2484 = vadd.f32 %v2469, %v2481
        %v2485 = vadd.f32 %v2470, %v2481
        %v2486 = vadd.f32 %v2471, %v2481
        %v2487 = vadd.f32 %v2472, %v2481
        %v2488 = vadd.f32 %v2473, %v2481
        %v2489 = vadd.f32 %v2474, %v2481
        %v2490 = vadd.f32 %v2475, %v2481
        %v2491 = vld [vmem:[#allocation10] sm:$0x1]
        %v2492 = vld [vmem:[#allocation12] sm:$0x1]
        %vm2493 = vcmask 523264
        %v2494 = vsel %vm2493, %v2483, 0.0
        %v2495 = vsel %vm2493, %v2484, 0.0
        %v2496 = vadd.f32 %v2494, %v2495
        %v2497 = vsel %vm2493, %v2485, 0.0
        %v2498 = vadd.f32 %v2496, %v2497
        %v2499 = vsel %vm2493, %v2486, 0.0
        %v2500 = vadd.f32 %v2498, %v2499
        %v2501 = vsel %vm2493, %v2487, 0.0
        %v2502 = vadd.f32 %v2500, %v2501
        %v2503 = vsel %vm2493, %v2488, 0.0
        %v2504 = vadd.f32 %v2502, %v2503
        %v2505 = vsel %vm2493, %v2489, 0.0
        %v2506 = vadd.f32 %v2504, %v2505
        %v2507 = vsel %vm2493, %v2490, 0.0
        %v2508 = vadd.f32 %v2506, %v2507
        %v2509 = vrot.slane %v2508, 4
        %v2510 = vadd.f32 %v2508, %v2509
        %v2511 = vrot.slane %v2510, 2
        %v2512 = vadd.f32 %v2510, %v2511
        %v2513 = vrot.slane %v2512, 1
        %v2514 = vadd.f32 %v2512, %v2513
        %v2515 = vmul.f32 %v2483, %v2483
        %v2516 = vmul.f32 %v2484, %v2484
        %v2517 = vmul.f32 %v2485, %v2485
        %v2518 = vmul.f32 %v2486, %v2486
        %v2519 = vmul.f32 %v2487, %v2487
        %v2520 = vmul.f32 %v2488, %v2488
        %v2521 = vmul.f32 %v2489, %v2489
        %v2522 = vmul.f32 %v2490, %v2490
        %v2523 = vsel %vm2493, %v2515, 0.0
        %v2524 = vsel %vm2493, %v2516, 0.0
        %v2525 = vadd.f32 %v2523, %v2524
        %v2526 = vsel %vm2493, %v2517, 0.0
        %v2527 = vadd.f32 %v2525, %v2526
        %v2528 = vsel %vm2493, %v2518, 0.0
        %v2529 = vadd.f32 %v2527, %v2528
        %v2530 = vsel %vm2493, %v2519, 0.0
        %v2531 = vadd.f32 %v2529, %v2530
        %v2532 = vsel %vm2493, %v2520, 0.0
        %v2533 = vadd.f32 %v2531, %v2532
        %v2534 = vsel %vm2493, %v2521, 0.0
        %v2535 = vadd.f32 %v2533, %v2534
        %v2536 = vsel %vm2493, %v2522, 0.0
        %v2537 = vadd.f32 %v2535, %v2536
        %v2538 = vrot.slane %v2537, 4
        %v2539 = vadd.f32 %v2537, %v2538
        %v2540 = vrot.slane %v2539, 2
        %v2541 = vadd.f32 %v2539, %v2540
        %v2542 = vrot.slane %v2541, 1
        %v2543 = vadd.f32 %v2541, %v2542
        %vm2544 = vcmask 1040384
        %v2545 = vsel %vm2544, %v2514, %v2543
        %v2546 = vld [vmem:[#allocation13] sm:$0xff]
        %v2547 = vld [vmem:[#allocation13 + $0x8] sm:$0xff]
        %v2548 = vld [vmem:[#allocation13 + $0x10] sm:$0xff]
        %v2549 = vld [vmem:[#allocation13 + $0x18] sm:$0xff]
        %v2550 = vld [vmem:[#allocation13 + $0x20] sm:$0xff]
        %v2551 = vld [vmem:[#allocation13 + $0x28] sm:$0xff]
        %v2552 = vld [vmem:[#allocation13 + $0x30] sm:$0xff]
        %v2553 = vld [vmem:[#allocation13 + $0x38] sm:$0xff]
        %v2555 = vsel %vm2493, %v2545, 0
        %2557 = vmatprep.subr.mxu0 0.0
        %2558 = vmatpush1.msra.mxu0 0.0
        %2559 = vmatprep.subr.mxu0 0.0
        %2560 = vmatpush1.msra.mxu0 0.0
        %2561 = vmatprep.subr.mxu0 0.0
        %2562 = vmatpush1.msra.mxu0 0.0
        %2563 = vmatprep.subr.mxu0 0.0
        %2564 = vmatpush1.msra.mxu0 0.0
        %2565 = vmatprep.subr.mxu0 0.0
        %2566 = vmatpush1.msra.mxu0 0.0
        %2567 = vmatprep.subr.mxu0 0.0
        %2568 = vmatpush1.msra.mxu0 0.0
        %2569 = vmatprep.subr.mxu0 0.0
        %2570 = vmatpush1.msra.mxu0 0.0
        %2571 = vmatprep.subr.mxu0 0.0
        %2572 = vmatpush1.msra.mxu0 0.0
        %2573 = vmatprep.subr.mxu0 0.0
        %2574 = vmatpush1.msra.mxu0 %v2553
        %2575 = vmatprep.subr.mxu0 0.0
        %2576 = vmatpush1.msra.mxu0 %v2552
        %2577 = vmatprep.subr.mxu0 0.0
        %2578 = vmatpush1.msra.mxu0 %v2551
        %2579 = vmatprep.subr.mxu0 0.0
        %2580 = vmatpush1.msra.mxu0 %v2550
        %2581 = vmatprep.subr.mxu0 0.0
        %2582 = vmatpush1.msra.mxu0 %v2549
        %2583 = vmatprep.subr.mxu0 0.0
        %2584 = vmatpush1.msra.mxu0 %v2548
        %2585 = vmatprep.subr.mxu0 0.0
        %2586 = vmatpush1.msra.mxu0 %v2547
        %2587 = vmatprep.subr.mxu0 0.0
        %2588 = vmatpush1.msra.mxu0 %v2546
        %2589 = vmatprep.subr.mxu0 0.0
        %2590 = vmatpush2.msra.mxu0 0.0
        %2591 = vmatprep.subr.mxu0 0.0
        %2592 = vmatpush2.msra.mxu0 0.0
        %2593 = vmatprep.subr.mxu0 0.0
        %2594 = vmatpush2.msra.mxu0 0.0
        %2595 = vmatprep.subr.mxu0 0.0
        %2596 = vmatpush2.msra.mxu0 0.0
        %2597 = vmatprep.subr.mxu0 0.0
        %2598 = vmatpush2.msra.mxu0 0.0
        %2599 = vmatprep.subr.mxu0 0.0
        %2600 = vmatpush2.msra.mxu0 0.0
        %2601 = vmatprep.subr.mxu0 0.0
        %2602 = vmatpush2.msra.mxu0 0.0
        %2603 = vmatprep.subr.mxu0 0.0
        %2604 = vmatpush2.msra.mxu0 0.0
        %2605 = vmatprep.subr.mxu0 0.0
        %2606 = vmatpush2.msra.mxu0 0.0
        %2607 = vmatprep.subr.mxu0 0.0
        %2608 = vmatpush2.msra.mxu0 0.0
        %2609 = vmatprep.subr.mxu0 0.0
        %2610 = vmatpush2.msra.mxu0 0.0
        %2611 = vmatprep.subr.mxu0 0.0
        %2612 = vmatpush2.msra.mxu0 0.0
        %2613 = vmatprep.subr.mxu0 0.0
        %2614 = vmatpush2.msra.mxu0 0.0
        %2615 = vmatprep.subr.mxu0 0.0
        %2616 = vmatpush2.msra.mxu0 0.0
        %2617 = vmatprep.subr.mxu0 0.0
        %2618 = vmatpush2.msra.mxu0 0.0
        %2619 = vmatprep.subr.mxu0 0.0
        %2620 = vmatpush2.msra.mxu0 0.0
        %2621 = vmatprep.mubr.f32.mxu0 0.0
        %2622 = vmatmul.mubr.f32.gmra.mxu0 %v2555
        %v2623 = vpop.f32.mrf.mxu0
        %v2624 = vadd.f32 0.0, %v2623
        %v2625 = vpop.f32.mrf.mxu0
        %2626 = vdwg.mxu0
        %v2627 = vmul.f32 %v2624, %v2624
        %v2629 = vrot.slane %v2627, 7
        %v2631 = vsub.f32 %v2624, %v2629
        %v2632 = vadd.f32 %v2631, 1e-05
        %v2633 = vrsqrt.pop %v2632
        %v2635 = vlaneseq
        %v2636 = vshrl.u32 %v2635, 7
        %v2637 = vsub.s32 0, %v2636
        %v2638 = vrot.slane %v2491, %v2637
        %v2640 = vmul.f32 %v2633, %v2638
        %v2642 = vrot.slane %v2640, 1
        %v2644 = vmul.f32 %v2624, %v2642
        %v2645 = vsub.f32 %v2492, %v2644
        %v2646 = vlaneseq
        %v2647 = vshrl.u32 %v2646, 7
        %v2648 = vsub.s32 1, %v2647
        %v2649 = vrot.slane %v2640, %v2648
        %v2650 = vmul.f32 %v2483, %v2649
        %v2651 = vmul.f32 %v2484, %v2649
        %v2652 = vmul.f32 %v2485, %v2649
        %v2653 = vmul.f32 %v2486, %v2649
        %v2654 = vmul.f32 %v2487, %v2649
        %v2655 = vmul.f32 %v2488, %v2649
        %v2656 = vmul.f32 %v2489, %v2649
        %v2657 = vmul.f32 %v2490, %v2649
        %v2659 = vlaneseq
        %v2660 = vshrl.u32 %v2659, 7
        %v2661 = vsub.s32 0, %v2660
        %v2662 = vrot.slane %v2645, %v2661
        %v2664 = vadd.f32 %v2650, %v2662
        %v2665 = vadd.f32 %v2651, %v2662
        %v2666 = vadd.f32 %v2652, %v2662
        %v2667 = vadd.f32 %v2653, %v2662
        %v2668 = vadd.f32 %v2654, %v2662
        %v2669 = vadd.f32 %v2655, %v2662
        %v2670 = vadd.f32 %v2656, %v2662
        %v2671 = vadd.f32 %v2657, %v2662
        %vm2672 = vcmask 519168
        %2673 = vst.msk [vmem:[#allocation3] sm:$0xf] %vm2672, 0
        %vm2674 = vcmask 516096
        %2675 = vst.msk [vmem:[#allocation3 + $0x4] sm:$0x1] %vm2674, 0
        %2676 = vst.msk [vmem:[#allocation3 + $0x8] sm:$0xf] %vm2672, 0
        %2677 = vst.msk [vmem:[#allocation3 + $0xc] sm:$0x1] %vm2674, 0
        %2678 = vst.msk [vmem:[#allocation3 + $0x10] sm:$0xf] %vm2672, 0
        %2679 = vst.msk [vmem:[#allocation3 + $0x14] sm:$0x1] %vm2674, 0
        %2680 = vst.msk [vmem:[#allocation3 + $0x18] sm:$0xf] %vm2672, 0
        %2681 = vst.msk [vmem:[#allocation3 + $0x1c] sm:$0x1] %vm2674, 0
        %2682 = vst.msk [vmem:[#allocation3 + $0x20] sm:$0xf] %vm2672, 0
        %2683 = vst.msk [vmem:[#allocation3 + $0x24] sm:$0x1] %vm2674, 0
        %2684 = vst.msk [vmem:[#allocation3 + $0x28] sm:$0xf] %vm2672, 0
        %2685 = vst.msk [vmem:[#allocation3 + $0x2c] sm:$0x1] %vm2674, 0
        %2686 = vst.msk [vmem:[#allocation3 + $0x30] sm:$0xf] %vm2672, 0
        %2687 = vst.msk [vmem:[#allocation3 + $0x34] sm:$0x1] %vm2674, 0
        %2688 = vst.msk [vmem:[#allocation3 + $0x38] sm:$0xf] %vm2672, 0
        %2689 = vst.msk [vmem:[#allocation3 + $0x3c] sm:$0x1] %vm2674, 0
        %2690 = vst.msk [vmem:[#allocation3 + $0x40] sm:$0xf] %vm2672, 0
        %2691 = vst.msk [vmem:[#allocation3 + $0x44] sm:$0x1] %vm2674, 0
        %2692 = vst.msk [vmem:[#allocation3 + $0x48] sm:$0xf] %vm2672, 0
        %2693 = vst.msk [vmem:[#allocation3 + $0x4c] sm:$0x1] %vm2674, 0
        %v2694 = vpack.c.bf16 %v2664, %v2664
        %v2695 = vpack.c.bf16 %v2665, %v2665
        %v2696 = vpack.c.bf16 %v2666, %v2666
        %v2697 = vpack.c.bf16 %v2667, %v2667
        %v2698 = vpack.c.bf16 %v2668, %v2668
        %v2699 = vpack.c.bf16 %v2669, %v2669
        %v2700 = vpack.c.bf16 %v2670, %v2670
        %v2701 = vpack.c.bf16 %v2671, %v2671
        %v2710 = vunpack.c.l.b16 %v2694
        %v2711 = vunpack.c.l.b16 %v2695
        %v2712 = vunpack.c.l.b16 %v2696
        %v2713 = vunpack.c.l.b16 %v2697
        %v2714 = vunpack.c.l.b16 %v2698
        %v2715 = vunpack.c.l.b16 %v2699
        %v2716 = vunpack.c.l.b16 %v2700
        %v2717 = vunpack.c.l.b16 %v2701
        %v2718 = vpack.c.b16 %v2710, %v2710
        %v2719 = vpack.c.b16 %v2711, %v2711
        %v2720 = vpack.c.b16 %v2712, %v2712
        %v2721 = vpack.c.b16 %v2713, %v2713
        %v2722 = vpack.c.b16 %v2714, %v2714
        %v2723 = vpack.c.b16 %v2715, %v2715
        %v2724 = vpack.c.b16 %v2716, %v2716
        %v2725 = vpack.c.b16 %v2717, %v2717
        %v2727 = vshrl.u32 %v2718, 16
        %v2729 = vrot.slane %v2727, 7
        %v2730 = vshll.u32 %v2718, 16
        %v2732 = vor.u32 %v2729, %v2730
        %v2733 = vrot.slane %v2729, 4
        %v2735 = vshrl.u32 %v2719, 16
        %v2737 = vrot.slane %v2735, 7
        %v2738 = vshll.u32 %v2719, 16
        %v2740 = vor.u32 %v2737, %v2738
        %v2741 = vrot.slane %v2737, 4
        %v2743 = vshrl.u32 %v2720, 16
        %v2745 = vrot.slane %v2743, 7
        %v2746 = vshll.u32 %v2720, 16
        %v2748 = vor.u32 %v2745, %v2746
        %v2749 = vrot.slane %v2745, 4
        %v2751 = vshrl.u32 %v2721, 16
        %v2753 = vrot.slane %v2751, 7
        %v2754 = vshll.u32 %v2721, 16
        %v2756 = vor.u32 %v2753, %v2754
        %v2757 = vrot.slane %v2753, 4
        %v2759 = vshrl.u32 %v2722, 16
        %v2761 = vrot.slane %v2759, 7
        %v2762 = vshll.u32 %v2722, 16
        %v2764 = vor.u32 %v2761, %v2762
        %v2765 = vrot.slane %v2761, 4
        %v2767 = vshrl.u32 %v2723, 16
        %v2769 = vrot.slane %v2767, 7
        %v2770 = vshll.u32 %v2723, 16
        %v2772 = vor.u32 %v2769, %v2770
        %v2773 = vrot.slane %v2769, 4
        %v2775 = vshrl.u32 %v2724, 16
        %v2777 = vrot.slane %v2775, 7
        %v2778 = vshll.u32 %v2724, 16
        %v2780 = vor.u32 %v2777, %v2778
        %v2781 = vrot.slane %v2777, 4
        %v2783 = vshrl.u32 %v2725, 16
        %v2785 = vrot.slane %v2783, 7
        %v2786 = vshll.u32 %v2725, 16
        %v2788 = vor.u32 %v2785, %v2786
        %v2789 = vrot.slane %v2785, 4
        %s2806 = scalar_lea.vmem [#allocation3], 8
        %vm2807 = vcmask 519168
        %vm2808 = vmand %vm2807, %vm815
        %v2809 = vld [vmem:[%s2806] sm:$0xf]
        %v2810 = vsel %vm2808, %v2732, %v2809
        %2811 = vst [vmem:[%s2806] sm:$0xf] %v2810
        %vm2812 = vcmask 516096
        %vm2813 = vmand %vm2812, %vm821
        %v2814 = vld [vmem:[%s2806 + $0x4] sm:$0x1]
        %v2815 = vsel %vm2813, %v2733, %v2814
        %2816 = vst [vmem:[%s2806 + $0x4] sm:$0x1] %v2815
        %v2817 = vld [vmem:[%s2806 + $0x8] sm:$0xf]
        %v2818 = vsel %vm2808, %v2740, %v2817
        %2819 = vst [vmem:[%s2806 + $0x8] sm:$0xf] %v2818
        %v2820 = vld [vmem:[%s2806 + $0xc] sm:$0x1]
        %v2821 = vsel %vm2813, %v2741, %v2820
        %2822 = vst [vmem:[%s2806 + $0xc] sm:$0x1] %v2821
        %v2823 = vld [vmem:[%s2806 + $0x10] sm:$0xf]
        %v2824 = vsel %vm2808, %v2748, %v2823
        %2825 = vst [vmem:[%s2806 + $0x10] sm:$0xf] %v2824
        %v2826 = vld [vmem:[%s2806 + $0x14] sm:$0x1]
        %v2827 = vsel %vm2813, %v2749, %v2826
        %2828 = vst [vmem:[%s2806 + $0x14] sm:$0x1] %v2827
        %v2829 = vld [vmem:[%s2806 + $0x18] sm:$0xf]
        %v2830 = vsel %vm2808, %v2756, %v2829
        %2831 = vst [vmem:[%s2806 + $0x18] sm:$0xf] %v2830
        %v2832 = vld [vmem:[%s2806 + $0x1c] sm:$0x1]
        %v2833 = vsel %vm2813, %v2757, %v2832
        %2834 = vst [vmem:[%s2806 + $0x1c] sm:$0x1] %v2833
        %v2835 = vld [vmem:[%s2806 + $0x20] sm:$0xf]
        %v2836 = vsel %vm2808, %v2764, %v2835
        %2837 = vst [vmem:[%s2806 + $0x20] sm:$0xf] %v2836
        %v2838 = vld [vmem:[%s2806 + $0x24] sm:$0x1]
        %v2839 = vsel %vm2813, %v2765, %v2838
        %2840 = vst [vmem:[%s2806 + $0x24] sm:$0x1] %v2839
        %v2841 = vld [vmem:[%s2806 + $0x28] sm:$0xf]
        %v2842 = vsel %vm2808, %v2772, %v2841
        %2843 = vst [vmem:[%s2806 + $0x28] sm:$0xf] %v2842
        %v2844 = vld [vmem:[%s2806 + $0x2c] sm:$0x1]
        %v2845 = vsel %vm2813, %v2773, %v2844
        %2846 = vst [vmem:[%s2806 + $0x2c] sm:$0x1] %v2845
        %v2847 = vld [vmem:[%s2806 + $0x30] sm:$0xf]
        %v2848 = vsel %vm2808, %v2780, %v2847
        %2849 = vst [vmem:[%s2806 + $0x30] sm:$0xf] %v2848
        %v2850 = vld [vmem:[%s2806 + $0x34] sm:$0x1]
        %v2851 = vsel %vm2813, %v2781, %v2850
        %2852 = vst [vmem:[%s2806 + $0x34] sm:$0x1] %v2851
        %v2853 = vld [vmem:[%s2806 + $0x38] sm:$0xf]
        %v2854 = vsel %vm2808, %v2788, %v2853
        %2855 = vst [vmem:[%s2806 + $0x38] sm:$0xf] %v2854
        %v2856 = vld [vmem:[%s2806 + $0x3c] sm:$0x1]
        %v2857 = vsel %vm2813, %v2789, %v2856
        %2858 = vst [vmem:[%s2806 + $0x3c] sm:$0x1] %v2857
        %v2859 = vld [vmem:[#allocation3] sm:$0xf]
        %v2860 = vld [vmem:[#allocation3 + $0x8] sm:$0xf]
        %v2861 = vld [vmem:[#allocation3 + $0x10] sm:$0xf]
        %v2862 = vld [vmem:[#allocation3 + $0x18] sm:$0xf]
        %v2863 = vld [vmem:[#allocation3 + $0x20] sm:$0xf]
        %v2864 = vld [vmem:[#allocation3 + $0x28] sm:$0xf]
        %v2865 = vld [vmem:[#allocation3 + $0x30] sm:$0xf]
        %v2866 = vld [vmem:[#allocation3 + $0x38] sm:$0xf]
        %v2867 = vld [vmem:[#allocation15] sm:$0xf]
        %v2868 = vld [vmem:[#allocation15 + $0x4] sm:$0xf]
        %v2869 = vld [vmem:[#allocation15 + $0x8] sm:$0xf]
        %v2870 = vld [vmem:[#allocation15 + $0xc] sm:$0xf]
        %v2871 = vld [vmem:[#allocation15 + $0x10] sm:$0xf]
        %v2872 = vld [vmem:[#allocation15 + $0x14] sm:$0xf]
        %v2873 = vld [vmem:[#allocation15 + $0x18] sm:$0xf]
        %v2874 = vld [vmem:[#allocation15 + $0x1c] sm:$0xf]
        %v2875 = vld [vmem:[#allocation3 + $0x4] sm:$0x1]
        %v2876 = vld [vmem:[#allocation3 + $0xc] sm:$0x1]
        %v2877 = vld [vmem:[#allocation3 + $0x14] sm:$0x1]
        %v2878 = vld [vmem:[#allocation3 + $0x1c] sm:$0x1]
        %v2879 = vld [vmem:[#allocation3 + $0x24] sm:$0x1]
        %v2880 = vld [vmem:[#allocation3 + $0x2c] sm:$0x1]
        %v2881 = vld [vmem:[#allocation3 + $0x34] sm:$0x1]
        %v2882 = vld [vmem:[#allocation3 + $0x3c] sm:$0x1]
        %v2884 = vshrl.u32 %v2859, 16
        %v2886 = vrot.slane %v2884, 4
        %v2887 = vshll.u32 %v2859, 16
        %v2889 = vrot.slane %v2887, 5
        %v2890 = vor.u32 %v2886, %v2889
        %v2891 = vrot.slane %v2890, 4
        %v2893 = vshll.u32 %v2875, 16
        %v2895 = vrot.slane %v2893, 5
        %v2896 = vsel %vm890, %v2891, %v2895
        %v2898 = vshrl.u32 %v2860, 16
        %v2900 = vrot.slane %v2898, 4
        %v2901 = vshll.u32 %v2860, 16
        %v2903 = vrot.slane %v2901, 5
        %v2904 = vor.u32 %v2900, %v2903
        %v2905 = vrot.slane %v2904, 4
        %v2907 = vshll.u32 %v2876, 16
        %v2909 = vrot.slane %v2907, 5
        %v2910 = vsel %vm890, %v2905, %v2909
        %v2912 = vshrl.u32 %v2861, 16
        %v2914 = vrot.slane %v2912, 4
        %v2915 = vshll.u32 %v2861, 16
        %v2917 = vrot.slane %v2915, 5
        %v2918 = vor.u32 %v2914, %v2917
        %v2919 = vrot.slane %v2918, 4
        %v2921 = vshll.u32 %v2877, 16
        %v2923 = vrot.slane %v2921, 5
        %v2924 = vsel %vm890, %v2919, %v2923
        %v2926 = vshrl.u32 %v2862, 16
        %v2928 = vrot.slane %v2926, 4
        %v2929 = vshll.u32 %v2862, 16
        %v2931 = vrot.slane %v2929, 5
        %v2932 = vor.u32 %v2928, %v2931
        %v2933 = vrot.slane %v2932, 4
        %v2935 = vshll.u32 %v2878, 16
        %v2937 = vrot.slane %v2935, 5
        %v2938 = vsel %vm890, %v2933, %v2937
        %v2940 = vshrl.u32 %v2863, 16
        %v2942 = vrot.slane %v2940, 4
        %v2943 = vshll.u32 %v2863, 16
        %v2945 = vrot.slane %v2943, 5
        %v2946 = vor.u32 %v2942, %v2945
        %v2947 = vrot.slane %v2946, 4
        %v2949 = vshll.u32 %v2879, 16
        %v2951 = vrot.slane %v2949, 5
        %v2952 = vsel %vm890, %v2947, %v2951
        %v2954 = vshrl.u32 %v2864, 16
        %v2956 = vrot.slane %v2954, 4
        %v2957 = vshll.u32 %v2864, 16
        %v2959 = vrot.slane %v2957, 5
        %v2960 = vor.u32 %v2956, %v2959
        %v2961 = vrot.slane %v2960, 4
        %v2963 = vshll.u32 %v2880, 16
        %v2965 = vrot.slane %v2963, 5
        %v2966 = vsel %vm890, %v2961, %v2965
        %v2968 = vshrl.u32 %v2865, 16
        %v2970 = vrot.slane %v2968, 4
        %v2971 = vshll.u32 %v2865, 16
        %v2973 = vrot.slane %v2971, 5
        %v2974 = vor.u32 %v2970, %v2973
        %v2975 = vrot.slane %v2974, 4
        %v2977 = vshll.u32 %v2881, 16
        %v2979 = vrot.slane %v2977, 5
        %v2980 = vsel %vm890, %v2975, %v2979
        %v2982 = vshrl.u32 %v2866, 16
        %v2984 = vrot.slane %v2982, 4
        %v2985 = vshll.u32 %v2866, 16
        %v2987 = vrot.slane %v2985, 5
        %v2988 = vor.u32 %v2984, %v2987
        %v2989 = vrot.slane %v2988, 4
        %v2991 = vshll.u32 %v2882, 16
        %v2993 = vrot.slane %v2991, 5
        %v2994 = vsel %vm890, %v2989, %v2993
        %s2995 = scalar_lea.vmem [#allocation15], 32
        %v2996 = vld [vmem:[%s2995] sm:$0xf]
        %v2997 = vld [vmem:[%s2995 + $0x4] sm:$0xf]
        %v2998 = vld [vmem:[%s2995 + $0x8] sm:$0xf]
        %v2999 = vld [vmem:[%s2995 + $0xc] sm:$0xf]
        %v3000 = vld [vmem:[%s2995 + $0x10] sm:$0xf]
        %v3001 = vld [vmem:[%s2995 + $0x14] sm:$0xf]
        %v3002 = vld [vmem:[%s2995 + $0x18] sm:$0xf]
        %v3003 = vld [vmem:[%s2995 + $0x1c] sm:$0xf]
        %v3004 = vunpack.c.l.b16 %v2896
        %v3005 = vunpack.c.l.b16 %v2910
        %v3006 = vunpack.c.l.b16 %v2924
        %v3007 = vunpack.c.l.b16 %v2938
        %v3008 = vunpack.c.l.b16 %v2952
        %v3009 = vunpack.c.l.b16 %v2966
        %v3010 = vunpack.c.l.b16 %v2980
        %v3011 = vunpack.c.l.b16 %v2994
        %v3012 = vpack.c.b16 %v3005, %v3004
        %v3013 = vpack.c.b16 %v3007, %v3006
        %v3014 = vpack.c.b16 %v3009, %v3008
        %v3015 = vpack.c.b16 %v3011, %v3010
        %v3024 = vunpack.c.l.b16 %v2996
        %v3025 = vunpack.c.l.b16 %v2997
        %v3026 = vunpack.c.l.b16 %v2998
        %v3027 = vunpack.c.l.b16 %v2999
        %v3028 = vunpack.c.l.b16 %v3000
        %v3029 = vunpack.c.l.b16 %v3001
        %v3030 = vunpack.c.l.b16 %v3002
        %v3031 = vunpack.c.l.b16 %v3003
        %v3032 = vpack.c.b16 %v3025, %v3024
        %v3033 = vpack.c.b16 %v3027, %v3026
        %v3034 = vpack.c.b16 %v3029, %v3028
        %v3035 = vpack.c.b16 %v3031, %v3030
        %v3041 = vsel %vm2493, %v3012, 0
        %v3044 = vsel %vm2493, %v3013, 0
        %v3047 = vsel %vm2493, %v3014, 0
        %v3050 = vsel %vm2493, %v3015, 0
        %3052 = vmatprep.subr.bf16.mxu0 0
        %3053 = vmatpush1.bf16.msra.mxu0 0
        %3054 = vmatprep.subr.bf16.mxu0 0
        %3055 = vmatpush1.bf16.msra.mxu0 0
        %3056 = vmatprep.subr.bf16.mxu0 0
        %3057 = vmatpush1.bf16.msra.mxu0 0
        %3058 = vmatprep.subr.bf16.mxu0 0
        %3059 = vmatpush1.bf16.msra.mxu0 0
        %3060 = vmatprep.subr.bf16.mxu0 0
        %3061 = vmatpush1.bf16.msra.mxu0 %v3035
        %3062 = vmatprep.subr.bf16.mxu0 0
        %3063 = vmatpush1.bf16.msra.mxu0 %v3034
        %3064 = vmatprep.subr.bf16.mxu0 0
        %3065 = vmatpush1.bf16.msra.mxu0 %v3033
        %3066 = vmatprep.subr.bf16.mxu0 0
        %3067 = vmatpush1.bf16.msra.mxu0 %v3032
        %3068 = vmatprep.subr.bf16.mxu0 0
        %3069 = vmatpush2.bf16.msra.mxu0 0
        %3070 = vmatprep.subr.bf16.mxu0 0
        %3071 = vmatpush2.bf16.msra.mxu0 0
        %3072 = vmatprep.subr.bf16.mxu0 0
        %3073 = vmatpush2.bf16.msra.mxu0 0
        %3074 = vmatprep.subr.bf16.mxu0 0
        %3075 = vmatpush2.bf16.msra.mxu0 0
        %3076 = vmatprep.subr.bf16.mxu0 0
        %3077 = vmatpush2.bf16.msra.mxu0 0
        %3078 = vmatprep.subr.bf16.mxu0 0
        %3079 = vmatpush2.bf16.msra.mxu0 0
        %3080 = vmatprep.subr.bf16.mxu0 0
        %3081 = vmatpush2.bf16.msra.mxu0 0
        %3082 = vmatprep.subr.bf16.mxu0 0
        %3083 = vmatpush2.bf16.msra.mxu0 0
        %3084 = vmatprep.mubr.bf16.mxu0 0
        %3085 = vmatmul.mubr.bf16.gmra.mxu0 %v3041
        %v3086 = vpop.f32.mrf.mxu0
        %v3087 = vadd.f32 0.0, %v3086
        %v3088 = vpop.f32.mrf.mxu0
        %v3089 = vpop.f32.mrf.mxu0
        %v3090 = vadd.f32 0.0, %v3089
        %v3091 = vpop.f32.mrf.mxu0
        %3092 = vmatprep.mubr.bf16.mxu0 0
        %3093 = vmatmul.mubr.bf16.gmra.mxu0 %v3044
        %v3094 = vpop.f32.mrf.mxu0
        %v3095 = vadd.f32 0.0, %v3094
        %v3096 = vpop.f32.mrf.mxu0
        %v3097 = vpop.f32.mrf.mxu0
        %v3098 = vadd.f32 0.0, %v3097
        %v3099 = vpop.f32.mrf.mxu0
        %3100 = vmatprep.mubr.bf16.mxu0 0
        %3101 = vmatmul.mubr.bf16.gmra.mxu0 %v3047
        %v3102 = vpop.f32.mrf.mxu0
        %v3103 = vadd.f32 0.0, %v3102
        %v3104 = vpop.f32.mrf.mxu0
        %v3105 = vpop.f32.mrf.mxu0
        %v3106 = vadd.f32 0.0, %v3105
        %v3107 = vpop.f32.mrf.mxu0
        %3108 = vmatprep.mubr.bf16.mxu0 0
        %3109 = vmatmul.mubr.bf16.gmra.mxu0 %v3050
        %v3110 = vpop.f32.mrf.mxu0
        %v3111 = vadd.f32 0.0, %v3110
        %v3112 = vpop.f32.mrf.mxu0
        %v3113 = vpop.f32.mrf.mxu0
        %v3114 = vadd.f32 0.0, %v3113
        %v3115 = vpop.f32.mrf.mxu0
        %3116 = vdwg.mxu0
        %v3125 = vunpack.c.l.b16 %v2859
        %v3126 = vunpack.c.l.b16 %v2860
        %v3127 = vunpack.c.l.b16 %v2861
        %v3128 = vunpack.c.l.b16 %v2862
        %v3129 = vunpack.c.l.b16 %v2863
        %v3130 = vunpack.c.l.b16 %v2864
        %v3131 = vunpack.c.l.b16 %v2865
        %v3132 = vunpack.c.l.b16 %v2866
        %v3133 = vpack.c.b16 %v3126, %v3125
        %v3134 = vpack.c.b16 %v3128, %v3127
        %v3135 = vpack.c.b16 %v3130, %v3129
        %v3136 = vpack.c.b16 %v3132, %v3131
        %v3145 = vunpack.c.l.b16 %v2867
        %v3146 = vunpack.c.l.b16 %v2868
        %v3147 = vunpack.c.l.b16 %v2869
        %v3148 = vunpack.c.l.b16 %v2870
        %v3149 = vunpack.c.l.b16 %v2871
        %v3150 = vunpack.c.l.b16 %v2872
        %v3151 = vunpack.c.l.b16 %v2873
        %v3152 = vunpack.c.l.b16 %v2874
        %v3153 = vpack.c.b16 %v3146, %v3145
        %v3154 = vpack.c.b16 %v3148, %v3147
        %v3155 = vpack.c.b16 %v3150, %v3149
        %v3156 = vpack.c.b16 %v3152, %v3151
        %v3162 = vsel %vm2493, %v3133, 0
        %v3165 = vsel %vm2493, %v3134, 0
        %v3168 = vsel %vm2493, %v3135, 0
        %v3171 = vsel %vm2493, %v3136, 0
        %3173 = vmatprep.subr.bf16.mxu0 0
        %3174 = vmatpush1.bf16.msra.mxu0 0
        %3175 = vmatprep.subr.bf16.mxu0 0
        %3176 = vmatpush1.bf16.msra.mxu0 0
        %3177 = vmatprep.subr.bf16.mxu0 0
        %3178 = vmatpush1.bf16.msra.mxu0 0
        %3179 = vmatprep.subr.bf16.mxu0 0
        %3180 = vmatpush1.bf16.msra.mxu0 0
        %3181 = vmatprep.subr.bf16.mxu0 0
        %3182 = vmatpush1.bf16.msra.mxu0 %v3156
        %3183 = vmatprep.subr.bf16.mxu0 0
        %3184 = vmatpush1.bf16.msra.mxu0 %v3155
        %3185 = vmatprep.subr.bf16.mxu0 0
        %3186 = vmatpush1.bf16.msra.mxu0 %v3154
        %3187 = vmatprep.subr.bf16.mxu0 0
        %3188 = vmatpush1.bf16.msra.mxu0 %v3153
        %3189 = vmatprep.subr.bf16.mxu0 0
        %3190 = vmatpush2.bf16.msra.mxu0 0
        %3191 = vmatprep.subr.bf16.mxu0 0
        %3192 = vmatpush2.bf16.msra.mxu0 0
        %3193 = vmatprep.subr.bf16.mxu0 0
        %3194 = vmatpush2.bf16.msra.mxu0 0
        %3195 = vmatprep.subr.bf16.mxu0 0
        %3196 = vmatpush2.bf16.msra.mxu0 0
        %3197 = vmatprep.subr.bf16.mxu0 0
        %3198 = vmatpush2.bf16.msra.mxu0 0
        %3199 = vmatprep.subr.bf16.mxu0 0
        %3200 = vmatpush2.bf16.msra.mxu0 0
        %3201 = vmatprep.subr.bf16.mxu0 0
        %3202 = vmatpush2.bf16.msra.mxu0 0
        %3203 = vmatprep.subr.bf16.mxu0 0
        %3204 = vmatpush2.bf16.msra.mxu0 0
        %3205 = vmatprep.mubr.bf16.mxu0 0
        %3206 = vmatmul.mubr.bf16.gmra.mxu0 %v3162
        %v3207 = vpop.f32.mrf.mxu0
        %v3208 = vadd.f32 %v3087, %v3207
        %v3209 = vpop.f32.mrf.mxu0
        %v3210 = vpop.f32.mrf.mxu0
        %v3211 = vadd.f32 %v3090, %v3210
        %v3212 = vpop.f32.mrf.mxu0
        %3213 = vmatprep.mubr.bf16.mxu0 0
        %3214 = vmatmul.mubr.bf16.gmra.mxu0 %v3165
        %v3215 = vpop.f32.mrf.mxu0
        %v3216 = vadd.f32 %v3095, %v3215
        %v3217 = vpop.f32.mrf.mxu0
        %v3218 = vpop.f32.mrf.mxu0
        %v3219 = vadd.f32 %v3098, %v3218
        %v3220 = vpop.f32.mrf.mxu0
        %3221 = vmatprep.mubr.bf16.mxu0 0
        %3222 = vmatmul.mubr.bf16.gmra.mxu0 %v3168
        %v3223 = vpop.f32.mrf.mxu0
        %v3224 = vadd.f32 %v3103, %v3223
        %v3225 = vpop.f32.mrf.mxu0
        %v3226 = vpop.f32.mrf.mxu0
        %v3227 = vadd.f32 %v3106, %v3226
        %v3228 = vpop.f32.mrf.mxu0
        %3229 = vmatprep.mubr.bf16.mxu0 0
        %3230 = vmatmul.mubr.bf16.gmra.mxu0 %v3171
        %v3231 = vpop.f32.mrf.mxu0
        %v3232 = vadd.f32 %v3111, %v3231
        %v3233 = vpop.f32.mrf.mxu0
        %v3234 = vpop.f32.mrf.mxu0
        %v3235 = vadd.f32 %v3114, %v3234
        %v3236 = vpop.f32.mrf.mxu0
        %3237 = vdwg.mxu0
        %v3238 = vld [vmem:[#allocation3] sm:$0xe]
        %v3239 = vld [vmem:[#allocation3 + $0x8] sm:$0xe]
        %v3240 = vld [vmem:[#allocation3 + $0x10] sm:$0xe]
        %v3241 = vld [vmem:[#allocation3 + $0x18] sm:$0xe]
        %v3242 = vld [vmem:[#allocation3 + $0x20] sm:$0xe]
        %v3243 = vld [vmem:[#allocation3 + $0x28] sm:$0xe]
        %v3244 = vld [vmem:[#allocation3 + $0x30] sm:$0xe]
        %v3245 = vld [vmem:[#allocation3 + $0x38] sm:$0xe]
        %v3262 = vrot.slane %v3238, 5
        %v3263 = vrot.slane %v3262, 4
        %v3264 = vrot.slane %v2875, 5
        %v3265 = vsel %vm1244, %v3263, %v3264
        %v3266 = vrot.slane %v3239, 5
        %v3267 = vrot.slane %v3266, 4
        %v3268 = vrot.slane %v2876, 5
        %v3269 = vsel %vm1244, %v3267, %v3268
        %v3270 = vrot.slane %v3240, 5
        %v3271 = vrot.slane %v3270, 4
        %v3272 = vrot.slane %v2877, 5
        %v3273 = vsel %vm1244, %v3271, %v3272
        %v3274 = vrot.slane %v3241, 5
        %v3275 = vrot.slane %v3274, 4
        %v3276 = vrot.slane %v2878, 5
        %v3277 = vsel %vm1244, %v3275, %v3276
        %v3278 = vrot.slane %v3242, 5
        %v3279 = vrot.slane %v3278, 4
        %v3280 = vrot.slane %v2879, 5
        %v3281 = vsel %vm1244, %v3279, %v3280
        %v3282 = vrot.slane %v3243, 5
        %v3283 = vrot.slane %v3282, 4
        %v3284 = vrot.slane %v2880, 5
        %v3285 = vsel %vm1244, %v3283, %v3284
        %v3286 = vrot.slane %v3244, 5
        %v3287 = vrot.slane %v3286, 4
        %v3288 = vrot.slane %v2881, 5
        %v3289 = vsel %vm1244, %v3287, %v3288
        %v3290 = vrot.slane %v3245, 5
        %v3291 = vrot.slane %v3290, 4
        %v3292 = vrot.slane %v2882, 5
        %v3293 = vsel %vm1244, %v3291, %v3292
        %s3294 = scalar_lea.vmem [#allocation15], 64
        %v3295 = vld [vmem:[%s3294] sm:$0xf]
        %v3296 = vld [vmem:[%s3294 + $0x4] sm:$0xf]
        %v3297 = vld [vmem:[%s3294 + $0x8] sm:$0xf]
        %v3298 = vld [vmem:[%s3294 + $0xc] sm:$0xf]
        %v3299 = vld [vmem:[%s3294 + $0x10] sm:$0xf]
        %v3300 = vld [vmem:[%s3294 + $0x14] sm:$0xf]
        %v3301 = vld [vmem:[%s3294 + $0x18] sm:$0xf]
        %v3302 = vld [vmem:[%s3294 + $0x1c] sm:$0xf]
        %v3303 = vunpack.c.l.b16 %v3265
        %v3304 = vunpack.c.l.b16 %v3269
        %v3305 = vunpack.c.l.b16 %v3273
        %v3306 = vunpack.c.l.b16 %v3277
        %v3307 = vunpack.c.l.b16 %v3281
        %v3308 = vunpack.c.l.b16 %v3285
        %v3309 = vunpack.c.l.b16 %v3289
        %v3310 = vunpack.c.l.b16 %v3293
        %v3311 = vpack.c.b16 %v3304, %v3303
        %v3312 = vpack.c.b16 %v3306, %v3305
        %v3313 = vpack.c.b16 %v3308, %v3307
        %v3314 = vpack.c.b16 %v3310, %v3309
        %v3323 = vunpack.c.l.b16 %v3295
        %v3324 = vunpack.c.l.b16 %v3296
        %v3325 = vunpack.c.l.b16 %v3297
        %v3326 = vunpack.c.l.b16 %v3298
        %v3327 = vunpack.c.l.b16 %v3299
        %v3328 = vunpack.c.l.b16 %v3300
        %v3329 = vunpack.c.l.b16 %v3301
        %v3330 = vunpack.c.l.b16 %v3302
        %v3331 = vpack.c.b16 %v3324, %v3323
        %v3332 = vpack.c.b16 %v3326, %v3325
        %v3333 = vpack.c.b16 %v3328, %v3327
        %v3334 = vpack.c.b16 %v3330, %v3329
        %v3340 = vsel %vm2493, %v3311, 0
        %v3343 = vsel %vm2493, %v3312, 0
        %v3346 = vsel %vm2493, %v3313, 0
        %v3349 = vsel %vm2493, %v3314, 0
        %3351 = vmatprep.subr.bf16.mxu0 0
        %3352 = vmatpush1.bf16.msra.mxu0 0
        %3353 = vmatprep.subr.bf16.mxu0 0
        %3354 = vmatpush1.bf16.msra.mxu0 0
        %3355 = vmatprep.subr.bf16.mxu0 0
        %3356 = vmatpush1.bf16.msra.mxu0 0
        %3357 = vmatprep.subr.bf16.mxu0 0
        %3358 = vmatpush1.bf16.msra.mxu0 0
        %3359 = vmatprep.subr.bf16.mxu0 0
        %3360 = vmatpush1.bf16.msra.mxu0 %v3334
        %3361 = vmatprep.subr.bf16.mxu0 0
        %3362 = vmatpush1.bf16.msra.mxu0 %v3333
        %3363 = vmatprep.subr.bf16.mxu0 0
        %3364 = vmatpush1.bf16.msra.mxu0 %v3332
        %3365 = vmatprep.subr.bf16.mxu0 0
        %3366 = vmatpush1.bf16.msra.mxu0 %v3331
        %3367 = vmatprep.subr.bf16.mxu0 0
        %3368 = vmatpush2.bf16.msra.mxu0 0
        %3369 = vmatprep.subr.bf16.mxu0 0
        %3370 = vmatpush2.bf16.msra.mxu0 0
        %3371 = vmatprep.subr.bf16.mxu0 0
        %3372 = vmatpush2.bf16.msra.mxu0 0
        %3373 = vmatprep.subr.bf16.mxu0 0
        %3374 = vmatpush2.bf16.msra.mxu0 0
        %3375 = vmatprep.subr.bf16.mxu0 0
        %3376 = vmatpush2.bf16.msra.mxu0 0
        %3377 = vmatprep.subr.bf16.mxu0 0
        %3378 = vmatpush2.bf16.msra.mxu0 0
        %3379 = vmatprep.subr.bf16.mxu0 0
        %3380 = vmatpush2.bf16.msra.mxu0 0
        %3381 = vmatprep.subr.bf16.mxu0 0
        %3382 = vmatpush2.bf16.msra.mxu0 0
        %3383 = vmatprep.mubr.bf16.mxu0 0
        %3384 = vmatmul.mubr.bf16.gmra.mxu0 %v3340
        %v3385 = vpop.f32.mrf.mxu0
        %v3386 = vadd.f32 0.0, %v3385
        %v3387 = vpop.f32.mrf.mxu0
        %v3388 = vpop.f32.mrf.mxu0
        %v3389 = vadd.f32 0.0, %v3388
        %v3390 = vpop.f32.mrf.mxu0
        %3391 = vmatprep.mubr.bf16.mxu0 0
        %3392 = vmatmul.mubr.bf16.gmra.mxu0 %v3343
        %v3393 = vpop.f32.mrf.mxu0
        %v3394 = vadd.f32 0.0, %v3393
        %v3395 = vpop.f32.mrf.mxu0
        %v3396 = vpop.f32.mrf.mxu0
        %v3397 = vadd.f32 0.0, %v3396
        %v3398 = vpop.f32.mrf.mxu0
        %3399 = vmatprep.mubr.bf16.mxu0 0
        %3400 = vmatmul.mubr.bf16.gmra.mxu0 %v3346
        %v3401 = vpop.f32.mrf.mxu0
        %v3402 = vadd.f32 0.0, %v3401
        %v3403 = vpop.f32.mrf.mxu0
        %v3404 = vpop.f32.mrf.mxu0
        %v3405 = vadd.f32 0.0, %v3404
        %v3406 = vpop.f32.mrf.mxu0
        %3407 = vmatprep.mubr.bf16.mxu0 0
        %3408 = vmatmul.mubr.bf16.gmra.mxu0 %v3349
        %v3409 = vpop.f32.mrf.mxu0
        %v3410 = vadd.f32 0.0, %v3409
        %v3411 = vpop.f32.mrf.mxu0
        %v3412 = vpop.f32.mrf.mxu0
        %v3413 = vadd.f32 0.0, %v3412
        %v3414 = vpop.f32.mrf.mxu0
        %3415 = vdwg.mxu0
        %v3416 = vadd.f32 %v3208, %v3386
        %v3417 = vadd.f32 %v3211, %v3389
        %v3418 = vadd.f32 %v3216, %v3394
        %v3419 = vadd.f32 %v3219, %v3397
        %v3420 = vadd.f32 %v3224, %v3402
        %v3421 = vadd.f32 %v3227, %v3405
        %v3422 = vadd.f32 %v3232, %v3410
        %v3423 = vadd.f32 %v3235, %v3413
        %v3424 = vld [vmem:[%s2806] sm:$0xf]
        %v3425 = vld [vmem:[%s2806 + $0x8] sm:$0xf]
        %v3426 = vld [vmem:[%s2806 + $0x10] sm:$0xf]
        %v3427 = vld [vmem:[%s2806 + $0x18] sm:$0xf]
        %v3428 = vld [vmem:[%s2806 + $0x20] sm:$0xf]
        %v3429 = vld [vmem:[%s2806 + $0x28] sm:$0xf]
        %v3430 = vld [vmem:[%s2806 + $0x30] sm:$0xf]
        %v3431 = vld [vmem:[%s2806 + $0x38] sm:$0xf]
        %s3432 = scalar_lea.vmem [#allocation15], 96
        %v3433 = vld [vmem:[%s3432] sm:$0xf]
        %v3434 = vld [vmem:[%s3432 + $0x4] sm:$0xf]
        %v3435 = vld [vmem:[%s3432 + $0x8] sm:$0xf]
        %v3436 = vld [vmem:[%s3432 + $0xc] sm:$0xf]
        %v3437 = vld [vmem:[%s3432 + $0x10] sm:$0xf]
        %v3438 = vld [vmem:[%s3432 + $0x14] sm:$0xf]
        %v3439 = vld [vmem:[%s3432 + $0x18] sm:$0xf]
        %v3440 = vld [vmem:[%s3432 + $0x1c] sm:$0xf]
        %v3449 = vunpack.c.l.b16 %v3424
        %v3450 = vunpack.c.l.b16 %v3425
        %v3451 = vunpack.c.l.b16 %v3426
        %v3452 = vunpack.c.l.b16 %v3427
        %v3453 = vunpack.c.l.b16 %v3428
        %v3454 = vunpack.c.l.b16 %v3429
        %v3455 = vunpack.c.l.b16 %v3430
        %v3456 = vunpack.c.l.b16 %v3431
        %v3457 = vpack.c.b16 %v3450, %v3449
        %v3458 = vpack.c.b16 %v3452, %v3451
        %v3459 = vpack.c.b16 %v3454, %v3453
        %v3460 = vpack.c.b16 %v3456, %v3455
        %v3469 = vunpack.c.l.b16 %v3433
        %v3470 = vunpack.c.l.b16 %v3434
        %v3471 = vunpack.c.l.b16 %v3435
        %v3472 = vunpack.c.l.b16 %v3436
        %v3473 = vunpack.c.l.b16 %v3437
        %v3474 = vunpack.c.l.b16 %v3438
        %v3475 = vunpack.c.l.b16 %v3439
        %v3476 = vunpack.c.l.b16 %v3440
        %v3477 = vpack.c.b16 %v3470, %v3469
        %v3478 = vpack.c.b16 %v3472, %v3471
        %v3479 = vpack.c.b16 %v3474, %v3473
        %v3480 = vpack.c.b16 %v3476, %v3475
        %v3486 = vsel %vm2493, %v3457, 0
        %v3489 = vsel %vm2493, %v3458, 0
        %v3492 = vsel %vm2493, %v3459, 0
        %v3495 = vsel %vm2493, %v3460, 0
        %3497 = vmatprep.subr.bf16.mxu0 0
        %3498 = vmatpush1.bf16.msra.mxu0 0
        %3499 = vmatprep.subr.bf16.mxu0 0
        %3500 = vmatpush1.bf16.msra.mxu0 0
        %3501 = vmatprep.subr.bf16.mxu0 0
        %3502 = vmatpush1.bf16.msra.mxu0 0
        %3503 = vmatprep.subr.bf16.mxu0 0
        %3504 = vmatpush1.bf16.msra.mxu0 0
        %3505 = vmatprep.subr.bf16.mxu0 0
        %3506 = vmatpush1.bf16.msra.mxu0 %v3480
        %3507 = vmatprep.subr.bf16.mxu0 0
        %3508 = vmatpush1.bf16.msra.mxu0 %v3479
        %3509 = vmatprep.subr.bf16.mxu0 0
        %3510 = vmatpush1.bf16.msra.mxu0 %v3478
        %3511 = vmatprep.subr.bf16.mxu0 0
        %3512 = vmatpush1.bf16.msra.mxu0 %v3477
        %3513 = vmatprep.subr.bf16.mxu0 0
        %3514 = vmatpush2.bf16.msra.mxu0 0
        %3515 = vmatprep.subr.bf16.mxu0 0
        %3516 = vmatpush2.bf16.msra.mxu0 0
        %3517 = vmatprep.subr.bf16.mxu0 0
        %3518 = vmatpush2.bf16.msra.mxu0 0
        %3519 = vmatprep.subr.bf16.mxu0 0
        %3520 = vmatpush2.bf16.msra.mxu0 0
        %3521 = vmatprep.subr.bf16.mxu0 0
        %3522 = vmatpush2.bf16.msra.mxu0 0
        %3523 = vmatprep.subr.bf16.mxu0 0
        %3524 = vmatpush2.bf16.msra.mxu0 0
        %3525 = vmatprep.subr.bf16.mxu0 0
        %3526 = vmatpush2.bf16.msra.mxu0 0
        %3527 = vmatprep.subr.bf16.mxu0 0
        %3528 = vmatpush2.bf16.msra.mxu0 0
        %3529 = vmatprep.mubr.bf16.mxu0 0
        %3530 = vmatmul.mubr.bf16.gmra.mxu0 %v3486
        %v3531 = vpop.f32.mrf.mxu0
        %v3532 = vadd.f32 0.0, %v3531
        %v3533 = vpop.f32.mrf.mxu0
        %v3534 = vpop.f32.mrf.mxu0
        %v3535 = vadd.f32 0.0, %v3534
        %v3536 = vpop.f32.mrf.mxu0
        %3537 = vmatprep.mubr.bf16.mxu0 0
        %3538 = vmatmul.mubr.bf16.gmra.mxu0 %v3489
        %v3539 = vpop.f32.mrf.mxu0
        %v3540 = vadd.f32 0.0, %v3539
        %v3541 = vpop.f32.mrf.mxu0
        %v3542 = vpop.f32.mrf.mxu0
        %v3543 = vadd.f32 0.0, %v3542
        %v3544 = vpop.f32.mrf.mxu0
        %3545 = vmatprep.mubr.bf16.mxu0 0
        %3546 = vmatmul.mubr.bf16.gmra.mxu0 %v3492
        %v3547 = vpop.f32.mrf.mxu0
        %v3548 = vadd.f32 0.0, %v3547
        %v3549 = vpop.f32.mrf.mxu0
        %v3550 = vpop.f32.mrf.mxu0
        %v3551 = vadd.f32 0.0, %v3550
        %v3552 = vpop.f32.mrf.mxu0
        %3553 = vmatprep.mubr.bf16.mxu0 0
        %3554 = vmatmul.mubr.bf16.gmra.mxu0 %v3495
        %v3555 = vpop.f32.mrf.mxu0
        %v3556 = vadd.f32 0.0, %v3555
        %v3557 = vpop.f32.mrf.mxu0
        %v3558 = vpop.f32.mrf.mxu0
        %v3559 = vadd.f32 0.0, %v3558
        %v3560 = vpop.f32.mrf.mxu0
        %3561 = vdwg.mxu0
        %v3562 = vadd.f32 %v3416, %v3532
        %v3563 = vadd.f32 %v3417, %v3535
        %v3564 = vadd.f32 %v3418, %v3540
        %v3565 = vadd.f32 %v3419, %v3543
        %v3566 = vadd.f32 %v3420, %v3548
        %v3567 = vadd.f32 %v3421, %v3551
        %v3568 = vadd.f32 %v3422, %v3556
        %v3569 = vadd.f32 %v3423, %v3559
        %v3570 = vld [vmem:[%s2806] sm:$0xf]
        %v3571 = vld [vmem:[%s2806 + $0x4] sm:$0x1]
        %v3572 = vld [vmem:[%s2806 + $0x8] sm:$0xf]
        %v3573 = vld [vmem:[%s2806 + $0xc] sm:$0x1]
        %v3574 = vld [vmem:[%s2806 + $0x10] sm:$0xf]
        %v3575 = vld [vmem:[%s2806 + $0x14] sm:$0x1]
        %v3576 = vld [vmem:[%s2806 + $0x18] sm:$0xf]
        %v3577 = vld [vmem:[%s2806 + $0x1c] sm:$0x1]
        %v3578 = vld [vmem:[%s2806 + $0x20] sm:$0xf]
        %v3579 = vld [vmem:[%s2806 + $0x24] sm:$0x1]
        %v3580 = vld [vmem:[%s2806 + $0x28] sm:$0xf]
        %v3581 = vld [vmem:[%s2806 + $0x2c] sm:$0x1]
        %v3582 = vld [vmem:[%s2806 + $0x30] sm:$0xf]
        %v3583 = vld [vmem:[%s2806 + $0x34] sm:$0x1]
        %v3584 = vld [vmem:[%s2806 + $0x38] sm:$0xf]
        %v3585 = vld [vmem:[%s2806 + $0x3c] sm:$0x1]
        %v3587 = vshrl.u32 %v3570, 16
        %v3589 = vrot.slane %v3587, 4
        %v3590 = vshll.u32 %v3570, 16
        %v3592 = vrot.slane %v3590, 5
        %v3593 = vor.u32 %v3589, %v3592
        %v3594 = vrot.slane %v3593, 4
        %v3596 = vshll.u32 %v3571, 16
        %v3598 = vrot.slane %v3596, 5
        %v3599 = vsel %vm890, %v3594, %v3598
        %v3601 = vshrl.u32 %v3572, 16
        %v3603 = vrot.slane %v3601, 4
        %v3604 = vshll.u32 %v3572, 16
        %v3606 = vrot.slane %v3604, 5
        %v3607 = vor.u32 %v3603, %v3606
        %v3608 = vrot.slane %v3607, 4
        %v3610 = vshll.u32 %v3573, 16
        %v3612 = vrot.slane %v3610, 5
        %v3613 = vsel %vm890, %v3608, %v3612
        %v3615 = vshrl.u32 %v3574, 16
        %v3617 = vrot.slane %v3615, 4
        %v3618 = vshll.u32 %v3574, 16
        %v3620 = vrot.slane %v3618, 5
        %v3621 = vor.u32 %v3617, %v3620
        %v3622 = vrot.slane %v3621, 4
        %v3624 = vshll.u32 %v3575, 16
        %v3626 = vrot.slane %v3624, 5
        %v3627 = vsel %vm890, %v3622, %v3626
        %v3629 = vshrl.u32 %v3576, 16
        %v3631 = vrot.slane %v3629, 4
        %v3632 = vshll.u32 %v3576, 16
        %v3634 = vrot.slane %v3632, 5
        %v3635 = vor.u32 %v3631, %v3634
        %v3636 = vrot.slane %v3635, 4
        %v3638 = vshll.u32 %v3577, 16
        %v3640 = vrot.slane %v3638, 5
        %v3641 = vsel %vm890, %v3636, %v3640
        %v3643 = vshrl.u32 %v3578, 16
        %v3645 = vrot.slane %v3643, 4
        %v3646 = vshll.u32 %v3578, 16
        %v3648 = vrot.slane %v3646, 5
        %v3649 = vor.u32 %v3645, %v3648
        %v3650 = vrot.slane %v3649, 4
        %v3652 = vshll.u32 %v3579, 16
        %v3654 = vrot.slane %v3652, 5
        %v3655 = vsel %vm890, %v3650, %v3654
        %v3657 = vshrl.u32 %v3580, 16
        %v3659 = vrot.slane %v3657, 4
        %v3660 = vshll.u32 %v3580, 16
        %v3662 = vrot.slane %v3660, 5
        %v3663 = vor.u32 %v3659, %v3662
        %v3664 = vrot.slane %v3663, 4
        %v3666 = vshll.u32 %v3581, 16
        %v3668 = vrot.slane %v3666, 5
        %v3669 = vsel %vm890, %v3664, %v3668
        %v3671 = vshrl.u32 %v3582, 16
        %v3673 = vrot.slane %v3671, 4
        %v3674 = vshll.u32 %v3582, 16
        %v3676 = vrot.slane %v3674, 5
        %v3677 = vor.u32 %v3673, %v3676
        %v3678 = vrot.slane %v3677, 4
        %v3680 = vshll.u32 %v3583, 16
        %v3682 = vrot.slane %v3680, 5
        %v3683 = vsel %vm890, %v3678, %v3682
        %v3685 = vshrl.u32 %v3584, 16
        %v3687 = vrot.slane %v3685, 4
        %v3688 = vshll.u32 %v3584, 16
        %v3690 = vrot.slane %v3688, 5
        %v3691 = vor.u32 %v3687, %v3690
        %v3692 = vrot.slane %v3691, 4
        %v3694 = vshll.u32 %v3585, 16
        %v3696 = vrot.slane %v3694, 5
        %v3697 = vsel %vm890, %v3692, %v3696
        %s3698 = scalar_lea.vmem [#allocation15], 128
        %v3699 = vld [vmem:[%s3698] sm:$0xf]
        %v3700 = vld [vmem:[%s3698 + $0x4] sm:$0xf]
        %v3701 = vld [vmem:[%s3698 + $0x8] sm:$0xf]
        %v3702 = vld [vmem:[%s3698 + $0xc] sm:$0xf]
        %v3703 = vld [vmem:[%s3698 + $0x10] sm:$0xf]
        %v3704 = vld [vmem:[%s3698 + $0x14] sm:$0xf]
        %v3705 = vld [vmem:[%s3698 + $0x18] sm:$0xf]
        %v3706 = vld [vmem:[%s3698 + $0x1c] sm:$0xf]
        %v3707 = vunpack.c.l.b16 %v3599
        %v3708 = vunpack.c.l.b16 %v3613
        %v3709 = vunpack.c.l.b16 %v3627
        %v3710 = vunpack.c.l.b16 %v3641
        %v3711 = vunpack.c.l.b16 %v3655
        %v3712 = vunpack.c.l.b16 %v3669
        %v3713 = vunpack.c.l.b16 %v3683
        %v3714 = vunpack.c.l.b16 %v3697
        %v3715 = vpack.c.b16 %v3708, %v3707
        %v3716 = vpack.c.b16 %v3710, %v3709
        %v3717 = vpack.c.b16 %v3712, %v3711
        %v3718 = vpack.c.b16 %v3714, %v3713
        %v3727 = vunpack.c.l.b16 %v3699
        %v3728 = vunpack.c.l.b16 %v3700
        %v3729 = vunpack.c.l.b16 %v3701
        %v3730 = vunpack.c.l.b16 %v3702
        %v3731 = vunpack.c.l.b16 %v3703
        %v3732 = vunpack.c.l.b16 %v3704
        %v3733 = vunpack.c.l.b16 %v3705
        %v3734 = vunpack.c.l.b16 %v3706
        %v3735 = vpack.c.b16 %v3728, %v3727
        %v3736 = vpack.c.b16 %v3730, %v3729
        %v3737 = vpack.c.b16 %v3732, %v3731
        %v3738 = vpack.c.b16 %v3734, %v3733
        %v3744 = vsel %vm2493, %v3715, 0
        %v3747 = vsel %vm2493, %v3716, 0
        %v3750 = vsel %vm2493, %v3717, 0
        %v3753 = vsel %vm2493, %v3718, 0
        %3755 = vmatprep.subr.bf16.mxu0 0
        %3756 = vmatpush1.bf16.msra.mxu0 0
        %3757 = vmatprep.subr.bf16.mxu0 0
        %3758 = vmatpush1.bf16.msra.mxu0 0
        %3759 = vmatprep.subr.bf16.mxu0 0
        %3760 = vmatpush1.bf16.msra.mxu0 0
        %3761 = vmatprep.subr.bf16.mxu0 0
        %3762 = vmatpush1.bf16.msra.mxu0 0
        %3763 = vmatprep.subr.bf16.mxu0 0
        %3764 = vmatpush1.bf16.msra.mxu0 %v3738
        %3765 = vmatprep.subr.bf16.mxu0 0
        %3766 = vmatpush1.bf16.msra.mxu0 %v3737
        %3767 = vmatprep.subr.bf16.mxu0 0
        %3768 = vmatpush1.bf16.msra.mxu0 %v3736
        %3769 = vmatprep.subr.bf16.mxu0 0
        %3770 = vmatpush1.bf16.msra.mxu0 %v3735
        %3771 = vmatprep.subr.bf16.mxu0 0
        %3772 = vmatpush2.bf16.msra.mxu0 0
        %3773 = vmatprep.subr.bf16.mxu0 0
        %3774 = vmatpush2.bf16.msra.mxu0 0
        %3775 = vmatprep.subr.bf16.mxu0 0
        %3776 = vmatpush2.bf16.msra.mxu0 0
        %3777 = vmatprep.subr.bf16.mxu0 0
        %3778 = vmatpush2.bf16.msra.mxu0 0
        %3779 = vmatprep.subr.bf16.mxu0 0
        %3780 = vmatpush2.bf16.msra.mxu0 0
        %3781 = vmatprep.subr.bf16.mxu0 0
        %3782 = vmatpush2.bf16.msra.mxu0 0
        %3783 = vmatprep.subr.bf16.mxu0 0
        %3784 = vmatpush2.bf16.msra.mxu0 0
        %3785 = vmatprep.subr.bf16.mxu0 0
        %3786 = vmatpush2.bf16.msra.mxu0 0
        %3787 = vmatprep.mubr.bf16.mxu0 0
        %3788 = vmatmul.mubr.bf16.gmra.mxu0 %v3744
        %v3789 = vpop.f32.mrf.mxu0
        %v3790 = vadd.f32 0.0, %v3789
        %v3791 = vpop.f32.mrf.mxu0
        %v3792 = vpop.f32.mrf.mxu0
        %v3793 = vadd.f32 0.0, %v3792
        %v3794 = vpop.f32.mrf.mxu0
        %3795 = vmatprep.mubr.bf16.mxu0 0
        %3796 = vmatmul.mubr.bf16.gmra.mxu0 %v3747
        %v3797 = vpop.f32.mrf.mxu0
        %v3798 = vadd.f32 0.0, %v3797
        %v3799 = vpop.f32.mrf.mxu0
        %v3800 = vpop.f32.mrf.mxu0
        %v3801 = vadd.f32 0.0, %v3800
        %v3802 = vpop.f32.mrf.mxu0
        %3803 = vmatprep.mubr.bf16.mxu0 0
        %3804 = vmatmul.mubr.bf16.gmra.mxu0 %v3750
        %v3805 = vpop.f32.mrf.mxu0
        %v3806 = vadd.f32 0.0, %v3805
        %v3807 = vpop.f32.mrf.mxu0
        %v3808 = vpop.f32.mrf.mxu0
        %v3809 = vadd.f32 0.0, %v3808
        %v3810 = vpop.f32.mrf.mxu0
        %3811 = vmatprep.mubr.bf16.mxu0 0
        %3812 = vmatmul.mubr.bf16.gmra.mxu0 %v3753
        %v3813 = vpop.f32.mrf.mxu0
        %v3814 = vadd.f32 0.0, %v3813
        %v3815 = vpop.f32.mrf.mxu0
        %v3816 = vpop.f32.mrf.mxu0
        %v3817 = vadd.f32 0.0, %v3816
        %v3818 = vpop.f32.mrf.mxu0
        %3819 = vdwg.mxu0
        %v3820 = vadd.f32 %v3562, %v3790
        %v3821 = vadd.f32 %v3563, %v3793
        %v3822 = vadd.f32 %v3564, %v3798
        %v3823 = vadd.f32 %v3565, %v3801
        %v3824 = vadd.f32 %v3566, %v3806
        %v3825 = vadd.f32 %v3567, %v3809
        %v3826 = vadd.f32 %v3568, %v3814
        %v3827 = vadd.f32 %v3569, %v3817
        %v3828 = vld [vmem:[%s2806] sm:$0xe]
        %v3829 = vld [vmem:[%s2806 + $0x8] sm:$0xe]
        %v3830 = vld [vmem:[%s2806 + $0x10] sm:$0xe]
        %v3831 = vld [vmem:[%s2806 + $0x18] sm:$0xe]
        %v3832 = vld [vmem:[%s2806 + $0x20] sm:$0xe]
        %v3833 = vld [vmem:[%s2806 + $0x28] sm:$0xe]
        %v3834 = vld [vmem:[%s2806 + $0x30] sm:$0xe]
        %v3835 = vld [vmem:[%s2806 + $0x38] sm:$0xe]
        %v3852 = vrot.slane %v3828, 5
        %v3853 = vrot.slane %v3852, 4
        %v3854 = vrot.slane %v3571, 5
        %v3855 = vsel %vm1244, %v3853, %v3854
        %v3856 = vrot.slane %v3829, 5
        %v3857 = vrot.slane %v3856, 4
        %v3858 = vrot.slane %v3573, 5
        %v3859 = vsel %vm1244, %v3857, %v3858
        %v3860 = vrot.slane %v3830, 5
        %v3861 = vrot.slane %v3860, 4
        %v3862 = vrot.slane %v3575, 5
        %v3863 = vsel %vm1244, %v3861, %v3862
        %v3864 = vrot.slane %v3831, 5
        %v3865 = vrot.slane %v3864, 4
        %v3866 = vrot.slane %v3577, 5
        %v3867 = vsel %vm1244, %v3865, %v3866
        %v3868 = vrot.slane %v3832, 5
        %v3869 = vrot.slane %v3868, 4
        %v3870 = vrot.slane %v3579, 5
        %v3871 = vsel %vm1244, %v3869, %v3870
        %v3872 = vrot.slane %v3833, 5
        %v3873 = vrot.slane %v3872, 4
        %v3874 = vrot.slane %v3581, 5
        %v3875 = vsel %vm1244, %v3873, %v3874
        %v3876 = vrot.slane %v3834, 5
        %v3877 = vrot.slane %v3876, 4
        %v3878 = vrot.slane %v3583, 5
        %v3879 = vsel %vm1244, %v3877, %v3878
        %v3880 = vrot.slane %v3835, 5
        %v3881 = vrot.slane %v3880, 4
        %v3882 = vrot.slane %v3585, 5
        %v3883 = vsel %vm1244, %v3881, %v3882
        %s3884 = scalar_lea.vmem [#allocation15], 160
        %v3885 = vld [vmem:[%s3884] sm:$0xf]
        %v3886 = vld [vmem:[%s3884 + $0x4] sm:$0xf]
        %v3887 = vld [vmem:[%s3884 + $0x8] sm:$0xf]
        %v3888 = vld [vmem:[%s3884 + $0xc] sm:$0xf]
        %v3889 = vld [vmem:[%s3884 + $0x10] sm:$0xf]
        %v3890 = vld [vmem:[%s3884 + $0x14] sm:$0xf]
        %v3891 = vld [vmem:[%s3884 + $0x18] sm:$0xf]
        %v3892 = vld [vmem:[%s3884 + $0x1c] sm:$0xf]
        %v3893 = vunpack.c.l.b16 %v3855
        %v3894 = vunpack.c.l.b16 %v3859
        %v3895 = vunpack.c.l.b16 %v3863
        %v3896 = vunpack.c.l.b16 %v3867
        %v3897 = vunpack.c.l.b16 %v3871
        %v3898 = vunpack.c.l.b16 %v3875
        %v3899 = vunpack.c.l.b16 %v3879
        %v3900 = vunpack.c.l.b16 %v3883
        %v3901 = vpack.c.b16 %v3894, %v3893
        %v3902 = vpack.c.b16 %v3896, %v3895
        %v3903 = vpack.c.b16 %v3898, %v3897
        %v3904 = vpack.c.b16 %v3900, %v3899
        %v3913 = vunpack.c.l.b16 %v3885
        %v3914 = vunpack.c.l.b16 %v3886
        %v3915 = vunpack.c.l.b16 %v3887
        %v3916 = vunpack.c.l.b16 %v3888
        %v3917 = vunpack.c.l.b16 %v3889
        %v3918 = vunpack.c.l.b16 %v3890
        %v3919 = vunpack.c.l.b16 %v3891
        %v3920 = vunpack.c.l.b16 %v3892
        %v3921 = vpack.c.b16 %v3914, %v3913
        %v3922 = vpack.c.b16 %v3916, %v3915
        %v3923 = vpack.c.b16 %v3918, %v3917
        %v3924 = vpack.c.b16 %v3920, %v3919
        %v3930 = vsel %vm2493, %v3901, 0
        %v3933 = vsel %vm2493, %v3902, 0
        %v3936 = vsel %vm2493, %v3903, 0
        %v3939 = vsel %vm2493, %v3904, 0
        %3941 = vmatprep.subr.bf16.mxu0 0
        %3942 = vmatpush1.bf16.msra.mxu0 0
        %3943 = vmatprep.subr.bf16.mxu0 0
        %3944 = vmatpush1.bf16.msra.mxu0 0
        %3945 = vmatprep.subr.bf16.mxu0 0
        %3946 = vmatpush1.bf16.msra.mxu0 0
        %3947 = vmatprep.subr.bf16.mxu0 0
        %3948 = vmatpush1.bf16.msra.mxu0 0
        %3949 = vmatprep.subr.bf16.mxu0 0
        %3950 = vmatpush1.bf16.msra.mxu0 %v3924
        %3951 = vmatprep.subr.bf16.mxu0 0
        %3952 = vmatpush1.bf16.msra.mxu0 %v3923
        %3953 = vmatprep.subr.bf16.mxu0 0
        %3954 = vmatpush1.bf16.msra.mxu0 %v3922
        %3955 = vmatprep.subr.bf16.mxu0 0
        %3956 = vmatpush1.bf16.msra.mxu0 %v3921
        %3957 = vmatprep.subr.bf16.mxu0 0
        %3958 = vmatpush2.bf16.msra.mxu0 0
        %3959 = vmatprep.subr.bf16.mxu0 0
        %3960 = vmatpush2.bf16.msra.mxu0 0
        %3961 = vmatprep.subr.bf16.mxu0 0
        %3962 = vmatpush2.bf16.msra.mxu0 0
        %3963 = vmatprep.subr.bf16.mxu0 0
        %3964 = vmatpush2.bf16.msra.mxu0 0
        %3965 = vmatprep.subr.bf16.mxu0 0
        %3966 = vmatpush2.bf16.msra.mxu0 0
        %3967 = vmatprep.subr.bf16.mxu0 0
        %3968 = vmatpush2.bf16.msra.mxu0 0
        %3969 = vmatprep.subr.bf16.mxu0 0
        %3970 = vmatpush2.bf16.msra.mxu0 0
        %3971 = vmatprep.subr.bf16.mxu0 0
        %3972 = vmatpush2.bf16.msra.mxu0 0
        %3973 = vmatprep.mubr.bf16.mxu0 0
        %3974 = vmatmul.mubr.bf16.gmra.mxu0 %v3930
        %v3975 = vpop.f32.mrf.mxu0
        %v3976 = vadd.f32 0.0, %v3975
        %v3977 = vpop.f32.mrf.mxu0
        %v3978 = vpop.f32.mrf.mxu0
        %v3979 = vadd.f32 0.0, %v3978
        %v3980 = vpop.f32.mrf.mxu0
        %3981 = vmatprep.mubr.bf16.mxu0 0
        %3982 = vmatmul.mubr.bf16.gmra.mxu0 %v3933
        %v3983 = vpop.f32.mrf.mxu0
        %v3984 = vadd.f32 0.0, %v3983
        %v3985 = vpop.f32.mrf.mxu0
        %v3986 = vpop.f32.mrf.mxu0
        %v3987 = vadd.f32 0.0, %v3986
        %v3988 = vpop.f32.mrf.mxu0
        %3989 = vmatprep.mubr.bf16.mxu0 0
        %3990 = vmatmul.mubr.bf16.gmra.mxu0 %v3936
        %v3991 = vpop.f32.mrf.mxu0
        %v3992 = vadd.f32 0.0, %v3991
        %v3993 = vpop.f32.mrf.mxu0
        %v3994 = vpop.f32.mrf.mxu0
        %v3995 = vadd.f32 0.0, %v3994
        %v3996 = vpop.f32.mrf.mxu0
        %3997 = vmatprep.mubr.bf16.mxu0 0
        %3998 = vmatmul.mubr.bf16.gmra.mxu0 %v3939
        %v3999 = vpop.f32.mrf.mxu0
        %v4000 = vadd.f32 0.0, %v3999
        %v4001 = vpop.f32.mrf.mxu0
        %v4002 = vpop.f32.mrf.mxu0
        %v4003 = vadd.f32 0.0, %v4002
        %v4004 = vpop.f32.mrf.mxu0
        %4005 = vdwg.mxu0
        %v4006 = vadd.f32 %v3820, %v3976
        %v4007 = vadd.f32 %v3821, %v3979
        %v4008 = vadd.f32 %v3822, %v3984
        %v4009 = vadd.f32 %v3823, %v3987
        %v4010 = vadd.f32 %v3824, %v3992
        %v4011 = vadd.f32 %v3825, %v3995
        %v4012 = vadd.f32 %v3826, %v4000
        %v4013 = vadd.f32 %v3827, %v4003
        %s4014 = scalar_lea.vmem [#allocation3], 16
        %v4015 = vld [vmem:[%s4014] sm:$0xf]
        %v4016 = vld [vmem:[%s4014 + $0x8] sm:$0xf]
        %v4017 = vld [vmem:[%s4014 + $0x10] sm:$0xf]
        %v4018 = vld [vmem:[%s4014 + $0x18] sm:$0xf]
        %v4019 = vld [vmem:[%s4014 + $0x20] sm:$0xf]
        %v4020 = vld [vmem:[%s4014 + $0x28] sm:$0xf]
        %v4021 = vld [vmem:[%s4014 + $0x30] sm:$0xf]
        %v4022 = vld [vmem:[%s4014 + $0x38] sm:$0xf]
        %s4023 = scalar_lea.vmem [#allocation15], 192
        %v4024 = vld [vmem:[%s4023] sm:$0xf]
        %v4025 = vld [vmem:[%s4023 + $0x4] sm:$0xf]
        %v4026 = vld [vmem:[%s4023 + $0x8] sm:$0xf]
        %v4027 = vld [vmem:[%s4023 + $0xc] sm:$0xf]
        %v4028 = vld [vmem:[%s4023 + $0x10] sm:$0xf]
        %v4029 = vld [vmem:[%s4023 + $0x14] sm:$0xf]
        %v4030 = vld [vmem:[%s4023 + $0x18] sm:$0xf]
        %v4031 = vld [vmem:[%s4023 + $0x1c] sm:$0xf]
        %v4040 = vunpack.c.l.b16 %v4015
        %v4041 = vunpack.c.l.b16 %v4016
        %v4042 = vunpack.c.l.b16 %v4017
        %v4043 = vunpack.c.l.b16 %v4018
        %v4044 = vunpack.c.l.b16 %v4019
        %v4045 = vunpack.c.l.b16 %v4020
        %v4046 = vunpack.c.l.b16 %v4021
        %v4047 = vunpack.c.l.b16 %v4022
        %v4048 = vpack.c.b16 %v4041, %v4040
        %v4049 = vpack.c.b16 %v4043, %v4042
        %v4050 = vpack.c.b16 %v4045, %v4044
        %v4051 = vpack.c.b16 %v4047, %v4046
        %v4060 = vunpack.c.l.b16 %v4024
        %v4061 = vunpack.c.l.b16 %v4025
        %v4062 = vunpack.c.l.b16 %v4026
        %v4063 = vunpack.c.l.b16 %v4027
        %v4064 = vunpack.c.l.b16 %v4028
        %v4065 = vunpack.c.l.b16 %v4029
        %v4066 = vunpack.c.l.b16 %v4030
        %v4067 = vunpack.c.l.b16 %v4031
        %v4068 = vpack.c.b16 %v4061, %v4060
        %v4069 = vpack.c.b16 %v4063, %v4062
        %v4070 = vpack.c.b16 %v4065, %v4064
        %v4071 = vpack.c.b16 %v4067, %v4066
        %v4077 = vsel %vm2493, %v4048, 0
        %v4080 = vsel %vm2493, %v4049, 0
        %v4083 = vsel %vm2493, %v4050, 0
        %v4086 = vsel %vm2493, %v4051, 0
        %4088 = vmatprep.subr.bf16.mxu0 0
        %4089 = vmatpush1.bf16.msra.mxu0 0
        %4090 = vmatprep.subr.bf16.mxu0 0
        %4091 = vmatpush1.bf16.msra.mxu0 0
        %4092 = vmatprep.subr.bf16.mxu0 0
        %4093 = vmatpush1.bf16.msra.mxu0 0
        %4094 = vmatprep.subr.bf16.mxu0 0
        %4095 = vmatpush1.bf16.msra.mxu0 0
        %4096 = vmatprep.subr.bf16.mxu0 0
        %4097 = vmatpush1.bf16.msra.mxu0 %v4071
        %4098 = vmatprep.subr.bf16.mxu0 0
        %4099 = vmatpush1.bf16.msra.mxu0 %v4070
        %4100 = vmatprep.subr.bf16.mxu0 0
        %4101 = vmatpush1.bf16.msra.mxu0 %v4069
        %4102 = vmatprep.subr.bf16.mxu0 0
        %4103 = vmatpush1.bf16.msra.mxu0 %v4068
        %4104 = vmatprep.subr.bf16.mxu0 0
        %4105 = vmatpush2.bf16.msra.mxu0 0
        %4106 = vmatprep.subr.bf16.mxu0 0
        %4107 = vmatpush2.bf16.msra.mxu0 0
        %4108 = vmatprep.subr.bf16.mxu0 0
        %4109 = vmatpush2.bf16.msra.mxu0 0
        %4110 = vmatprep.subr.bf16.mxu0 0
        %4111 = vmatpush2.bf16.msra.mxu0 0
        %4112 = vmatprep.subr.bf16.mxu0 0
        %4113 = vmatpush2.bf16.msra.mxu0 0
        %4114 = vmatprep.subr.bf16.mxu0 0
        %4115 = vmatpush2.bf16.msra.mxu0 0
        %4116 = vmatprep.subr.bf16.mxu0 0
        %4117 = vmatpush2.bf16.msra.mxu0 0
        %4118 = vmatprep.subr.bf16.mxu0 0
        %4119 = vmatpush2.bf16.msra.mxu0 0
        %4120 = vmatprep.mubr.bf16.mxu0 0
        %4121 = vmatmul.mubr.bf16.gmra.mxu0 %v4077
        %v4122 = vpop.f32.mrf.mxu0
        %v4123 = vadd.f32 0.0, %v4122
        %v4124 = vpop.f32.mrf.mxu0
        %v4125 = vpop.f32.mrf.mxu0
        %v4126 = vadd.f32 0.0, %v4125
        %v4127 = vpop.f32.mrf.mxu0
        %4128 = vmatprep.mubr.bf16.mxu0 0
        %4129 = vmatmul.mubr.bf16.gmra.mxu0 %v4080
        %v4130 = vpop.f32.mrf.mxu0
        %v4131 = vadd.f32 0.0, %v4130
        %v4132 = vpop.f32.mrf.mxu0
        %v4133 = vpop.f32.mrf.mxu0
        %v4134 = vadd.f32 0.0, %v4133
        %v4135 = vpop.f32.mrf.mxu0
        %4136 = vmatprep.mubr.bf16.mxu0 0
        %4137 = vmatmul.mubr.bf16.gmra.mxu0 %v4083
        %v4138 = vpop.f32.mrf.mxu0
        %v4139 = vadd.f32 0.0, %v4138
        %v4140 = vpop.f32.mrf.mxu0
        %v4141 = vpop.f32.mrf.mxu0
        %v4142 = vadd.f32 0.0, %v4141
        %v4143 = vpop.f32.mrf.mxu0
        %4144 = vmatprep.mubr.bf16.mxu0 0
        %4145 = vmatmul.mubr.bf16.gmra.mxu0 %v4086
        %v4146 = vpop.f32.mrf.mxu0
        %v4147 = vadd.f32 0.0, %v4146
        %v4148 = vpop.f32.mrf.mxu0
        %v4149 = vpop.f32.mrf.mxu0
        %v4150 = vadd.f32 0.0, %v4149
        %v4151 = vpop.f32.mrf.mxu0
        %4152 = vdwg.mxu0
        %v4153 = vadd.f32 %v4006, %v4123
        %v4154 = vadd.f32 %v4007, %v4126
        %v4155 = vadd.f32 %v4008, %v4131
        %v4156 = vadd.f32 %v4009, %v4134
        %v4157 = vadd.f32 %v4010, %v4139
        %v4158 = vadd.f32 %v4011, %v4142
        %v4159 = vadd.f32 %v4012, %v4147
        %v4160 = vadd.f32 %v4013, %v4150
        %v4161 = vld [vmem:[%s4014] sm:$0xf]
        %v4162 = vld [vmem:[%s4014 + $0x4] sm:$0x1]
        %v4163 = vld [vmem:[%s4014 + $0x8] sm:$0xf]
        %v4164 = vld [vmem:[%s4014 + $0xc] sm:$0x1]
        %v4165 = vld [vmem:[%s4014 + $0x10] sm:$0xf]
        %v4166 = vld [vmem:[%s4014 + $0x14] sm:$0x1]
        %v4167 = vld [vmem:[%s4014 + $0x18] sm:$0xf]
        %v4168 = vld [vmem:[%s4014 + $0x1c] sm:$0x1]
        %v4169 = vld [vmem:[%s4014 + $0x20] sm:$0xf]
        %v4170 = vld [vmem:[%s4014 + $0x24] sm:$0x1]
        %v4171 = vld [vmem:[%s4014 + $0x28] sm:$0xf]
        %v4172 = vld [vmem:[%s4014 + $0x2c] sm:$0x1]
        %v4173 = vld [vmem:[%s4014 + $0x30] sm:$0xf]
        %v4174 = vld [vmem:[%s4014 + $0x34] sm:$0x1]
        %v4175 = vld [vmem:[%s4014 + $0x38] sm:$0xf]
        %v4176 = vld [vmem:[%s4014 + $0x3c] sm:$0x1]
        %v4178 = vshrl.u32 %v4161, 16
        %v4180 = vrot.slane %v4178, 4
        %v4181 = vshll.u32 %v4161, 16
        %v4183 = vrot.slane %v4181, 5
        %v4184 = vor.u32 %v4180, %v4183
        %v4185 = vrot.slane %v4184, 4
        %v4187 = vshll.u32 %v4162, 16
        %v4189 = vrot.slane %v4187, 5
        %v4190 = vsel %vm890, %v4185, %v4189
        %v4192 = vshrl.u32 %v4163, 16
        %v4194 = vrot.slane %v4192, 4
        %v4195 = vshll.u32 %v4163, 16
        %v4197 = vrot.slane %v4195, 5
        %v4198 = vor.u32 %v4194, %v4197
        %v4199 = vrot.slane %v4198, 4
        %v4201 = vshll.u32 %v4164, 16
        %v4203 = vrot.slane %v4201, 5
        %v4204 = vsel %vm890, %v4199, %v4203
        %v4206 = vshrl.u32 %v4165, 16
        %v4208 = vrot.slane %v4206, 4
        %v4209 = vshll.u32 %v4165, 16
        %v4211 = vrot.slane %v4209, 5
        %v4212 = vor.u32 %v4208, %v4211
        %v4213 = vrot.slane %v4212, 4
        %v4215 = vshll.u32 %v4166, 16
        %v4217 = vrot.slane %v4215, 5
        %v4218 = vsel %vm890, %v4213, %v4217
        %v4220 = vshrl.u32 %v4167, 16
        %v4222 = vrot.slane %v4220, 4
        %v4223 = vshll.u32 %v4167, 16
        %v4225 = vrot.slane %v4223, 5
        %v4226 = vor.u32 %v4222, %v4225
        %v4227 = vrot.slane %v4226, 4
        %v4229 = vshll.u32 %v4168, 16
        %v4231 = vrot.slane %v4229, 5
        %v4232 = vsel %vm890, %v4227, %v4231
        %v4234 = vshrl.u32 %v4169, 16
        %v4236 = vrot.slane %v4234, 4
        %v4237 = vshll.u32 %v4169, 16
        %v4239 = vrot.slane %v4237, 5
        %v4240 = vor.u32 %v4236, %v4239
        %v4241 = vrot.slane %v4240, 4
        %v4243 = vshll.u32 %v4170, 16
        %v4245 = vrot.slane %v4243, 5
        %v4246 = vsel %vm890, %v4241, %v4245
        %v4248 = vshrl.u32 %v4171, 16
        %v4250 = vrot.slane %v4248, 4
        %v4251 = vshll.u32 %v4171, 16
        %v4253 = vrot.slane %v4251, 5
        %v4254 = vor.u32 %v4250, %v4253
        %v4255 = vrot.slane %v4254, 4
        %v4257 = vshll.u32 %v4172, 16
        %v4259 = vrot.slane %v4257, 5
        %v4260 = vsel %vm890, %v4255, %v4259
        %v4262 = vshrl.u32 %v4173, 16
        %v4264 = vrot.slane %v4262, 4
        %v4265 = vshll.u32 %v4173, 16
        %v4267 = vrot.slane %v4265, 5
        %v4268 = vor.u32 %v4264, %v4267
        %v4269 = vrot.slane %v4268, 4
        %v4271 = vshll.u32 %v4174, 16
        %v4273 = vrot.slane %v4271, 5
        %v4274 = vsel %vm890, %v4269, %v4273
        %v4276 = vshrl.u32 %v4175, 16
        %v4278 = vrot.slane %v4276, 4
        %v4279 = vshll.u32 %v4175, 16
        %v4281 = vrot.slane %v4279, 5
        %v4282 = vor.u32 %v4278, %v4281
        %v4283 = vrot.slane %v4282, 4
        %v4285 = vshll.u32 %v4176, 16
        %v4287 = vrot.slane %v4285, 5
        %v4288 = vsel %vm890, %v4283, %v4287
        %s4289 = scalar_lea.vmem [#allocation15], 224
        %v4290 = vld [vmem:[%s4289] sm:$0xf]
        %v4291 = vld [vmem:[%s4289 + $0x4] sm:$0xf]
        %v4292 = vld [vmem:[%s4289 + $0x8] sm:$0xf]
        %v4293 = vld [vmem:[%s4289 + $0xc] sm:$0xf]
        %v4294 = vld [vmem:[%s4289 + $0x10] sm:$0xf]
        %v4295 = vld [vmem:[%s4289 + $0x14] sm:$0xf]
        %v4296 = vld [vmem:[%s4289 + $0x18] sm:$0xf]
        %v4297 = vld [vmem:[%s4289 + $0x1c] sm:$0xf]
        %v4298 = vunpack.c.l.b16 %v4190
        %v4299 = vunpack.c.l.b16 %v4204
        %v4300 = vunpack.c.l.b16 %v4218
        %v4301 = vunpack.c.l.b16 %v4232
        %v4302 = vunpack.c.l.b16 %v4246
        %v4303 = vunpack.c.l.b16 %v4260
        %v4304 = vunpack.c.l.b16 %v4274
        %v4305 = vunpack.c.l.b16 %v4288
        %v4306 = vpack.c.b16 %v4299, %v4298
        %v4307 = vpack.c.b16 %v4301, %v4300
        %v4308 = vpack.c.b16 %v4303, %v4302
        %v4309 = vpack.c.b16 %v4305, %v4304
        %v4318 = vunpack.c.l.b16 %v4290
        %v4319 = vunpack.c.l.b16 %v4291
        %v4320 = vunpack.c.l.b16 %v4292
        %v4321 = vunpack.c.l.b16 %v4293
        %v4322 = vunpack.c.l.b16 %v4294
        %v4323 = vunpack.c.l.b16 %v4295
        %v4324 = vunpack.c.l.b16 %v4296
        %v4325 = vunpack.c.l.b16 %v4297
        %v4326 = vpack.c.b16 %v4319, %v4318
        %v4327 = vpack.c.b16 %v4321, %v4320
        %v4328 = vpack.c.b16 %v4323, %v4322
        %v4329 = vpack.c.b16 %v4325, %v4324
        %v4335 = vsel %vm2493, %v4306, 0
        %v4338 = vsel %vm2493, %v4307, 0
        %v4341 = vsel %vm2493, %v4308, 0
        %v4344 = vsel %vm2493, %v4309, 0
        %4346 = vmatprep.subr.bf16.mxu0 0
        %4347 = vmatpush1.bf16.msra.mxu0 0
        %4348 = vmatprep.subr.bf16.mxu0 0
        %4349 = vmatpush1.bf16.msra.mxu0 0
        %4350 = vmatprep.subr.bf16.mxu0 0
        %4351 = vmatpush1.bf16.msra.mxu0 0
        %4352 = vmatprep.subr.bf16.mxu0 0
        %4353 = vmatpush1.bf16.msra.mxu0 0
        %4354 = vmatprep.subr.bf16.mxu0 0
        %4355 = vmatpush1.bf16.msra.mxu0 %v4329
        %4356 = vmatprep.subr.bf16.mxu0 0
        %4357 = vmatpush1.bf16.msra.mxu0 %v4328
        %4358 = vmatprep.subr.bf16.mxu0 0
        %4359 = vmatpush1.bf16.msra.mxu0 %v4327
        %4360 = vmatprep.subr.bf16.mxu0 0
        %4361 = vmatpush1.bf16.msra.mxu0 %v4326
        %4362 = vmatprep.subr.bf16.mxu0 0
        %4363 = vmatpush2.bf16.msra.mxu0 0
        %4364 = vmatprep.subr.bf16.mxu0 0
        %4365 = vmatpush2.bf16.msra.mxu0 0
        %4366 = vmatprep.subr.bf16.mxu0 0
        %4367 = vmatpush2.bf16.msra.mxu0 0
        %4368 = vmatprep.subr.bf16.mxu0 0
        %4369 = vmatpush2.bf16.msra.mxu0 0
        %4370 = vmatprep.subr.bf16.mxu0 0
        %4371 = vmatpush2.bf16.msra.mxu0 0
        %4372 = vmatprep.subr.bf16.mxu0 0
        %4373 = vmatpush2.bf16.msra.mxu0 0
        %4374 = vmatprep.subr.bf16.mxu0 0
        %4375 = vmatpush2.bf16.msra.mxu0 0
        %4376 = vmatprep.subr.bf16.mxu0 0
        %4377 = vmatpush2.bf16.msra.mxu0 0
        %4378 = vmatprep.mubr.bf16.mxu0 0
        %4379 = vmatmul.mubr.bf16.gmra.mxu0 %v4335
        %v4380 = vpop.f32.mrf.mxu0
        %v4381 = vadd.f32 0.0, %v4380
        %v4382 = vpop.f32.mrf.mxu0
        %v4383 = vpop.f32.mrf.mxu0
        %v4384 = vadd.f32 0.0, %v4383
        %v4385 = vpop.f32.mrf.mxu0
        %4386 = vmatprep.mubr.bf16.mxu0 0
        %4387 = vmatmul.mubr.bf16.gmra.mxu0 %v4338
        %v4388 = vpop.f32.mrf.mxu0
        %v4389 = vadd.f32 0.0, %v4388
        %v4390 = vpop.f32.mrf.mxu0
        %v4391 = vpop.f32.mrf.mxu0
        %v4392 = vadd.f32 0.0, %v4391
        %v4393 = vpop.f32.mrf.mxu0
        %4394 = vmatprep.mubr.bf16.mxu0 0
        %4395 = vmatmul.mubr.bf16.gmra.mxu0 %v4341
        %v4396 = vpop.f32.mrf.mxu0
        %v4397 = vadd.f32 0.0, %v4396
        %v4398 = vpop.f32.mrf.mxu0
        %v4399 = vpop.f32.mrf.mxu0
        %v4400 = vadd.f32 0.0, %v4399
        %v4401 = vpop.f32.mrf.mxu0
        %4402 = vmatprep.mubr.bf16.mxu0 0
        %4403 = vmatmul.mubr.bf16.gmra.mxu0 %v4344
        %v4404 = vpop.f32.mrf.mxu0
        %v4405 = vadd.f32 0.0, %v4404
        %v4406 = vpop.f32.mrf.mxu0
        %v4407 = vpop.f32.mrf.mxu0
        %v4408 = vadd.f32 0.0, %v4407
        %v4409 = vpop.f32.mrf.mxu0
        %4410 = vdwg.mxu0
        %v4411 = vadd.f32 %v4153, %v4381
        %v4412 = vadd.f32 %v4154, %v4384
        %v4413 = vadd.f32 %v4155, %v4389
        %v4414 = vadd.f32 %v4156, %v4392
        %v4415 = vadd.f32 %v4157, %v4397
        %v4416 = vadd.f32 %v4158, %v4400
        %v4417 = vadd.f32 %v4159, %v4405
        %v4418 = vadd.f32 %v4160, %v4408
        %v4419 = vld [vmem:[%s4014] sm:$0xe]
        %v4420 = vld [vmem:[%s4014 + $0x8] sm:$0xe]
        %v4421 = vld [vmem:[%s4014 + $0x10] sm:$0xe]
        %v4422 = vld [vmem:[%s4014 + $0x18] sm:$0xe]
        %v4423 = vld [vmem:[%s4014 + $0x20] sm:$0xe]
        %v4424 = vld [vmem:[%s4014 + $0x28] sm:$0xe]
        %v4425 = vld [vmem:[%s4014 + $0x30] sm:$0xe]
        %v4426 = vld [vmem:[%s4014 + $0x38] sm:$0xe]
        %v4443 = vrot.slane %v4419, 5
        %v4444 = vrot.slane %v4443, 4
        %v4445 = vrot.slane %v4162, 5
        %v4446 = vsel %vm1244, %v4444, %v4445
        %v4447 = vrot.slane %v4420, 5
        %v4448 = vrot.slane %v4447, 4
        %v4449 = vrot.slane %v4164, 5
        %v4450 = vsel %vm1244, %v4448, %v4449
        %v4451 = vrot.slane %v4421, 5
        %v4452 = vrot.slane %v4451, 4
        %v4453 = vrot.slane %v4166, 5
        %v4454 = vsel %vm1244, %v4452, %v4453
        %v4455 = vrot.slane %v4422, 5
        %v4456 = vrot.slane %v4455, 4
        %v4457 = vrot.slane %v4168, 5
        %v4458 = vsel %vm1244, %v4456, %v4457
        %v4459 = vrot.slane %v4423, 5
        %v4460 = vrot.slane %v4459, 4
        %v4461 = vrot.slane %v4170, 5
        %v4462 = vsel %vm1244, %v4460, %v4461
        %v4463 = vrot.slane %v4424, 5
        %v4464 = vrot.slane %v4463, 4
        %v4465 = vrot.slane %v4172, 5
        %v4466 = vsel %vm1244, %v4464, %v4465
        %v4467 = vrot.slane %v4425, 5
        %v4468 = vrot.slane %v4467, 4
        %v4469 = vrot.slane %v4174, 5
        %v4470 = vsel %vm1244, %v4468, %v4469
        %v4471 = vrot.slane %v4426, 5
        %v4472 = vrot.slane %v4471, 4
        %v4473 = vrot.slane %v4176, 5
        %v4474 = vsel %vm1244, %v4472, %v4473
        %s4475 = scalar_lea.vmem [#allocation15], 256
        %v4476 = vld [vmem:[%s4475] sm:$0xf]
        %v4477 = vld [vmem:[%s4475 + $0x4] sm:$0xf]
        %v4478 = vld [vmem:[%s4475 + $0x8] sm:$0xf]
        %v4479 = vld [vmem:[%s4475 + $0xc] sm:$0xf]
        %v4480 = vld [vmem:[%s4475 + $0x10] sm:$0xf]
        %v4481 = vld [vmem:[%s4475 + $0x14] sm:$0xf]
        %v4482 = vld [vmem:[%s4475 + $0x18] sm:$0xf]
        %v4483 = vld [vmem:[%s4475 + $0x1c] sm:$0xf]
        %v4484 = vunpack.c.l.b16 %v4446
        %v4485 = vunpack.c.l.b16 %v4450
        %v4486 = vunpack.c.l.b16 %v4454
        %v4487 = vunpack.c.l.b16 %v4458
        %v4488 = vunpack.c.l.b16 %v4462
        %v4489 = vunpack.c.l.b16 %v4466
        %v4490 = vunpack.c.l.b16 %v4470
        %v4491 = vunpack.c.l.b16 %v4474
        %v4492 = vpack.c.b16 %v4485, %v4484
        %v4493 = vpack.c.b16 %v4487, %v4486
        %v4494 = vpack.c.b16 %v4489, %v4488
        %v4495 = vpack.c.b16 %v4491, %v4490
        %v4504 = vunpack.c.l.b16 %v4476
        %v4505 = vunpack.c.l.b16 %v4477
        %v4506 = vunpack.c.l.b16 %v4478
        %v4507 = vunpack.c.l.b16 %v4479
        %v4508 = vunpack.c.l.b16 %v4480
        %v4509 = vunpack.c.l.b16 %v4481
        %v4510 = vunpack.c.l.b16 %v4482
        %v4511 = vunpack.c.l.b16 %v4483
        %v4512 = vpack.c.b16 %v4505, %v4504
        %v4513 = vpack.c.b16 %v4507, %v4506
        %v4514 = vpack.c.b16 %v4509, %v4508
        %v4515 = vpack.c.b16 %v4511, %v4510
        %v4521 = vsel %vm2493, %v4492, 0
        %v4524 = vsel %vm2493, %v4493, 0
        %v4527 = vsel %vm2493, %v4494, 0
        %v4530 = vsel %vm2493, %v4495, 0
        %4532 = vmatprep.subr.bf16.mxu0 0
        %4533 = vmatpush1.bf16.msra.mxu0 0
        %4534 = vmatprep.subr.bf16.mxu0 0
        %4535 = vmatpush1.bf16.msra.mxu0 0
        %4536 = vmatprep.subr.bf16.mxu0 0
        %4537 = vmatpush1.bf16.msra.mxu0 0
        %4538 = vmatprep.subr.bf16.mxu0 0
        %4539 = vmatpush1.bf16.msra.mxu0 0
        %4540 = vmatprep.subr.bf16.mxu0 0
        %4541 = vmatpush1.bf16.msra.mxu0 %v4515
        %4542 = vmatprep.subr.bf16.mxu0 0
        %4543 = vmatpush1.bf16.msra.mxu0 %v4514
        %4544 = vmatprep.subr.bf16.mxu0 0
        %4545 = vmatpush1.bf16.msra.mxu0 %v4513
        %4546 = vmatprep.subr.bf16.mxu0 0
        %4547 = vmatpush1.bf16.msra.mxu0 %v4512
        %4548 = vmatprep.subr.bf16.mxu0 0
        %4549 = vmatpush2.bf16.msra.mxu0 0
        %4550 = vmatprep.subr.bf16.mxu0 0
        %4551 = vmatpush2.bf16.msra.mxu0 0
        %4552 = vmatprep.subr.bf16.mxu0 0
        %4553 = vmatpush2.bf16.msra.mxu0 0
        %4554 = vmatprep.subr.bf16.mxu0 0
        %4555 = vmatpush2.bf16.msra.mxu0 0
        %4556 = vmatprep.subr.bf16.mxu0 0
        %4557 = vmatpush2.bf16.msra.mxu0 0
        %4558 = vmatprep.subr.bf16.mxu0 0
        %4559 = vmatpush2.bf16.msra.mxu0 0
        %4560 = vmatprep.subr.bf16.mxu0 0
        %4561 = vmatpush2.bf16.msra.mxu0 0
        %4562 = vmatprep.subr.bf16.mxu0 0
        %4563 = vmatpush2.bf16.msra.mxu0 0
        %4564 = vmatprep.mubr.bf16.mxu0 0
        %4565 = vmatmul.mubr.bf16.gmra.mxu0 %v4521
        %v4566 = vpop.f32.mrf.mxu0
        %v4567 = vadd.f32 0.0, %v4566
        %v4568 = vpop.f32.mrf.mxu0
        %v4569 = vpop.f32.mrf.mxu0
        %v4570 = vadd.f32 0.0, %v4569
        %v4571 = vpop.f32.mrf.mxu0
        %4572 = vmatprep.mubr.bf16.mxu0 0
        %4573 = vmatmul.mubr.bf16.gmra.mxu0 %v4524
        %v4574 = vpop.f32.mrf.mxu0
        %v4575 = vadd.f32 0.0, %v4574
        %v4576 = vpop.f32.mrf.mxu0
        %v4577 = vpop.f32.mrf.mxu0
        %v4578 = vadd.f32 0.0, %v4577
        %v4579 = vpop.f32.mrf.mxu0
        %4580 = vmatprep.mubr.bf16.mxu0 0
        %4581 = vmatmul.mubr.bf16.gmra.mxu0 %v4527
        %v4582 = vpop.f32.mrf.mxu0
        %v4583 = vadd.f32 0.0, %v4582
        %v4584 = vpop.f32.mrf.mxu0
        %v4585 = vpop.f32.mrf.mxu0
        %v4586 = vadd.f32 0.0, %v4585
        %v4587 = vpop.f32.mrf.mxu0
        %4588 = vmatprep.mubr.bf16.mxu0 0
        %4589 = vmatmul.mubr.bf16.gmra.mxu0 %v4530
        %v4590 = vpop.f32.mrf.mxu0
        %v4591 = vadd.f32 0.0, %v4590
        %v4592 = vpop.f32.mrf.mxu0
        %v4593 = vpop.f32.mrf.mxu0
        %v4594 = vadd.f32 0.0, %v4593
        %v4595 = vpop.f32.mrf.mxu0
        %4596 = vdwg.mxu0
        %v4597 = vadd.f32 %v4411, %v4567
        %v4598 = vadd.f32 %v4412, %v4570
        %v4599 = vadd.f32 %v4413, %v4575
        %v4600 = vadd.f32 %v4414, %v4578
        %v4601 = vadd.f32 %v4415, %v4583
        %v4602 = vadd.f32 %v4416, %v4586
        %v4603 = vadd.f32 %v4417, %v4591
        %v4604 = vadd.f32 %v4418, %v4594
        %v4605 = vld [vmem:[#allocation16] sm:$0x1]
        %v4607 = vlaneseq
        %v4608 = vshrl.u32 %v4607, 7
        %v4609 = vsub.s32 0, %v4608
        %v4610 = vrot.slane %v4605, %v4609
        %v4612 = vadd.f32 %v4597, %v4610
        %v4613 = vadd.f32 %v4598, %v4610
        %v4614 = vadd.f32 %v4599, %v4610
        %v4615 = vadd.f32 %v4600, %v4610
        %v4616 = vadd.f32 %v4601, %v4610
        %v4617 = vadd.f32 %v4602, %v4610
        %v4618 = vadd.f32 %v4603, %v4610
        %v4619 = vadd.f32 %v4604, %v4610
        %v4620 = vpack.c.bf16 %v528, %v527
        %v4621 = vpack.c.bf16 %v530, %v529
        %v4622 = vpack.c.bf16 %v532, %v531
        %v4623 = vpack.c.bf16 %v534, %v533
        %v4624 = vld [vmem:[%s10] sm:$0xf]
        %v4625 = vld [vmem:[%s10 + $0x4] sm:$0xf]
        %v4626 = vld [vmem:[%s10 + $0x8] sm:$0xf]
        %v4627 = vld [vmem:[%s10 + $0xc] sm:$0xf]
        %v4628 = vld [vmem:[%s11] sm:$0x1]
        %v4630 = vlaneseq
        %v4631 = vshrl.u32 %v4630, 7
        %v4632 = vsub.s32 0, %v4631
        %v4633 = vrot.slane %v4628, %v4632
        %v4639 = vunpack.c.l.b16 %v4624
        %v4640 = vunpack.c.l.b16 %v4625
        %v4641 = vunpack.c.l.b16 %v4626
        %v4642 = vunpack.c.l.b16 %v4627
        %v4643 = vpack.c.b16 %v4640, %v4639
        %v4644 = vpack.c.b16 %v4642, %v4641
        %v4648 = vsel %vm537, %v4620, 0
        %v4651 = vsel %vm537, %v4621, 0
        %v4654 = vsel %vm537, %v4622, 0
        %v4657 = vsel %vm537, %v4623, 0
        %4659 = vmatprep.subr.bf16.mxu0 0
        %4660 = vmatpush1.bf16.msra.mxu0 0
        %4661 = vmatprep.subr.bf16.mxu0 0
        %4662 = vmatpush1.bf16.msra.mxu0 0
        %4663 = vmatprep.subr.bf16.mxu0 0
        %4664 = vmatpush1.bf16.msra.mxu0 0
        %4665 = vmatprep.subr.bf16.mxu0 0
        %4666 = vmatpush1.bf16.msra.mxu0 0
        %4667 = vmatprep.subr.bf16.mxu0 0
        %4668 = vmatpush1.bf16.msra.mxu0 0
        %4669 = vmatprep.subr.bf16.mxu0 0
        %4670 = vmatpush1.bf16.msra.mxu0 0
        %4671 = vmatprep.subr.bf16.mxu0 0
        %4672 = vmatpush1.bf16.msra.mxu0 %v4644
        %4673 = vmatprep.subr.bf16.mxu0 0
        %4674 = vmatpush1.bf16.msra.mxu0 %v4643
        %4675 = vmatprep.subr.bf16.mxu0 0
        %4676 = vmatpush2.bf16.msra.mxu0 0
        %4677 = vmatprep.subr.bf16.mxu0 0
        %4678 = vmatpush2.bf16.msra.mxu0 0
        %4679 = vmatprep.subr.bf16.mxu0 0
        %4680 = vmatpush2.bf16.msra.mxu0 0
        %4681 = vmatprep.subr.bf16.mxu0 0
        %4682 = vmatpush2.bf16.msra.mxu0 0
        %4683 = vmatprep.subr.bf16.mxu0 0
        %4684 = vmatpush2.bf16.msra.mxu0 0
        %4685 = vmatprep.subr.bf16.mxu0 0
        %4686 = vmatpush2.bf16.msra.mxu0 0
        %4687 = vmatprep.subr.bf16.mxu0 0
        %4688 = vmatpush2.bf16.msra.mxu0 0
        %4689 = vmatprep.subr.bf16.mxu0 0
        %4690 = vmatpush2.bf16.msra.mxu0 0
        %4691 = vmatprep.mubr.bf16.mxu0 0
        %4692 = vmatmul.mubr.bf16.gmra.mxu0 %v4648
        %v4693 = vpop.f32.mrf.mxu0
        %v4694 = vadd.f32 %v4633, %v4693
        %v4695 = vpop.f32.mrf.mxu0
        %v4696 = vpop.f32.mrf.mxu0
        %v4697 = vadd.f32 %v4633, %v4696
        %v4698 = vpop.f32.mrf.mxu0
        %4699 = vmatprep.mubr.bf16.mxu0 0
        %4700 = vmatmul.mubr.bf16.gmra.mxu0 %v4651
        %v4701 = vpop.f32.mrf.mxu0
        %v4702 = vadd.f32 %v4633, %v4701
        %v4703 = vpop.f32.mrf.mxu0
        %v4704 = vpop.f32.mrf.mxu0
        %v4705 = vadd.f32 %v4633, %v4704
        %v4706 = vpop.f32.mrf.mxu0
        %4707 = vmatprep.mubr.bf16.mxu0 0
        %4708 = vmatmul.mubr.bf16.gmra.mxu0 %v4654
        %v4709 = vpop.f32.mrf.mxu0
        %v4710 = vadd.f32 %v4633, %v4709
        %v4711 = vpop.f32.mrf.mxu0
        %v4712 = vpop.f32.mrf.mxu0
        %v4713 = vadd.f32 %v4633, %v4712
        %v4714 = vpop.f32.mrf.mxu0
        %4715 = vmatprep.mubr.bf16.mxu0 0
        %4716 = vmatmul.mubr.bf16.gmra.mxu0 %v4657
        %v4717 = vpop.f32.mrf.mxu0
        %v4718 = vadd.f32 %v4633, %v4717
        %v4719 = vpop.f32.mrf.mxu0
        %v4720 = vpop.f32.mrf.mxu0
        %v4721 = vadd.f32 %v4633, %v4720
        %v4722 = vpop.f32.mrf.mxu0
        %4723 = vdwg.mxu0
        %v4724 = vadd.f32 %v4612, %v4694
        %v4725 = vadd.f32 %v4613, %v4697
        %v4726 = vadd.f32 %v4614, %v4702
        %v4727 = vadd.f32 %v4615, %v4705
        %v4728 = vadd.f32 %v4616, %v4710
        %v4729 = vadd.f32 %v4617, %v4713
        %v4730 = vadd.f32 %v4618, %v4718
        %v4731 = vadd.f32 %v4619, %v4721
        %4732 = vst.msk [vmem:[%s525] sm:$0xff] %vm2493, %v4724
        %4733 = vst.msk [vmem:[%s525 + $0x8] sm:$0xff] %vm2493, %v4725
        %4734 = vst.msk [vmem:[%s525 + $0x10] sm:$0xff] %vm2493, %v4726
        %4735 = vst.msk [vmem:[%s525 + $0x18] sm:$0xff] %vm2493, %v4727
        %4736 = vst.msk [vmem:[%s525 + $0x20] sm:$0xff] %vm2493, %v4728
        %4737 = vst.msk [vmem:[%s525 + $0x28] sm:$0xff] %vm2493, %v4729
        %4738 = vst.msk [vmem:[%s525 + $0x30] sm:$0xff] %vm2493, %v4730
        %4739 = vst.msk [vmem:[%s525 + $0x38] sm:$0xff] %vm2493, %v4731
        %s4740 = sand.u32 %s298, 1
        %s4741 = scalar_lea.sflag [#allocation6], %s4740
        %s4742 = sand.u32 %s298, 1
        %s4743 = smul.addr %s4742, 64
        %s4744 = scalar_lea.vmem [#allocation18], %s4743
        // Predicated region
        $region101: #{tpu_custom_call.1} parent=67 // pred_check
          %p4745 = pneg %p308
        $region102: #{tpu_custom_call.1} parent=67 // pred_check_branch
          %4747 = sbr.rel (%p4745) target = $region104
        $region103: #{tpu_custom_call.1} parent=67 // pred_region
          %s4749 = ssub.s32 1024, 1024
          %4750 = vsyncadd %s4741, %s4749
          %s4751 = smul.addr %s33, 8
          %s4752 = smul.addr %s4751, 128
          %s4753 = scalar_lea.hbm %s12, %s4752
          %s4754 = sshll.u32 %s4744, 4
          %s4755 = int_to_ptr.vmem [resolvable:$true] %s4754
          %4760 = dma.vmem_to_hbm [thread:$0]  %s4755, 1024, %s4753, %s4741, 128, 128, 8
        $region104: #{tpu_custom_call.1} parent=67 // pred_fallthru
          _
      $region68: #{tpu_custom_call.1} parent=5 // pred_fallthru
        _
      %p4761 = scmp.le.s32.totalorder 2, %s28
      // Predicated region
      $region105: #{tpu_custom_call.1} parent=5 // pred_check
        %p4762 = pneg %p4761
      $region106: #{tpu_custom_call.1} parent=5 // pred_check_branch
        %4764 = sbr.rel (%p4762) target = $region108
      $region107: #{tpu_custom_call.1} parent=5 // pred_region
        %s4765 = ssub.s32 %s28, 2
        // Predicated region
        $region109: #{tpu_custom_call.1} parent=107 // pred_check
          %p4766 = pneg %p314
        $region110: #{tpu_custom_call.1} parent=107 // pred_check_branch
          %4768 = sbr.rel (%p4766) target = $region112
        $region111: #{tpu_custom_call.1} parent=107 // pred_region
          %s4769 = sand.u32 %s299, 1
          %s4770 = scalar_lea.sflag [#allocation6], %s4769
          %s4771 = sand.u32 %s299, 1
          %s4772 = smul.addr %s4771, 64
          %s4773 = scalar_lea.vmem [#allocation18], %s4772
          %4774 = dma.done %s4770, 1024
        $region112: #{tpu_custom_call.1} parent=107 // pred_fallthru
          _
      $region108: #{tpu_custom_call.1} parent=5 // pred_fallthru
        _
    $region6: #{tpu_custom_call.1} parent=1 // loop_footer
      %s32 = sadd.s32 1, %s28
    $region7: #{tpu_custom_call.1} parent=1 // loop_footer_branch
      %27 = sbr.rel target = $region3
    $region8: #{tpu_custom_call.1} parent=1 // loop_exit
      _
    %4775 = vsyncpa [#allocation5], 1
    %s4776 = scalar_lea.sflag [#allocation5], 1
    %4777 = vsyncpa %s4776, 1
    %4778 = vsyncpa [#allocation8], 1
    %4779 = vsyncpa [#allocation11], 1
    %4780 = vsyncpa [#allocation14], 1
    %4781 = vsyncpa [#allocation17], 1
    %4782 = vsyncpa [#allocation6], 1
    %s4783 = scalar_lea.sflag [#allocation6], 1
    %4784 = vsyncpa %s4783, 1

</llo_original>
